<compile_context>
chip_gen: v7x
topology: tpu7x:2x2x1
jax: 0.10.0
libtpu: 0.0.40
codegen_flags: <defaults>
</compile_context>

<pallas_src>
import jax
import jax.numpy as jnp
from jax.experimental import pallas as pl
from jax.experimental.pallas import tpu as pltpu

EPS = 1e-5


def fused_kernel(g_ref, x_ref, r_ref, w1_ref, bn1_ref, w2_ref, bn2_ref, o_ref):
    # g_ref   : (1, C1)    f32  pre-sigmoid channel gate (row layout)
    # x_ref   : (C1, P)    bf16 x181 flattened (channels on sublanes, pixels on lanes)
    # r_ref   : (C2, P)    bf16 x175 flattened (residual add)
    # w1_ref  : (C2, C1)   bf16 conv2d63 weight, torch (Cout, Cin) layout
    # bn1_ref : (C2, 2)    f32  [gamma1 | beta1]
    # w2_ref  : (BLK, C2)  bf16 conv2d64 weight, row block of torch (Cout, Cin)
    # bn2_ref : (BLK, 2)   f32  [gamma2 | beta2] row block
    # o_ref   : (BLK, P)   f32  output row block
    P = x_ref.shape[1]
    inv_p = jnp.float32(1.0 / P)

    # ---- stage 1 (cheap, recomputed per grid block) -------------------------
    # Fold the sigmoid gate into conv1's input-channel axis (tiny 96x576 mul
    # instead of a full pass over the (576, P) activation).
    gate = jax.nn.sigmoid(g_ref[...])                                  # (1, C1) f32
    w1s = (w1_ref[...] * gate).astype(jnp.bfloat16)                    # (C2, C1) bf16

    # conv1 (1x1) on the MXU: bf16 operands, f32 accumulation.
    y1 = jnp.dot(w1s, x_ref[...], preferred_element_type=jnp.float32)  # (C2, P) f32

    # BatchNorm2d(96), training mode: single-pass batch stats (f32) + folded affine.
    m1 = jnp.sum(y1, axis=1, keepdims=True) * inv_p
    v1 = jnp.sum(y1 * y1, axis=1, keepdims=True) * inv_p - m1 * m1
    bn1 = bn1_ref[...]
    scale1 = bn1[:, 0:1] * jax.lax.rsqrt(v1 + EPS)
    bias1 = bn1[:, 1:2] - m1 * scale1

    # normalize + residual add, then cut to bf16 for the second MXU matmul.
    z = (y1 * scale1 + bias1 + r_ref[...]).astype(jnp.bfloat16)        # (C2, P)

    # ---- stage 2 (this block's slice of the 576 output channels) ------------
    y2 = jnp.dot(w2_ref[...], z, preferred_element_type=jnp.float32)   # (BLK, P) f32

    # BatchNorm2d(576), training mode — per-channel stats over P only, so the
    # row split across the grid is exact.
    m2 = jnp.sum(y2, axis=1, keepdims=True) * inv_p
    v2 = jnp.sum(y2 * y2, axis=1, keepdims=True) * inv_p - m2 * m2
    bn2 = bn2_ref[...]
    scale2 = bn2[:, 0:1] * jax.lax.rsqrt(v2 + EPS)
    bias2 = bn2[:, 1:2] - m2 * scale2

    o_ref[...] = y2 * scale2 + bias2


def module_forward(x185, x181, x175, params, *, n_blocks=2):
    """x185: (1,C1,1,1), x181: (1,C1,H,W), x175: (1,C2,H,W) -> (1,C1,H,W) f32."""
    N, C1, H, W = x181.shape
    C2 = x175.shape[1]
    assert N == 1, "gate broadcast + free (C,P) reshape assume batch 1 (as in the module)"
    P = H * W
    assert C1 % n_blocks == 0 and (C1 // n_blocks) % 8 == 0
    blk = C1 // n_blocks

    # Free reshapes (no transposes) for N == 1; dtype cut at the HBM boundary.
    x_cp = x181.reshape(C1, P).astype(jnp.bfloat16)
    r_cp = x175.reshape(C2, P).astype(jnp.bfloat16)
    g_row = x185.reshape(1, C1).astype(jnp.float32)
    w1 = params["w1"].astype(jnp.bfloat16)                 # (C2, C1)
    w2 = params["w2"].astype(jnp.bfloat16)                 # (C1, C2)
    bn1 = jnp.concatenate([params["gamma1"], params["beta1"]], axis=1).astype(jnp.float32)
    bn2 = jnp.concatenate([params["gamma2"], params["beta2"]], axis=1).astype(jnp.float32)

    flops = 2 * C1 * C2 * P * (n_blocks + 1)               # conv2 + n_blocks x conv1
    bytes_accessed = (2 * (C1 * P + C2 * P + 2 * C1 * C2)  # bf16 inputs
                      + 4 * (C1 * P + C1 + 2 * (C1 + C2))) # f32 output + gate + BN params

    out = pl.pallas_call(
        fused_kernel,
        grid=(n_blocks,),
        in_specs=[
            pl.BlockSpec((1, C1), lambda i: (0, 0)),       # gate (full)
            pl.BlockSpec((C1, P), lambda i: (0, 0)),       # x (full)
            pl.BlockSpec((C2, P), lambda i: (0, 0)),       # residual (full)
            pl.BlockSpec((C2, C1), lambda i: (0, 0)),      # w1 (full)
            pl.BlockSpec((C2, 2), lambda i: (0, 0)),       # [gamma1|beta1] (full)
            pl.BlockSpec((blk, C2), lambda i: (i, 0)),     # w2 row block
            pl.BlockSpec((blk, 2), lambda i: (i, 0)),      # [gamma2|beta2] row block
        ],
        out_specs=pl.BlockSpec((blk, P), lambda i: (i, 0)),
        out_shape=jax.ShapeDtypeStruct((C1, P), jnp.float32),
        compiler_params=pltpu.CompilerParams(dimension_semantics=("parallel",)),
        cost_estimate=pl.CostEstimate(
            flops=flops,
            transcendentals=(n_blocks + 1) * C1 + n_blocks * C2,
            bytes_accessed=bytes_accessed),
    )(g_row, x_cp, r_cp, w1, bn1, w2, bn2)

    return out.reshape(N, C1, H, W)


def reference_forward(x185, x181, x175, params):
    """Pure-JAX reference mirroring the PyTorch module (training-mode BN),
    with the same bf16 rounding points as the kernel (f32 accumulation)."""
    f32 = jnp.float32
    N, C1, H, W = x181.shape
    C2 = x175.shape[1]
    P = H * W

    x = x181.reshape(C1, P).astype(jnp.bfloat16).astype(f32)
    r = x175.reshape(C2, P).astype(jnp.bfloat16).astype(f32)
    w1 = params["w1"].astype(jnp.bfloat16).astype(f32)
    w2 = params["w2"].astype(jnp.bfloat16).astype(f32)

    gate = jax.nn.sigmoid(x185.reshape(1, C1).astype(f32))
    w1s = (w1 * gate).astype(jnp.bfloat16).astype(f32)

    y1 = w1s @ x                                                    # conv1 (1x1)
    m1 = y1.mean(axis=1, keepdims=True)
    v1 = ((y1 - m1) ** 2).mean(axis=1, keepdims=True)
    y1n = (y1 - m1) / jnp.sqrt(v1 + EPS) * params["gamma1"] + params["beta1"]

    z = (y1n + r).astype(jnp.bfloat16).astype(f32)

    y2 = w2 @ z                                                     # conv2 (1x1)
    m2 = y2.mean(axis=1, keepdims=True)
    v2 = ((y2 - m2) ** 2).mean(axis=1, keepdims=True)
    y2n = (y2 - m2) / jnp.sqrt(v2 + EPS) * params["gamma2"] + params["beta2"]

    return y2n.reshape(N, C1, H, W)


if __name__ == "__main__":
    # Shapes consistent with the module's forward.
    N, C1, C2, H, W = 1, 576, 96, 14, 14

    key = jax.random.PRNGKey(0)
    k = jax.random.split(key, 8)

    x185 = jax.random.normal(k[0], (N, C1, 1, 1), dtype=jnp.float32)
    x181 = jax.random.normal(k[1], (N, C1, H, W), dtype=jnp.float32)
    x175 = jax.random.normal(k[2], (N, C2, H, W), dtype=jnp.float32)

    # Torch Conv2d weight layout (Cout, Cin, 1, 1) -> (Cout, Cin); BN params as columns.
    params = {
        "w1": jax.random.normal(k[3], (C2, C1), dtype=jnp.float32) * (C1 ** -0.5),
        "w2": jax.random.normal(k[4], (C1, C2), dtype=jnp.float32) * (C2 ** -0.5),
        "gamma1": 1.0 + 0.1 * jax.random.normal(k[5], (C2, 1), dtype=jnp.float32),
        "beta1": 0.1 * jax.random.normal(k[6], (C2, 1), dtype=jnp.float32),
        "gamma2": 1.0 + 0.1 * jax.random.normal(k[7], (C1, 1), dtype=jnp.float32),
        "beta2": jnp.zeros((C1, 1), dtype=jnp.float32),
    }

    out = jax.block_until_ready(module_forward(x185, x181, x175, params))
    ref = jax.block_until_ready(reference_forward(x185, x181, x175, params))

    assert out.shape == (N, C1, H, W), out.shape
    assert jnp.allclose(out, ref, rtol=5e-3, atol=5e-3), float(jnp.max(jnp.abs(out - ref)))
    print("KERNEL_OK")
</pallas_src>

<mosaic_0001>
module attributes {stable_mosaic.version = 11 : i64} {
  func.func @fused_kernel(%arg0: i32, %arg1: memref<1x576xf32, #tpu.memory_space<vmem>>, %arg2: memref<576x196xbf16, #tpu.memory_space<vmem>>, %arg3: memref<96x196xbf16, #tpu.memory_space<vmem>>, %arg4: memref<96x576xbf16, #tpu.memory_space<vmem>>, %arg5: memref<96x2xf32, #tpu.memory_space<vmem>>, %arg6: memref<288x96xbf16, #tpu.memory_space<vmem>>, %arg7: memref<288x2xf32, #tpu.memory_space<vmem>>, %arg8: memref<288x196xf32, #tpu.memory_space<vmem>>) attributes {dimension_semantics = [#tpu.dimension_semantics<parallel>], iteration_bounds = array<i64: 2>, scalar_prefetch = 0 : i64, scratch_operands = 0 : i64, tpu.core_type = #tpu.core_type<tc>, window_params = [{pipeline_mode = #tpu.pipeline_mode<synchronous>, transform_indices = @transform_0, window_bounds = array<i64: 1, 576>}, {pipeline_mode = #tpu.pipeline_mode<synchronous>, transform_indices = @transform_1, window_bounds = array<i64: 576, 196>}, {pipeline_mode = #tpu.pipeline_mode<synchronous>, transform_indices = @transform_2, window_bounds = array<i64: 96, 196>}, {pipeline_mode = #tpu.pipeline_mode<synchronous>, transform_indices = @transform_3, window_bounds = array<i64: 96, 576>}, {pipeline_mode = #tpu.pipeline_mode<synchronous>, transform_indices = @transform_4, window_bounds = array<i64: 96, 2>}, {transform_indices = @transform_5, window_bounds = array<i64: 288, 96>}, {transform_indices = @transform_6, window_bounds = array<i64: 288, 2>}, {transform_indices = @transform_7, window_bounds = array<i64: 288, 196>}]} {
    %c0 = arith.constant 0 : index
    %c0_0 = arith.constant 0 : index
    %0 = vector.load %arg1[%c0, %c0_0] : memref<1x576xf32, #tpu.memory_space<vmem>>, vector<1x576xf32>
    %1 = arith.negf %0 : vector<1x576xf32>
    %2 = math.exp %1 : vector<1x576xf32>
    %cst = arith.constant 1.000000e+00 : f32
    %3 = vector.broadcast %cst : f32 to vector<1x576xf32>
    %4 = arith.addf %3, %2 : vector<1x576xf32>
    %5 = arith.divf %3, %4 : vector<1x576xf32>
    %c0_1 = arith.constant 0 : index
    %c0_2 = arith.constant 0 : index
    %6 = vector.load %arg4[%c0_1, %c0_2] : memref<96x576xbf16, #tpu.memory_space<vmem>>, vector<96x576xbf16>
    %7 = arith.extf %6 : vector<96x576xbf16> to vector<96x576xf32>
    %8 = vector.broadcast %5 : vector<1x576xf32> to vector<96x576xf32>
    %9 = arith.mulf %7, %8 : vector<96x576xf32>
    %10 = arith.truncf %9 : vector<96x576xf32> to vector<96x576xbf16>
    %c0_3 = arith.constant 0 : index
    %c0_4 = arith.constant 0 : index
    %11 = vector.load %arg2[%c0_3, %c0_4] : memref<576x196xbf16, #tpu.memory_space<vmem>>, vector<576x196xbf16>
    %cst_5 = arith.constant dense<0.000000e+00> : vector<96x196xf32>
    %12 = tpu.matmul %10, %11, %cst_5 {dimension_numbers = #tpu.dot_dimension_numbers<[1], [0], [0], [1], [0, 0, 1, 1], [], []>} : vector<96x576xbf16>, vector<576x196xbf16>, vector<96x196xf32> -> vector<96x196xf32>
    %cst_6 = arith.constant dense<0.000000e+00> : vector<96xf32>
    %13 = vector.multi_reduction <add>, %12, %cst_6 [1] : vector<96x196xf32> to vector<96xf32>
    %14 = vector.shape_cast %13 : vector<96xf32> to vector<96x1xf32>
    %cst_7 = arith.constant 0.00510204071 : f32
    %15 = vector.broadcast %cst_7 : f32 to vector<96x1xf32>
    %16 = arith.mulf %14, %15 : vector<96x1xf32>
    %17 = arith.mulf %12, %12 : vector<96x196xf32>
    %cst_8 = arith.constant dense<0.000000e+00> : vector<96xf32>
    %18 = vector.multi_reduction <add>, %17, %cst_8 [1] : vector<96x196xf32> to vector<96xf32>
    %19 = vector.shape_cast %18 : vector<96xf32> to vector<96x1xf32>
    %cst_9 = arith.constant 0.00510204071 : f32
    %20 = vector.broadcast %cst_9 : f32 to vector<96x1xf32>
    %21 = arith.mulf %19, %20 : vector<96x1xf32>
    %22 = arith.mulf %16, %16 : vector<96x1xf32>
    %23 = arith.subf %21, %22 : vector<96x1xf32>
    %c0_10 = arith.constant 0 : index
    %c0_11 = arith.constant 0 : index
    %24 = vector.load %arg5[%c0_10, %c0_11] : memref<96x2xf32, #tpu.memory_space<vmem>>, vector<96x2xf32>
    %25 = vector.extract_strided_slice %24 {offsets = [0, 0], sizes = [96, 1], strides = [1, 1]} : vector<96x2xf32> to vector<96x1xf32>
    %cst_12 = arith.constant 9.99999974E-6 : f32
    %26 = vector.broadcast %cst_12 : f32 to vector<96x1xf32>
    %27 = arith.addf %23, %26 : vector<96x1xf32>
    %28 = math.rsqrt %27 : vector<96x1xf32>
    %29 = arith.mulf %25, %28 : vector<96x1xf32>
    %30 = vector.extract_strided_slice %24 {offsets = [0, 1], sizes = [96, 1], strides = [1, 1]} : vector<96x2xf32> to vector<96x1xf32>
    %31 = arith.mulf %16, %29 : vector<96x1xf32>
    %32 = arith.subf %30, %31 : vector<96x1xf32>
    %33 = vector.broadcast %29 : vector<96x1xf32> to vector<96x196xf32>
    %34 = arith.mulf %12, %33 : vector<96x196xf32>
    %35 = vector.broadcast %32 : vector<96x1xf32> to vector<96x196xf32>
    %36 = arith.addf %34, %35 : vector<96x196xf32>
    %c0_13 = arith.constant 0 : index
    %c0_14 = arith.constant 0 : index
    %37 = vector.load %arg3[%c0_13, %c0_14] : memref<96x196xbf16, #tpu.memory_space<vmem>>, vector<96x196xbf16>
    %38 = arith.extf %37 : vector<96x196xbf16> to vector<96x196xf32>
    %39 = arith.addf %36, %38 : vector<96x196xf32>
    %40 = arith.truncf %39 : vector<96x196xf32> to vector<96x196xbf16>
    %c0_15 = arith.constant 0 : index
    %c0_16 = arith.constant 0 : index
    %41 = vector.load %arg6[%c0_15, %c0_16] : memref<288x96xbf16, #tpu.memory_space<vmem>>, vector<288x96xbf16>
    %cst_17 = arith.constant dense<0.000000e+00> : vector<288x196xf32>
    %42 = tpu.matmul %41, %40, %cst_17 {dimension_numbers = #tpu.dot_dimension_numbers<[1], [0], [0], [1], [0, 0, 1, 1], [], []>} : vector<288x96xbf16>, vector<96x196xbf16>, vector<288x196xf32> -> vector<288x196xf32>
    %cst_18 = arith.constant dense<0.000000e+00> : vector<288xf32>
    %43 = vector.multi_reduction <add>, %42, %cst_18 [1] : vector<288x196xf32> to vector<288xf32>
    %44 = vector.shape_cast %43 : vector<288xf32> to vector<288x1xf32>
    %cst_19 = arith.constant 0.00510204071 : f32
    %45 = vector.broadcast %cst_19 : f32 to vector<288x1xf32>
    %46 = arith.mulf %44, %45 : vector<288x1xf32>
    %47 = arith.mulf %42, %42 : vector<288x196xf32>
    %cst_20 = arith.constant dense<0.000000e+00> : vector<288xf32>
    %48 = vector.multi_reduction <add>, %47, %cst_20 [1] : vector<288x196xf32> to vector<288xf32>
    %49 = vector.shape_cast %48 : vector<288xf32> to vector<288x1xf32>
    %cst_21 = arith.constant 0.00510204071 : f32
    %50 = vector.broadcast %cst_21 : f32 to vector<288x1xf32>
    %51 = arith.mulf %49, %50 : vector<288x1xf32>
    %52 = arith.mulf %46, %46 : vector<288x1xf32>
    %53 = arith.subf %51, %52 : vector<288x1xf32>
    %c0_22 = arith.constant 0 : index
    %c0_23 = arith.constant 0 : index
    %54 = vector.load %arg7[%c0_22, %c0_23] : memref<288x2xf32, #tpu.memory_space<vmem>>, vector<288x2xf32>
    %55 = vector.extract_strided_slice %54 {offsets = [0, 0], sizes = [288, 1], strides = [1, 1]} : vector<288x2xf32> to vector<288x1xf32>
    %cst_24 = arith.constant 9.99999974E-6 : f32
    %56 = vector.broadcast %cst_24 : f32 to vector<288x1xf32>
    %57 = arith.addf %53, %56 : vector<288x1xf32>
    %58 = math.rsqrt %57 : vector<288x1xf32>
    %59 = arith.mulf %55, %58 : vector<288x1xf32>
    %60 = vector.extract_strided_slice %54 {offsets = [0, 1], sizes = [288, 1], strides = [1, 1]} : vector<288x2xf32> to vector<288x1xf32>
    %61 = arith.mulf %46, %59 : vector<288x1xf32>
    %62 = arith.subf %60, %61 : vector<288x1xf32>
    %63 = vector.broadcast %59 : vector<288x1xf32> to vector<288x196xf32>
    %64 = arith.mulf %42, %63 : vector<288x196xf32>
    %65 = vector.broadcast %62 : vector<288x1xf32> to vector<288x196xf32>
    %66 = arith.addf %64, %65 : vector<288x196xf32>
    %c0_25 = arith.constant 0 : index
    %c0_26 = arith.constant 0 : index
    %67 = vector.load %arg8[%c0_25, %c0_26] : memref<288x196xf32, #tpu.memory_space<vmem>>, vector<288x196xf32>
    tpu.vector_store %arg8[%c0_25, %c0_26], %66 {strides = array<i32>} : memref<288x196xf32, #tpu.memory_space<vmem>>, vector<288x196xf32>,
    return
  }
  func.func @transform_0(%arg0: i32) -> (i32, i32) {
    %c0_i32 = arith.constant 0 : i32
    %c0_i32_0 = arith.constant 0 : i32
    %c0_i32_1 = arith.constant 0 : i32
    return %c0_i32, %c0_i32_0 : i32, i32
  }
  func.func @transform_1(%arg0: i32) -> (i32, i32) {
    %c0_i32 = arith.constant 0 : i32
    %c0_i32_0 = arith.constant 0 : i32
    %c0_i32_1 = arith.constant 0 : i32
    return %c0_i32, %c0_i32_0 : i32, i32
  }
  func.func @transform_2(%arg0: i32) -> (i32, i32) {
    %c0_i32 = arith.constant 0 : i32
    %c0_i32_0 = arith.constant 0 : i32
    %c0_i32_1 = arith.constant 0 : i32
    return %c0_i32, %c0_i32_0 : i32, i32
  }
  func.func @transform_3(%arg0: i32) -> (i32, i32) {
    %c0_i32 = arith.constant 0 : i32
    %c0_i32_0 = arith.constant 0 : i32
    %c0_i32_1 = arith.constant 0 : i32
    return %c0_i32, %c0_i32_0 : i32, i32
  }
  func.func @transform_4(%arg0: i32) -> (i32, i32) {
    %c0_i32 = arith.constant 0 : i32
    %c0_i32_0 = arith.constant 0 : i32
    %c0_i32_1 = arith.constant 0 : i32
    return %c0_i32, %c0_i32_0 : i32, i32
  }
  func.func @transform_5(%arg0: i32) -> (i32, i32) {
    %c0_i32 = arith.constant 0 : i32
    %c0_i32_0 = arith.constant 0 : i32
    return %arg0, %c0_i32 : i32, i32
  }
  func.func @transform_6(%arg0: i32) -> (i32, i32) {
    %c0_i32 = arith.constant 0 : i32
    %c0_i32_0 = arith.constant 0 : i32
    return %arg0, %c0_i32 : i32, i32
  }
  func.func @transform_7(%arg0: i32) -> (i32, i32) {
    %c0_i32 = arith.constant 0 : i32
    %c0_i32_0 = arith.constant 0 : i32
    return %arg0, %c0_i32 : i32, i32
  }
}

</mosaic_0001>

<llo_original>
// kernel: tpu_custom_call.1
$region0: #{tpu_custom_call.1}
  #allocation0 [shape = 'u32[]', space=smem, size = 0x4, offset = 0x4, fixed_abs, tag = 'smem constant byte address 0x4 - core index']
  #allocation1 [shape = 'u32[144,128]{1,0:T(1,128)}', space=vmem, size = 0x12000, scoped, tag = 'internal scratch']
  %s0 = inlined_call_operand.vmem [shape: f32[1,576], index: 0, kind: input, shape index: {}]
  %s1 = inlined_call_operand.vmem [shape: bf16[576,196], index: 1, kind: input, shape index: {}]
  %s2 = inlined_call_operand.vmem [shape: bf16[96,196], index: 2, kind: input, shape index: {}]
  %s3 = inlined_call_operand.vmem [shape: bf16[96,576], index: 3, kind: input, shape index: {}]
  %s4 = inlined_call_operand.vmem [shape: f32[96,2], index: 4, kind: input, shape index: {}]
  %s5 = inlined_call_operand.vmem [shape: bf16[576,96], index: 5, kind: input, shape index: {}]
  %s6 = inlined_call_operand.vmem [shape: f32[576,2], index: 6, kind: input, shape index: {}]
  %s7 = inlined_call_operand.vmem [shape: f32[576,196], index: 7, kind: output, shape index: {}]
  %s8 = sld [smem:[#allocation0]]
  $region61: #{tpu_custom_call.1} parent=0
    _
  %s10 = ssub.s32 1, %s8
  %s11 = scalar_select 0, %s10, %s8
  loop: start=0, step=1, limit=4
  $region2: #{tpu_custom_call.1} parent=0 // loop_pre_header
    _
  $region3: #{tpu_custom_call.1} parent=0 // loop_header
    %s13 = sphi 0, %s17
    %p14 = scmp.ge.s32.totalorder %s13, 4
    %s21 = sphi 0, %s21
    %s23 = sphi 0, %s21
    %s24 = sphi 0, %s23
    %s38 = sphi 0, %s24
    %s42 = sphi 0, %s42
    %s44 = sphi 0, %s42
    %s45 = sphi 0, %s44
    %s59 = sphi 0, %s45
    %s63 = sphi 0, %s63
    %s65 = sphi 0, %s63
    %s66 = sphi 0, %s65
    %s80 = sphi 0, %s66
    %s84 = sphi 0, %s84
    %s86 = sphi 0, %s84
    %s87 = sphi 0, %s86
    %s101 = sphi 0, %s87
    %s105 = sphi 0, %s105
    %s107 = sphi 0, %s105
    %s108 = sphi 0, %s107
    %s122 = sphi 0, %s108
    %s128 = sphi 0, %s130
    %s131 = sphi 0, %s128
    %s132 = sphi 0, %s131
    %s148 = sphi 0, %s132
    %s154 = sphi 0, %s156
    %s157 = sphi 0, %s154
    %s158 = sphi 0, %s157
    %s174 = sphi 0, %s158
    %s180 = sphi 0, %s182
    %s183 = sphi 0, %s180
    %s184 = sphi 0, %s183
    %s200 = sphi 0, %s184
  $region4: #{tpu_custom_call.1} parent=0 // loop_header_branch
    %16 = sbr.rel (%p14) target = $region8
  $region5: #{tpu_custom_call.1} parent=0 // loop_body
    %s18 = ssub.s32 %s13, 1
    %s19 = ssub.s32 %s13, 2
    %s20 = sadd.s32 %s13, 1
    %s22 = sadd.s32 %s21, 1
    %p25 = scmp.eq.s32.totalorder %s13, 1
    %p26 = scmp.ne.s32.totalorder %s21, %s23
    %p27 = scmp.eq.s32.totalorder %s13, 0
    %p28 = por %p26, %p27
    %p29 = scmp.ne.s32.totalorder %s21, %s23
    %p30 = scmp.eq.s32.totalorder %s18, 1
    %p31 = por %p29, %p30
    %p32 = scmp.ne.s32.totalorder %s23, %s24
    %p33 = scmp.eq.s32.totalorder %s18, 0
    %p34 = por %p32, %p33
    %p35 = scmp.ne.s32.totalorder %s23, %s24
    %p36 = scmp.eq.s32.totalorder %s19, 1
    %p37 = por %p35, %p36
    %p39 = scmp.ne.s32.totalorder %s24, %s38
    %p40 = scmp.eq.s32.totalorder %s19, 0
    %p41 = por %p39, %p40
    %s43 = sadd.s32 %s42, 1
    %p46 = scmp.eq.s32.totalorder %s13, 1
    %p47 = scmp.ne.s32.totalorder %s42, %s44
    %p48 = scmp.eq.s32.totalorder %s13, 0
    %p49 = por %p47, %p48
    %p50 = scmp.ne.s32.totalorder %s42, %s44
    %p51 = scmp.eq.s32.totalorder %s18, 1
    %p52 = por %p50, %p51
    %p53 = scmp.ne.s32.totalorder %s44, %s45
    %p54 = scmp.eq.s32.totalorder %s18, 0
    %p55 = por %p53, %p54
    %p56 = scmp.ne.s32.totalorder %s44, %s45
    %p57 = scmp.eq.s32.totalorder %s19, 1
    %p58 = por %p56, %p57
    %p60 = scmp.ne.s32.totalorder %s45, %s59
    %p61 = scmp.eq.s32.totalorder %s19, 0
    %p62 = por %p60, %p61
    %s64 = sadd.s32 %s63, 1
    %p67 = scmp.eq.s32.totalorder %s13, 1
    %p68 = scmp.ne.s32.totalorder %s63, %s65
    %p69 = scmp.eq.s32.totalorder %s13, 0
    %p70 = por %p68, %p69
    %p71 = scmp.ne.s32.totalorder %s63, %s65
    %p72 = scmp.eq.s32.totalorder %s18, 1
    %p73 = por %p71, %p72
    %p74 = scmp.ne.s32.totalorder %s65, %s66
    %p75 = scmp.eq.s32.totalorder %s18, 0
    %p76 = por %p74, %p75
    %p77 = scmp.ne.s32.totalorder %s65, %s66
    %p78 = scmp.eq.s32.totalorder %s19, 1
    %p79 = por %p77, %p78
    %p81 = scmp.ne.s32.totalorder %s66, %s80
    %p82 = scmp.eq.s32.totalorder %s19, 0
    %p83 = por %p81, %p82
    %s85 = sadd.s32 %s84, 1
    %p88 = scmp.eq.s32.totalorder %s13, 1
    %p89 = scmp.ne.s32.totalorder %s84, %s86
    %p90 = scmp.eq.s32.totalorder %s13, 0
    %p91 = por %p89, %p90
    %p92 = scmp.ne.s32.totalorder %s84, %s86
    %p93 = scmp.eq.s32.totalorder %s18, 1
    %p94 = por %p92, %p93
    %p95 = scmp.ne.s32.totalorder %s86, %s87
    %p96 = scmp.eq.s32.totalorder %s18, 0
    %p97 = por %p95, %p96
    %p98 = scmp.ne.s32.totalorder %s86, %s87
    %p99 = scmp.eq.s32.totalorder %s19, 1
    %p100 = por %p98, %p99
    %p102 = scmp.ne.s32.totalorder %s87, %s101
    %p103 = scmp.eq.s32.totalorder %s19, 0
    %p104 = por %p102, %p103
    %s106 = sadd.s32 %s105, 1
    %p109 = scmp.eq.s32.totalorder %s13, 1
    %p110 = scmp.ne.s32.totalorder %s105, %s107
    %p111 = scmp.eq.s32.totalorder %s13, 0
    %p112 = por %p110, %p111
    %p113 = scmp.ne.s32.totalorder %s105, %s107
    %p114 = scmp.eq.s32.totalorder %s18, 1
    %p115 = por %p113, %p114
    %p116 = scmp.ne.s32.totalorder %s107, %s108
    %p117 = scmp.eq.s32.totalorder %s18, 0
    %p118 = por %p116, %p117
    %p119 = scmp.ne.s32.totalorder %s107, %s108
    %p120 = scmp.eq.s32.totalorder %s19, 1
    %p121 = por %p119, %p120
    %p123 = scmp.ne.s32.totalorder %s108, %s122
    %p124 = scmp.eq.s32.totalorder %s19, 0
    %p125 = por %p123, %p124
    %s126 = ssub.s32 %s13, %s20
    %p127 = scmp.eq.s32.totalorder %s126, 0
    %s129 = sadd.s32 %s128, 1
    %s130 = scalar_select %p127, %s128, %s129
    %p133 = pneg %p127
    %p134 = scmp.eq.s32.totalorder %s13, 1
    %p135 = por %p133, %p134
    %p136 = scmp.ne.s32.totalorder %s128, %s131
    %p137 = scmp.eq.s32.totalorder %s13, 0
    %p138 = por %p136, %p137
    %p139 = scmp.ne.s32.totalorder %s128, %s131
    %p140 = scmp.eq.s32.totalorder %s18, 1
    %p141 = por %p139, %p140
    %p142 = scmp.ne.s32.totalorder %s131, %s132
    %p143 = scmp.eq.s32.totalorder %s18, 0
    %p144 = por %p142, %p143
    %p145 = scmp.ne.s32.totalorder %s131, %s132
    %p146 = scmp.eq.s32.totalorder %s19, 1
    %p147 = por %p145, %p146
    %p149 = scmp.ne.s32.totalorder %s132, %s148
    %p150 = scmp.eq.s32.totalorder %s19, 0
    %p151 = por %p149, %p150
    %s152 = ssub.s32 %s13, %s20
    %p153 = scmp.eq.s32.totalorder %s152, 0
    %s155 = sadd.s32 %s154, 1
    %s156 = scalar_select %p153, %s154, %s155
    %p159 = pneg %p153
    %p160 = scmp.eq.s32.totalorder %s13, 1
    %p161 = por %p159, %p160
    %p162 = scmp.ne.s32.totalorder %s154, %s157
    %p163 = scmp.eq.s32.totalorder %s13, 0
    %p164 = por %p162, %p163
    %p165 = scmp.ne.s32.totalorder %s154, %s157
    %p166 = scmp.eq.s32.totalorder %s18, 1
    %p167 = por %p165, %p166
    %p168 = scmp.ne.s32.totalorder %s157, %s158
    %p169 = scmp.eq.s32.totalorder %s18, 0
    %p170 = por %p168, %p169
    %p171 = scmp.ne.s32.totalorder %s157, %s158
    %p172 = scmp.eq.s32.totalorder %s19, 1
    %p173 = por %p171, %p172
    %p175 = scmp.ne.s32.totalorder %s158, %s174
    %p176 = scmp.eq.s32.totalorder %s19, 0
    %p177 = por %p175, %p176
    %s178 = ssub.s32 %s13, %s20
    %p179 = scmp.eq.s32.totalorder %s178, 0
    %s181 = sadd.s32 %s180, 1
    %s182 = scalar_select %p179, %s180, %s181
    %p185 = pneg %p179
    %p186 = scmp.eq.s32.totalorder %s13, 1
    %p187 = por %p185, %p186
    %p188 = scmp.ne.s32.totalorder %s180, %s183
    %p189 = scmp.eq.s32.totalorder %s13, 0
    %p190 = por %p188, %p189
    %p191 = scmp.ne.s32.totalorder %s180, %s183
    %p192 = scmp.eq.s32.totalorder %s18, 1
    %p193 = por %p191, %p192
    %p194 = scmp.ne.s32.totalorder %s183, %s184
    %p195 = scmp.eq.s32.totalorder %s18, 0
    %p196 = por %p194, %p195
    %p197 = scmp.ne.s32.totalorder %s183, %s184
    %p198 = scmp.eq.s32.totalorder %s19, 1
    %p199 = por %p197, %p198
    %p201 = scmp.ne.s32.totalorder %s184, %s200
    %p202 = scmp.eq.s32.totalorder %s19, 0
    %p203 = por %p201, %p202
    %p204 = scmp.le.s32.totalorder 1, %s13
    %p205 = scmp.lt.s32.totalorder %s13, 3
    %p206 = pnand %p204, %p205
    %p207 = pneg %p206
    // Predicated region
    $region9: #{tpu_custom_call.1} parent=5 // pred_check
      _
    $region10: #{tpu_custom_call.1} parent=5 // pred_check_branch
      %209 = sbr.rel (%p206) target = $region12
    $region11: #{tpu_custom_call.1} parent=5 // pred_region
      %s210 = ssub.s32 %s13, 1
      // Predicated region
      $region13: #{tpu_custom_call.1} parent=11 // pred_check
        %p211 = pneg %p34
      $region14: #{tpu_custom_call.1} parent=11 // pred_check_branch
        %213 = sbr.rel (%p211) target = $region16
      $region15: #{tpu_custom_call.1} parent=11 // pred_region
        _
      $region16: #{tpu_custom_call.1} parent=11 // pred_fallthru
        _
      // Predicated region
      $region17: #{tpu_custom_call.1} parent=11 // pred_check
        %p214 = pneg %p55
      $region18: #{tpu_custom_call.1} parent=11 // pred_check_branch
        %216 = sbr.rel (%p214) target = $region20
      $region19: #{tpu_custom_call.1} parent=11 // pred_region
        _
      $region20: #{tpu_custom_call.1} parent=11 // pred_fallthru
        _
      // Predicated region
      $region21: #{tpu_custom_call.1} parent=11 // pred_check
        %p217 = pneg %p76
      $region22: #{tpu_custom_call.1} parent=11 // pred_check_branch
        %219 = sbr.rel (%p217) target = $region24
      $region23: #{tpu_custom_call.1} parent=11 // pred_region
        _
      $region24: #{tpu_custom_call.1} parent=11 // pred_fallthru
        _
      // Predicated region
      $region25: #{tpu_custom_call.1} parent=11 // pred_check
        %p220 = pneg %p97
      $region26: #{tpu_custom_call.1} parent=11 // pred_check_branch
        %222 = sbr.rel (%p220) target = $region28
      $region27: #{tpu_custom_call.1} parent=11 // pred_region
        _
      $region28: #{tpu_custom_call.1} parent=11 // pred_fallthru
        _
      // Predicated region
      $region29: #{tpu_custom_call.1} parent=11 // pred_check
        %p223 = pneg %p118
      $region30: #{tpu_custom_call.1} parent=11 // pred_check_branch
        %225 = sbr.rel (%p223) target = $region32
      $region31: #{tpu_custom_call.1} parent=11 // pred_region
        _
      $region32: #{tpu_custom_call.1} parent=11 // pred_fallthru
        _
    $region12: #{tpu_custom_call.1} parent=5 // pred_fallthru
      _
    %p226 = scmp.lt.s32.totalorder %s13, 2
    // Predicated region
    $region33: #{tpu_custom_call.1} parent=5 // pred_check
      %p227 = pneg %p226
    $region34: #{tpu_custom_call.1} parent=5 // pred_check_branch
      %229 = sbr.rel (%p227) target = $region36
    $region35: #{tpu_custom_call.1} parent=5 // pred_region
      // Predicated region
      $region37: #{tpu_custom_call.1} parent=35 // pred_check
        %p230 = pneg %p138
      $region38: #{tpu_custom_call.1} parent=35 // pred_check_branch
        %232 = sbr.rel (%p230) target = $region40
      $region39: #{tpu_custom_call.1} parent=35 // pred_region
        %s233 = smul.u32 36, %s13
        %p234 = scmp.lt.s32.totalorder %s233, 71
        %s235 = scalar_select %p234, %s233, 71
        %s236 = smul.addr %s235, 4
        %s237 = scalar_lea.vmem %s5, %s236
        %s238 = smul.u32 36, %s13
      $region40: #{tpu_custom_call.1} parent=35 // pred_fallthru
        _
      // Predicated region
      $region41: #{tpu_custom_call.1} parent=35 // pred_check
        %p239 = pneg %p164
      $region42: #{tpu_custom_call.1} parent=35 // pred_check_branch
        %241 = sbr.rel (%p239) target = $region44
      $region43: #{tpu_custom_call.1} parent=35 // pred_region
        %s242 = smul.u32 36, %s13
        %p243 = scmp.lt.s32.totalorder %s242, 71
        %s244 = scalar_select %p243, %s242, 71
        %s245 = smul.addr %s244, 8
        %s246 = scalar_lea.vmem %s6, %s245
        %s247 = smul.u32 36, %s13
      $region44: #{tpu_custom_call.1} parent=35 // pred_fallthru
        _
    $region36: #{tpu_custom_call.1} parent=5 // pred_fallthru
      _
    %p248 = scmp.le.s32.totalorder 1, %s13
    %p249 = scmp.lt.s32.totalorder %s13, 3
    %p250 = pnand %p248, %p249
    %p251 = pneg %p250
    // Predicated region
    $region45: #{tpu_custom_call.1} parent=5 // pred_check
      _
    $region46: #{tpu_custom_call.1} parent=5 // pred_check_branch
      %253 = sbr.rel (%p250) target = $region48
    $region47: #{tpu_custom_call.1} parent=5 // pred_region
      %s254 = ssub.s32 %s13, 1
      %p255 = pneg %p34
      %p256 = pneg %p31
      %p257 = pneg %p55
      %p258 = pneg %p52
      %p259 = pneg %p76
      %p260 = pneg %p73
      %p261 = pneg %p97
      %p262 = pneg %p94
      %p263 = pneg %p118
      %p264 = pneg %p115
      %s265 = smul.u32 36, %s18
      %p266 = scmp.lt.s32.totalorder %s265, 71
      %s267 = scalar_select %p266, %s265, 71
      %s268 = smul.addr %s267, 4
      %s269 = scalar_lea.vmem %s5, %s268
      %p270 = pneg %p144
      %p271 = pneg %p141
      %s272 = smul.u32 36, %s18
      %p273 = scmp.lt.s32.totalorder %s272, 71
      %s274 = scalar_select %p273, %s272, 71
      %s275 = smul.addr %s274, 8
      %s276 = scalar_lea.vmem %s6, %s275
      %p277 = pneg %p170
      %p278 = pneg %p167
      %p279 = pneg %p196
      %p280 = pneg %p193
      %s281 = smul.u32 36, %s18
      %p282 = scmp.lt.s32.totalorder %s281, 71
      %s283 = scalar_select %p282, %s281, 71
      %s284 = smul.addr %s283, 2
      %s285 = smul.addr %s284, 8
      %s286 = scalar_lea.vmem %s7, %s285
      %s287 = smul.u32 36, %s18
      %p288 = scmp.lt.s32.totalorder %s287, 71
      %s289 = scalar_select %p288, %s287, 71
      %s290 = smul.addr %s289, 4
      %s291 = scalar_lea.vmem %s5, %s290
      %s292 = smul.u32 36, %s18
      %s293 = smul.u32 36, %s18
      %p294 = scmp.lt.s32.totalorder %s293, 71
      %s295 = scalar_select %p294, %s293, 71
      %s296 = smul.addr %s295, 8
      %s297 = scalar_lea.vmem %s6, %s296
      %s298 = smul.u32 36, %s18
      %s299 = smul.u32 36, %s18
      %p300 = scmp.lt.s32.totalorder %s299, 71
      %s301 = scalar_select %p300, %s299, 71
      %s302 = smul.addr %s301, 2
      %s303 = smul.addr %s302, 8
      %s304 = scalar_lea.vmem %s7, %s303
      %s305 = smul.u32 36, %s18
      %v307 = vld [vmem:[%s0] sm:$0x1f]
      %v308 = vxor.u32 %v307, 2147483648
      %v309 = vmul.f32 %v308, 1.442695
      %v310 = vpow.pop %v309
      %v311 = vadd.f32 %v310, 1.0
      %v312 = vrcp.pop %v311
      %v313 = vmul.f32 1.0, %v312
      %v314 = vld [vmem:[%s3] sm:$0xff]
      %v315 = vld [vmem:[%s3 + $0x8] sm:$0xff]
      %v316 = vld [vmem:[%s3 + $0x10] sm:$0xf]
      %v317 = vld [vmem:[%s3 + $0x14] sm:$0xff]
      %v318 = vld [vmem:[%s3 + $0x1c] sm:$0xff]
      %v319 = vld [vmem:[%s3 + $0x24] sm:$0xf]
      %v320 = vld [vmem:[%s3 + $0x28] sm:$0xff]
      %v321 = vld [vmem:[%s3 + $0x30] sm:$0xff]
      %v322 = vld [vmem:[%s3 + $0x38] sm:$0xf]
      %v323 = vld [vmem:[%s3 + $0x3c] sm:$0xff]
      %v324 = vld [vmem:[%s3 + $0x44] sm:$0xff]
      %v325 = vld [vmem:[%s3 + $0x4c] sm:$0xf]
      %v326 = vld [vmem:[%s3 + $0x50] sm:$0xff]
      %v327 = vld [vmem:[%s3 + $0x58] sm:$0xff]
      %v328 = vld [vmem:[%s3 + $0x60] sm:$0xf]
      %v329 = vld [vmem:[%s3 + $0x64] sm:$0xff]
      %v330 = vld [vmem:[%s3 + $0x6c] sm:$0xff]
      %v331 = vld [vmem:[%s3 + $0x74] sm:$0xf]
      %v332 = vld [vmem:[%s3 + $0x78] sm:$0xff]
      %v333 = vld [vmem:[%s3 + $0x80] sm:$0xff]
      %v334 = vld [vmem:[%s3 + $0x88] sm:$0xf]
      %v335 = vld [vmem:[%s3 + $0x8c] sm:$0xff]
      %v336 = vld [vmem:[%s3 + $0x94] sm:$0xff]
      %v337 = vld [vmem:[%s3 + $0x9c] sm:$0xf]
      %v338 = vld [vmem:[%s3 + $0xa0] sm:$0xff]
      %v339 = vld [vmem:[%s3 + $0xa8] sm:$0xff]
      %v340 = vld [vmem:[%s3 + $0xb0] sm:$0xf]
      %v341 = vld [vmem:[%s3 + $0xb4] sm:$0xff]
      %v342 = vld [vmem:[%s3 + $0xbc] sm:$0xff]
      %v343 = vld [vmem:[%s3 + $0xc4] sm:$0xf]
      %v344 = vld [vmem:[%s3 + $0xc8] sm:$0xff]
      %v345 = vld [vmem:[%s3 + $0xd0] sm:$0xff]
      %v346 = vld [vmem:[%s3 + $0xd8] sm:$0xf]
      %v347 = vld [vmem:[%s3 + $0xdc] sm:$0xff]
      %v348 = vld [vmem:[%s3 + $0xe4] sm:$0xff]
      %v349 = vld [vmem:[%s3 + $0xec] sm:$0xf]
      %v350 = vunpack.c.l.bf16 %v314
      %v351 = vunpack.c.h.bf16 %v314
      %v352 = vunpack.c.l.bf16 %v315
      %v353 = vunpack.c.h.bf16 %v315
      %v354 = vunpack.c.l.bf16 %v316
      %v355 = vunpack.c.l.bf16 %v317
      %v356 = vunpack.c.h.bf16 %v317
      %v357 = vunpack.c.l.bf16 %v318
      %v358 = vunpack.c.h.bf16 %v318
      %v359 = vunpack.c.l.bf16 %v319
      %v360 = vunpack.c.l.bf16 %v320
      %v361 = vunpack.c.h.bf16 %v320
      %v362 = vunpack.c.l.bf16 %v321
      %v363 = vunpack.c.h.bf16 %v321
      %v364 = vunpack.c.l.bf16 %v322
      %v365 = vunpack.c.l.bf16 %v323
      %v366 = vunpack.c.h.bf16 %v323
      %v367 = vunpack.c.l.bf16 %v324
      %v368 = vunpack.c.h.bf16 %v324
      %v369 = vunpack.c.l.bf16 %v325
      %v370 = vunpack.c.l.bf16 %v326
      %v371 = vunpack.c.h.bf16 %v326
      %v372 = vunpack.c.l.bf16 %v327
      %v373 = vunpack.c.h.bf16 %v327
      %v374 = vunpack.c.l.bf16 %v328
      %v375 = vunpack.c.l.bf16 %v329
      %v376 = vunpack.c.h.bf16 %v329
      %v377 = vunpack.c.l.bf16 %v330
      %v378 = vunpack.c.h.bf16 %v330
      %v379 = vunpack.c.l.bf16 %v331
      %v380 = vunpack.c.l.bf16 %v332
      %v381 = vunpack.c.h.bf16 %v332
      %v382 = vunpack.c.l.bf16 %v333
      %v383 = vunpack.c.h.bf16 %v333
      %v384 = vunpack.c.l.bf16 %v334
      %v385 = vunpack.c.l.bf16 %v335
      %v386 = vunpack.c.h.bf16 %v335
      %v387 = vunpack.c.l.bf16 %v336
      %v388 = vunpack.c.h.bf16 %v336
      %v389 = vunpack.c.l.bf16 %v337
      %v390 = vunpack.c.l.bf16 %v338
      %v391 = vunpack.c.h.bf16 %v338
      %v392 = vunpack.c.l.bf16 %v339
      %v393 = vunpack.c.h.bf16 %v339
      %v394 = vunpack.c.l.bf16 %v340
      %v395 = vunpack.c.l.bf16 %v341
      %v396 = vunpack.c.h.bf16 %v341
      %v397 = vunpack.c.l.bf16 %v342
      %v398 = vunpack.c.h.bf16 %v342
      %v399 = vunpack.c.l.bf16 %v343
      %v400 = vunpack.c.l.bf16 %v344
      %v401 = vunpack.c.h.bf16 %v344
      %v402 = vunpack.c.l.bf16 %v345
      %v403 = vunpack.c.h.bf16 %v345
      %v404 = vunpack.c.l.bf16 %v346
      %v405 = vunpack.c.l.bf16 %v347
      %v406 = vunpack.c.h.bf16 %v347
      %v407 = vunpack.c.l.bf16 %v348
      %v408 = vunpack.c.h.bf16 %v348
      %v409 = vunpack.c.l.bf16 %v349
      %v411 = vlaneseq
      %v412 = vshrl.u32 %v411, 7
      %v413 = vsub.s32 0, %v412
      %v414 = vrot.slane %v313, %v413
      %v415 = vlaneseq
      %v416 = vshrl.u32 %v415, 7
      %v417 = vsub.s32 1, %v416
      %v418 = vrot.slane %v313, %v417
      %v419 = vlaneseq
      %v420 = vshrl.u32 %v419, 7
      %v421 = vsub.s32 2, %v420
      %v422 = vrot.slane %v313, %v421
      %v423 = vlaneseq
      %v424 = vshrl.u32 %v423, 7
      %v425 = vsub.s32 3, %v424
      %v426 = vrot.slane %v313, %v425
      %v427 = vlaneseq
      %v428 = vshrl.u32 %v427, 7
      %v429 = vsub.s32 4, %v428
      %v430 = vrot.slane %v313, %v429
      %v436 = vmul.f32 %v350, %v414
      %v437 = vmul.f32 %v351, %v418
      %v438 = vmul.f32 %v352, %v422
      %v439 = vmul.f32 %v353, %v426
      %v440 = vmul.f32 %v354, %v430
      %v441 = vmul.f32 %v355, %v414
      %v442 = vmul.f32 %v356, %v418
      %v443 = vmul.f32 %v357, %v422
      %v444 = vmul.f32 %v358, %v426
      %v445 = vmul.f32 %v359, %v430
      %v446 = vmul.f32 %v360, %v414
      %v447 = vmul.f32 %v361, %v418
      %v448 = vmul.f32 %v362, %v422
      %v449 = vmul.f32 %v363, %v426
      %v450 = vmul.f32 %v364, %v430
      %v451 = vmul.f32 %v365, %v414
      %v452 = vmul.f32 %v366, %v418
      %v453 = vmul.f32 %v367, %v422
      %v454 = vmul.f32 %v368, %v426
      %v455 = vmul.f32 %v369, %v430
      %v456 = vmul.f32 %v370, %v414
      %v457 = vmul.f32 %v371, %v418
      %v458 = vmul.f32 %v372, %v422
      %v459 = vmul.f32 %v373, %v426
      %v460 = vmul.f32 %v374, %v430
      %v461 = vmul.f32 %v375, %v414
      %v462 = vmul.f32 %v376, %v418
      %v463 = vmul.f32 %v377, %v422
      %v464 = vmul.f32 %v378, %v426
      %v465 = vmul.f32 %v379, %v430
      %v466 = vmul.f32 %v380, %v414
      %v467 = vmul.f32 %v381, %v418
      %v468 = vmul.f32 %v382, %v422
      %v469 = vmul.f32 %v383, %v426
      %v470 = vmul.f32 %v384, %v430
      %v471 = vmul.f32 %v385, %v414
      %v472 = vmul.f32 %v386, %v418
      %v473 = vmul.f32 %v387, %v422
      %v474 = vmul.f32 %v388, %v426
      %v475 = vmul.f32 %v389, %v430
      %v476 = vmul.f32 %v390, %v414
      %v477 = vmul.f32 %v391, %v418
      %v478 = vmul.f32 %v392, %v422
      %v479 = vmul.f32 %v393, %v426
      %v480 = vmul.f32 %v394, %v430
      %v481 = vmul.f32 %v395, %v414
      %v482 = vmul.f32 %v396, %v418
      %v483 = vmul.f32 %v397, %v422
      %v484 = vmul.f32 %v398, %v426
      %v485 = vmul.f32 %v399, %v430
      %v486 = vmul.f32 %v400, %v414
      %v487 = vmul.f32 %v401, %v418
      %v488 = vmul.f32 %v402, %v422
      %v489 = vmul.f32 %v403, %v426
      %v490 = vmul.f32 %v404, %v430
      %v491 = vmul.f32 %v405, %v414
      %v492 = vmul.f32 %v406, %v418
      %v493 = vmul.f32 %v407, %v422
      %v494 = vmul.f32 %v408, %v426
      %v495 = vmul.f32 %v409, %v430
      %v496 = vpack.c.bf16 %v441, %v436
      %v497 = vpack.c.bf16 %v442, %v437
      %v498 = vpack.c.bf16 %v443, %v438
      %v499 = vpack.c.bf16 %v444, %v439
      %v500 = vpack.c.bf16 %v445, %v440
      %v501 = vpack.c.bf16 %v451, %v446
      %v502 = vpack.c.bf16 %v452, %v447
      %v503 = vpack.c.bf16 %v453, %v448
      %v504 = vpack.c.bf16 %v454, %v449
      %v505 = vpack.c.bf16 %v455, %v450
      %v506 = vpack.c.bf16 %v461, %v456
      %v507 = vpack.c.bf16 %v462, %v457
      %v508 = vpack.c.bf16 %v463, %v458
      %v509 = vpack.c.bf16 %v464, %v459
      %v510 = vpack.c.bf16 %v465, %v460
      %v511 = vpack.c.bf16 %v471, %v466
      %v512 = vpack.c.bf16 %v472, %v467
      %v513 = vpack.c.bf16 %v473, %v468
      %v514 = vpack.c.bf16 %v474, %v469
      %v515 = vpack.c.bf16 %v475, %v470
      %v516 = vpack.c.bf16 %v481, %v476
      %v517 = vpack.c.bf16 %v482, %v477
      %v518 = vpack.c.bf16 %v483, %v478
      %v519 = vpack.c.bf16 %v484, %v479
      %v520 = vpack.c.bf16 %v485, %v480
      %v521 = vpack.c.bf16 %v491, %v486
      %v522 = vpack.c.bf16 %v492, %v487
      %v523 = vpack.c.bf16 %v493, %v488
      %v524 = vpack.c.bf16 %v494, %v489
      %v525 = vpack.c.bf16 %v495, %v490
      %v526 = vld [vmem:[%s1] sm:$0xff]
      %v527 = vld [vmem:[%s1 + $0x8] sm:$0xff]
      %v528 = vld [vmem:[%s1 + $0x10] sm:$0xff]
      %v529 = vld [vmem:[%s1 + $0x18] sm:$0xff]
      %v530 = vld [vmem:[%s1 + $0x20] sm:$0xff]
      %v531 = vld [vmem:[%s1 + $0x28] sm:$0xff]
      %v532 = vld [vmem:[%s1 + $0x30] sm:$0xff]
      %v533 = vld [vmem:[%s1 + $0x38] sm:$0xff]
      %v534 = vld [vmem:[%s1 + $0x40] sm:$0xff]
      %v535 = vld [vmem:[%s1 + $0x48] sm:$0xff]
      %v536 = vld [vmem:[%s1 + $0x50] sm:$0xff]
      %v537 = vld [vmem:[%s1 + $0x58] sm:$0xff]
      %v538 = vld [vmem:[%s1 + $0x60] sm:$0xff]
      %v539 = vld [vmem:[%s1 + $0x68] sm:$0xff]
      %v540 = vld [vmem:[%s1 + $0x70] sm:$0xff]
      %v541 = vld [vmem:[%s1 + $0x78] sm:$0xff]
      %v542 = vld [vmem:[%s1 + $0x80] sm:$0xff]
      %v543 = vld [vmem:[%s1 + $0x88] sm:$0xff]
      %v544 = vld [vmem:[%s1 + $0x90] sm:$0xff]
      %v545 = vld [vmem:[%s1 + $0x98] sm:$0xff]
      %v546 = vld [vmem:[%s1 + $0xa0] sm:$0xff]
      %v547 = vld [vmem:[%s1 + $0xa8] sm:$0xff]
      %v548 = vld [vmem:[%s1 + $0xb0] sm:$0xff]
      %v549 = vld [vmem:[%s1 + $0xb8] sm:$0xff]
      %v550 = vld [vmem:[%s1 + $0xc0] sm:$0xff]
      %v551 = vld [vmem:[%s1 + $0xc8] sm:$0xff]
      %v552 = vld [vmem:[%s1 + $0xd0] sm:$0xff]
      %v553 = vld [vmem:[%s1 + $0xd8] sm:$0xff]
      %v554 = vld [vmem:[%s1 + $0xe0] sm:$0xff]
      %v555 = vld [vmem:[%s1 + $0xe8] sm:$0xff]
      %v556 = vld [vmem:[%s1 + $0xf0] sm:$0xff]
      %v557 = vld [vmem:[%s1 + $0xf8] sm:$0xff]
      %v558 = vld [vmem:[%s1 + $0x100] sm:$0xff]
      %v559 = vld [vmem:[%s1 + $0x108] sm:$0xff]
      %v560 = vld [vmem:[%s1 + $0x110] sm:$0xff]
      %v561 = vld [vmem:[%s1 + $0x118] sm:$0xff]
      %v562 = vld [vmem:[%s1 + $0x120] sm:$0xff]
      %v563 = vld [vmem:[%s1 + $0x128] sm:$0xff]
      %v564 = vld [vmem:[%s1 + $0x130] sm:$0xff]
      %v565 = vld [vmem:[%s1 + $0x138] sm:$0xff]
      %v566 = vld [vmem:[%s1 + $0x140] sm:$0xff]
      %v567 = vld [vmem:[%s1 + $0x148] sm:$0xff]
      %v568 = vld [vmem:[%s1 + $0x150] sm:$0xff]
      %v569 = vld [vmem:[%s1 + $0x158] sm:$0xff]
      %v570 = vld [vmem:[%s1 + $0x160] sm:$0xff]
      %v571 = vld [vmem:[%s1 + $0x168] sm:$0xff]
      %v572 = vld [vmem:[%s1 + $0x170] sm:$0xff]
      %v573 = vld [vmem:[%s1 + $0x178] sm:$0xff]
      %v574 = vld [vmem:[%s1 + $0x180] sm:$0xff]
      %v575 = vld [vmem:[%s1 + $0x188] sm:$0xff]
      %v576 = vld [vmem:[%s1 + $0x190] sm:$0xff]
      %v577 = vld [vmem:[%s1 + $0x198] sm:$0xff]
      %v578 = vld [vmem:[%s1 + $0x1a0] sm:$0xff]
      %v579 = vld [vmem:[%s1 + $0x1a8] sm:$0xff]
      %v580 = vld [vmem:[%s1 + $0x1b0] sm:$0xff]
      %v581 = vld [vmem:[%s1 + $0x1b8] sm:$0xff]
      %v582 = vld [vmem:[%s1 + $0x1c0] sm:$0xff]
      %v583 = vld [vmem:[%s1 + $0x1c8] sm:$0xff]
      %v584 = vld [vmem:[%s1 + $0x1d0] sm:$0xff]
      %v585 = vld [vmem:[%s1 + $0x1d8] sm:$0xff]
      %v586 = vld [vmem:[%s1 + $0x1e0] sm:$0xff]
      %v587 = vld [vmem:[%s1 + $0x1e8] sm:$0xff]
      %v588 = vld [vmem:[%s1 + $0x1f0] sm:$0xff]
      %v589 = vld [vmem:[%s1 + $0x1f8] sm:$0xff]
      %v590 = vld [vmem:[%s1 + $0x200] sm:$0xff]
      %v591 = vld [vmem:[%s1 + $0x208] sm:$0xff]
      %v592 = vld [vmem:[%s1 + $0x210] sm:$0xff]
      %v593 = vld [vmem:[%s1 + $0x218] sm:$0xff]
      %v594 = vld [vmem:[%s1 + $0x220] sm:$0xff]
      %v595 = vld [vmem:[%s1 + $0x228] sm:$0xff]
      %v596 = vld [vmem:[%s1 + $0x230] sm:$0xff]
      %v597 = vld [vmem:[%s1 + $0x238] sm:$0xff]
      %v670 = vunpack.c.l.b16 %v526
      %v671 = vunpack.c.h.b16 %v526
      %v672 = vunpack.c.l.b16 %v527
      %v673 = vunpack.c.h.b16 %v527
      %v674 = vunpack.c.l.b16 %v528
      %v675 = vunpack.c.h.b16 %v528
      %v676 = vunpack.c.l.b16 %v529
      %v677 = vunpack.c.h.b16 %v529
      %v678 = vunpack.c.l.b16 %v530
      %v679 = vunpack.c.h.b16 %v530
      %v680 = vunpack.c.l.b16 %v531
      %v681 = vunpack.c.h.b16 %v531
      %v682 = vunpack.c.l.b16 %v532
      %v683 = vunpack.c.h.b16 %v532
      %v684 = vunpack.c.l.b16 %v533
      %v685 = vunpack.c.h.b16 %v533
      %v686 = vunpack.c.l.b16 %v534
      %v687 = vunpack.c.h.b16 %v534
      %v688 = vunpack.c.l.b16 %v535
      %v689 = vunpack.c.h.b16 %v535
      %v690 = vunpack.c.l.b16 %v536
      %v691 = vunpack.c.h.b16 %v536
      %v692 = vunpack.c.l.b16 %v537
      %v693 = vunpack.c.h.b16 %v537
      %v694 = vunpack.c.l.b16 %v538
      %v695 = vunpack.c.h.b16 %v538
      %v696 = vunpack.c.l.b16 %v539
      %v697 = vunpack.c.h.b16 %v539
      %v698 = vunpack.c.l.b16 %v540
      %v699 = vunpack.c.h.b16 %v540
      %v700 = vunpack.c.l.b16 %v541
      %v701 = vunpack.c.h.b16 %v541
      %v702 = vunpack.c.l.b16 %v542
      %v703 = vunpack.c.h.b16 %v542
      %v704 = vunpack.c.l.b16 %v543
      %v705 = vunpack.c.h.b16 %v543
      %v706 = vunpack.c.l.b16 %v544
      %v707 = vunpack.c.h.b16 %v544
      %v708 = vunpack.c.l.b16 %v545
      %v709 = vunpack.c.h.b16 %v545
      %v710 = vunpack.c.l.b16 %v546
      %v711 = vunpack.c.h.b16 %v546
      %v712 = vunpack.c.l.b16 %v547
      %v713 = vunpack.c.h.b16 %v547
      %v714 = vunpack.c.l.b16 %v548
      %v715 = vunpack.c.h.b16 %v548
      %v716 = vunpack.c.l.b16 %v549
      %v717 = vunpack.c.h.b16 %v549
      %v718 = vunpack.c.l.b16 %v550
      %v719 = vunpack.c.h.b16 %v550
      %v720 = vunpack.c.l.b16 %v551
      %v721 = vunpack.c.h.b16 %v551
      %v722 = vunpack.c.l.b16 %v552
      %v723 = vunpack.c.h.b16 %v552
      %v724 = vunpack.c.l.b16 %v553
      %v725 = vunpack.c.h.b16 %v553
      %v726 = vunpack.c.l.b16 %v554
      %v727 = vunpack.c.h.b16 %v554
      %v728 = vunpack.c.l.b16 %v555
      %v729 = vunpack.c.h.b16 %v555
      %v730 = vunpack.c.l.b16 %v556
      %v731 = vunpack.c.h.b16 %v556
      %v732 = vunpack.c.l.b16 %v557
      %v733 = vunpack.c.h.b16 %v557
      %v734 = vunpack.c.l.b16 %v558
      %v735 = vunpack.c.h.b16 %v558
      %v736 = vunpack.c.l.b16 %v559
      %v737 = vunpack.c.h.b16 %v559
      %v738 = vunpack.c.l.b16 %v560
      %v739 = vunpack.c.h.b16 %v560
      %v740 = vunpack.c.l.b16 %v561
      %v741 = vunpack.c.h.b16 %v561
      %v742 = vunpack.c.l.b16 %v562
      %v743 = vunpack.c.h.b16 %v562
      %v744 = vunpack.c.l.b16 %v563
      %v745 = vunpack.c.h.b16 %v563
      %v746 = vunpack.c.l.b16 %v564
      %v747 = vunpack.c.h.b16 %v564
      %v748 = vunpack.c.l.b16 %v565
      %v749 = vunpack.c.h.b16 %v565
      %v750 = vunpack.c.l.b16 %v566
      %v751 = vunpack.c.h.b16 %v566
      %v752 = vunpack.c.l.b16 %v567
      %v753 = vunpack.c.h.b16 %v567
      %v754 = vunpack.c.l.b16 %v568
      %v755 = vunpack.c.h.b16 %v568
      %v756 = vunpack.c.l.b16 %v569
      %v757 = vunpack.c.h.b16 %v569
      %v758 = vunpack.c.l.b16 %v570
      %v759 = vunpack.c.h.b16 %v570
      %v760 = vunpack.c.l.b16 %v571
      %v761 = vunpack.c.h.b16 %v571
      %v762 = vunpack.c.l.b16 %v572
      %v763 = vunpack.c.h.b16 %v572
      %v764 = vunpack.c.l.b16 %v573
      %v765 = vunpack.c.h.b16 %v573
      %v766 = vunpack.c.l.b16 %v574
      %v767 = vunpack.c.h.b16 %v574
      %v768 = vunpack.c.l.b16 %v575
      %v769 = vunpack.c.h.b16 %v575
      %v770 = vunpack.c.l.b16 %v576
      %v771 = vunpack.c.h.b16 %v576
      %v772 = vunpack.c.l.b16 %v577
      %v773 = vunpack.c.h.b16 %v577
      %v774 = vunpack.c.l.b16 %v578
      %v775 = vunpack.c.h.b16 %v578
      %v776 = vunpack.c.l.b16 %v579
      %v777 = vunpack.c.h.b16 %v579
      %v778 = vunpack.c.l.b16 %v580
      %v779 = vunpack.c.h.b16 %v580
      %v780 = vunpack.c.l.b16 %v581
      %v781 = vunpack.c.h.b16 %v581
      %v782 = vunpack.c.l.b16 %v582
      %v783 = vunpack.c.h.b16 %v582
      %v784 = vunpack.c.l.b16 %v583
      %v785 = vunpack.c.h.b16 %v583
      %v786 = vunpack.c.l.b16 %v584
      %v787 = vunpack.c.h.b16 %v584
      %v788 = vunpack.c.l.b16 %v585
      %v789 = vunpack.c.h.b16 %v585
      %v790 = vunpack.c.l.b16 %v586
      %v791 = vunpack.c.h.b16 %v586
      %v792 = vunpack.c.l.b16 %v587
      %v793 = vunpack.c.h.b16 %v587
      %v794 = vunpack.c.l.b16 %v588
      %v795 = vunpack.c.h.b16 %v588
      %v796 = vunpack.c.l.b16 %v589
      %v797 = vunpack.c.h.b16 %v589
      %v798 = vunpack.c.l.b16 %v590
      %v799 = vunpack.c.h.b16 %v590
      %v800 = vunpack.c.l.b16 %v591
      %v801 = vunpack.c.h.b16 %v591
      %v802 = vunpack.c.l.b16 %v592
      %v803 = vunpack.c.h.b16 %v592
      %v804 = vunpack.c.l.b16 %v593
      %v805 = vunpack.c.h.b16 %v593
      %v806 = vunpack.c.l.b16 %v594
      %v807 = vunpack.c.h.b16 %v594
      %v808 = vunpack.c.l.b16 %v595
      %v809 = vunpack.c.h.b16 %v595
      %v810 = vunpack.c.l.b16 %v596
      %v811 = vunpack.c.h.b16 %v596
      %v812 = vunpack.c.l.b16 %v597
      %v813 = vunpack.c.h.b16 %v597
      %v814 = vpack.c.b16 %v672, %v670
      %v815 = vpack.c.b16 %v673, %v671
      %v816 = vpack.c.b16 %v676, %v674
      %v817 = vpack.c.b16 %v677, %v675
      %v818 = vpack.c.b16 %v680, %v678
      %v819 = vpack.c.b16 %v681, %v679
      %v820 = vpack.c.b16 %v684, %v682
      %v821 = vpack.c.b16 %v685, %v683
      %v822 = vpack.c.b16 %v688, %v686
      %v823 = vpack.c.b16 %v689, %v687
      %v824 = vpack.c.b16 %v692, %v690
      %v825 = vpack.c.b16 %v693, %v691
      %v826 = vpack.c.b16 %v696, %v694
      %v827 = vpack.c.b16 %v697, %v695
      %v828 = vpack.c.b16 %v700, %v698
      %v829 = vpack.c.b16 %v701, %v699
      %v830 = vpack.c.b16 %v704, %v702
      %v831 = vpack.c.b16 %v705, %v703
      %v832 = vpack.c.b16 %v708, %v706
      %v833 = vpack.c.b16 %v709, %v707
      %v834 = vpack.c.b16 %v712, %v710
      %v835 = vpack.c.b16 %v713, %v711
      %v836 = vpack.c.b16 %v716, %v714
      %v837 = vpack.c.b16 %v717, %v715
      %v838 = vpack.c.b16 %v720, %v718
      %v839 = vpack.c.b16 %v721, %v719
      %v840 = vpack.c.b16 %v724, %v722
      %v841 = vpack.c.b16 %v725, %v723
      %v842 = vpack.c.b16 %v728, %v726
      %v843 = vpack.c.b16 %v729, %v727
      %v844 = vpack.c.b16 %v732, %v730
      %v845 = vpack.c.b16 %v733, %v731
      %v846 = vpack.c.b16 %v736, %v734
      %v847 = vpack.c.b16 %v737, %v735
      %v848 = vpack.c.b16 %v740, %v738
      %v849 = vpack.c.b16 %v741, %v739
      %v850 = vpack.c.b16 %v744, %v742
      %v851 = vpack.c.b16 %v745, %v743
      %v852 = vpack.c.b16 %v748, %v746
      %v853 = vpack.c.b16 %v749, %v747
      %v854 = vpack.c.b16 %v752, %v750
      %v855 = vpack.c.b16 %v753, %v751
      %v856 = vpack.c.b16 %v756, %v754
      %v857 = vpack.c.b16 %v757, %v755
      %v858 = vpack.c.b16 %v760, %v758
      %v859 = vpack.c.b16 %v761, %v759
      %v860 = vpack.c.b16 %v764, %v762
      %v861 = vpack.c.b16 %v765, %v763
      %v862 = vpack.c.b16 %v768, %v766
      %v863 = vpack.c.b16 %v769, %v767
      %v864 = vpack.c.b16 %v772, %v770
      %v865 = vpack.c.b16 %v773, %v771
      %v866 = vpack.c.b16 %v776, %v774
      %v867 = vpack.c.b16 %v777, %v775
      %v868 = vpack.c.b16 %v780, %v778
      %v869 = vpack.c.b16 %v781, %v779
      %v870 = vpack.c.b16 %v784, %v782
      %v871 = vpack.c.b16 %v785, %v783
      %v872 = vpack.c.b16 %v788, %v786
      %v873 = vpack.c.b16 %v789, %v787
      %v874 = vpack.c.b16 %v792, %v790
      %v875 = vpack.c.b16 %v793, %v791
      %v876 = vpack.c.b16 %v796, %v794
      %v877 = vpack.c.b16 %v797, %v795
      %v878 = vpack.c.b16 %v800, %v798
      %v879 = vpack.c.b16 %v801, %v799
      %v880 = vpack.c.b16 %v804, %v802
      %v881 = vpack.c.b16 %v805, %v803
      %v882 = vpack.c.b16 %v808, %v806
      %v883 = vpack.c.b16 %v809, %v807
      %v884 = vpack.c.b16 %v812, %v810
      %v885 = vpack.c.b16 %v813, %v811
      %vm958 = vcmask 523264
      %v960 = vsel %vm958, %v500, 0
      %v963 = vsel %vm958, %v505, 0
      %v966 = vsel %vm958, %v510, 0
      %v969 = vsel %vm958, %v515, 0
      %v972 = vsel %vm958, %v520, 0
      %v975 = vsel %vm958, %v525, 0
      %977 = vmatprep.subr.bf16.mxu0 %v815
      %978 = vmatpush1.bf16.msra.mxu0 %v814
      %979 = vmatprep.subr.bf16.mxu0 %v817
      %980 = vmatpush1.bf16.msra.mxu0 %v816
      %981 = vmatprep.subr.bf16.mxu0 %v819
      %982 = vmatpush1.bf16.msra.mxu0 %v818
      %983 = vmatprep.subr.bf16.mxu0 %v821
      %984 = vmatpush1.bf16.msra.mxu0 %v820
      %985 = vmatprep.subr.bf16.mxu0 %v823
      %986 = vmatpush1.bf16.msra.mxu0 %v822
      %987 = vmatprep.subr.bf16.mxu0 %v825
      %988 = vmatpush1.bf16.msra.mxu0 %v824
      %989 = vmatprep.subr.bf16.mxu0 %v827
      %990 = vmatpush1.bf16.msra.mxu0 %v826
      %991 = vmatprep.subr.bf16.mxu0 %v829
      %992 = vmatpush1.bf16.msra.mxu0 %v828
      %993 = vmatprep.subr.bf16.mxu0 %v831
      %994 = vmatpush1.bf16.msra.mxu0 %v830
      %995 = vmatprep.subr.bf16.mxu0 %v833
      %996 = vmatpush1.bf16.msra.mxu0 %v832
      %997 = vmatprep.subr.bf16.mxu0 %v835
      %998 = vmatpush1.bf16.msra.mxu0 %v834
      %999 = vmatprep.subr.bf16.mxu0 %v837
      %1000 = vmatpush1.bf16.msra.mxu0 %v836
      %1001 = vmatprep.subr.bf16.mxu0 %v839
      %1002 = vmatpush1.bf16.msra.mxu0 %v838
      %1003 = vmatprep.subr.bf16.mxu0 %v841
      %1004 = vmatpush1.bf16.msra.mxu0 %v840
      %1005 = vmatprep.subr.bf16.mxu0 %v843
      %1006 = vmatpush1.bf16.msra.mxu0 %v842
      %1007 = vmatprep.subr.bf16.mxu0 %v845
      %1008 = vmatpush1.bf16.msra.mxu0 %v844
      %1009 = vmatprep.mubr.bf16.mxu0 %v497
      %1010 = vmatmul.mubr.bf16.gmra.mrb[0].mxu0 %v496
      %v1011 = vpop.f32.mrb[0].mxu0
      %v1012 = vadd.f32 0.0, %v1011
      %v1013 = vpop.f32.mrb[0].mxu0
      %v1014 = vadd.f32 0.0, %v1013
      %v1015 = vpop.f32.mrb[0].mxu0
      %v1016 = vadd.f32 0.0, %v1015
      %v1017 = vpop.f32.mrb[0].mxu0
      %v1018 = vadd.f32 0.0, %v1017
      %1019 = vmatprep.mubr.bf16.mxu0 %v502
      %1020 = vmatmul.mubr.bf16.gmra.mrb[0].mxu0 %v501
      %v1021 = vpop.f32.mrb[0].mxu0
      %v1022 = vadd.f32 0.0, %v1021
      %v1023 = vpop.f32.mrb[0].mxu0
      %v1024 = vadd.f32 0.0, %v1023
      %v1025 = vpop.f32.mrb[0].mxu0
      %v1026 = vadd.f32 0.0, %v1025
      %v1027 = vpop.f32.mrb[0].mxu0
      %v1028 = vadd.f32 0.0, %v1027
      %1029 = vmatprep.mubr.bf16.mxu0 %v507
      %1030 = vmatmul.mubr.bf16.gmra.mrb[0].mxu0 %v506
      %v1031 = vpop.f32.mrb[0].mxu0
      %v1032 = vadd.f32 0.0, %v1031
      %v1033 = vpop.f32.mrb[0].mxu0
      %v1034 = vadd.f32 0.0, %v1033
      %v1035 = vpop.f32.mrb[0].mxu0
      %v1036 = vadd.f32 0.0, %v1035
      %v1037 = vpop.f32.mrb[0].mxu0
      %v1038 = vadd.f32 0.0, %v1037
      %1039 = vmatprep.mubr.bf16.mxu0 %v512
      %1040 = vmatmul.mubr.bf16.gmra.mrb[0].mxu0 %v511
      %v1041 = vpop.f32.mrb[0].mxu0
      %v1042 = vadd.f32 0.0, %v1041
      %v1043 = vpop.f32.mrb[0].mxu0
      %v1044 = vadd.f32 0.0, %v1043
      %v1045 = vpop.f32.mrb[0].mxu0
      %v1046 = vadd.f32 0.0, %v1045
      %v1047 = vpop.f32.mrb[0].mxu0
      %v1048 = vadd.f32 0.0, %v1047
      %1049 = vmatprep.mubr.bf16.mxu0 %v517
      %1050 = vmatmul.mubr.bf16.gmra.mrb[0].mxu0 %v516
      %v1051 = vpop.f32.mrb[0].mxu0
      %v1052 = vadd.f32 0.0, %v1051
      %v1053 = vpop.f32.mrb[0].mxu0
      %v1054 = vadd.f32 0.0, %v1053
      %v1055 = vpop.f32.mrb[0].mxu0
      %v1056 = vadd.f32 0.0, %v1055
      %v1057 = vpop.f32.mrb[0].mxu0
      %v1058 = vadd.f32 0.0, %v1057
      %1059 = vmatprep.mubr.bf16.mxu0 %v522
      %1060 = vmatmul.mubr.bf16.gmra.mrb[0].mxu0 %v521
      %v1061 = vpop.f32.mrb[0].mxu0
      %v1062 = vadd.f32 0.0, %v1061
      %v1063 = vpop.f32.mrb[0].mxu0
      %v1064 = vadd.f32 0.0, %v1063
      %v1065 = vpop.f32.mrb[0].mxu0
      %v1066 = vadd.f32 0.0, %v1065
      %v1067 = vpop.f32.mrb[0].mxu0
      %v1068 = vadd.f32 0.0, %v1067
      %1069 = vdwg.mxu0
      %1070 = vmatprep.subr.bf16.mxu0 %v847
      %1071 = vmatpush1.bf16.msra.mxu0 %v846
      %1072 = vmatprep.subr.bf16.mxu0 %v849
      %1073 = vmatpush1.bf16.msra.mxu0 %v848
      %1074 = vmatprep.subr.bf16.mxu0 %v851
      %1075 = vmatpush1.bf16.msra.mxu0 %v850
      %1076 = vmatprep.subr.bf16.mxu0 %v853
      %1077 = vmatpush1.bf16.msra.mxu0 %v852
      %1078 = vmatprep.subr.bf16.mxu0 %v855
      %1079 = vmatpush1.bf16.msra.mxu0 %v854
      %1080 = vmatprep.subr.bf16.mxu0 %v857
      %1081 = vmatpush1.bf16.msra.mxu0 %v856
      %1082 = vmatprep.subr.bf16.mxu0 %v859
      %1083 = vmatpush1.bf16.msra.mxu0 %v858
      %1084 = vmatprep.subr.bf16.mxu0 %v861
      %1085 = vmatpush1.bf16.msra.mxu0 %v860
      %1086 = vmatprep.subr.bf16.mxu0 %v863
      %1087 = vmatpush1.bf16.msra.mxu0 %v862
      %1088 = vmatprep.subr.bf16.mxu0 %v865
      %1089 = vmatpush1.bf16.msra.mxu0 %v864
      %1090 = vmatprep.subr.bf16.mxu0 %v867
      %1091 = vmatpush1.bf16.msra.mxu0 %v866
      %1092 = vmatprep.subr.bf16.mxu0 %v869
      %1093 = vmatpush1.bf16.msra.mxu0 %v868
      %1094 = vmatprep.subr.bf16.mxu0 %v871
      %1095 = vmatpush1.bf16.msra.mxu0 %v870
      %1096 = vmatprep.subr.bf16.mxu0 %v873
      %1097 = vmatpush1.bf16.msra.mxu0 %v872
      %1098 = vmatprep.subr.bf16.mxu0 %v875
      %1099 = vmatpush1.bf16.msra.mxu0 %v874
      %1100 = vmatprep.subr.bf16.mxu0 %v877
      %1101 = vmatpush1.bf16.msra.mxu0 %v876
      %1102 = vmatprep.mubr.bf16.mxu0 %v499
      %1103 = vmatmul.mubr.bf16.gmra.mrb[0].mxu0 %v498
      %v1104 = vpop.f32.mrb[0].mxu0
      %v1105 = vadd.f32 %v1012, %v1104
      %v1106 = vpop.f32.mrb[0].mxu0
      %v1107 = vadd.f32 %v1014, %v1106
      %v1108 = vpop.f32.mrb[0].mxu0
      %v1109 = vadd.f32 %v1016, %v1108
      %v1110 = vpop.f32.mrb[0].mxu0
      %v1111 = vadd.f32 %v1018, %v1110
      %1112 = vmatprep.mubr.bf16.mxu0 %v504
      %1113 = vmatmul.mubr.bf16.gmra.mrb[0].mxu0 %v503
      %v1114 = vpop.f32.mrb[0].mxu0
      %v1115 = vadd.f32 %v1022, %v1114
      %v1116 = vpop.f32.mrb[0].mxu0
      %v1117 = vadd.f32 %v1024, %v1116
      %v1118 = vpop.f32.mrb[0].mxu0
      %v1119 = vadd.f32 %v1026, %v1118
      %v1120 = vpop.f32.mrb[0].mxu0
      %v1121 = vadd.f32 %v1028, %v1120
      %1122 = vmatprep.mubr.bf16.mxu0 %v509
      %1123 = vmatmul.mubr.bf16.gmra.mrb[0].mxu0 %v508
      %v1124 = vpop.f32.mrb[0].mxu0
      %v1125 = vadd.f32 %v1032, %v1124
      %v1126 = vpop.f32.mrb[0].mxu0
      %v1127 = vadd.f32 %v1034, %v1126
      %v1128 = vpop.f32.mrb[0].mxu0
      %v1129 = vadd.f32 %v1036, %v1128
      %v1130 = vpop.f32.mrb[0].mxu0
      %v1131 = vadd.f32 %v1038, %v1130
      %1132 = vmatprep.mubr.bf16.mxu0 %v514
      %1133 = vmatmul.mubr.bf16.gmra.mrb[0].mxu0 %v513
      %v1134 = vpop.f32.mrb[0].mxu0
      %v1135 = vadd.f32 %v1042, %v1134
      %v1136 = vpop.f32.mrb[0].mxu0
      %v1137 = vadd.f32 %v1044, %v1136
      %v1138 = vpop.f32.mrb[0].mxu0
      %v1139 = vadd.f32 %v1046, %v1138
      %v1140 = vpop.f32.mrb[0].mxu0
      %v1141 = vadd.f32 %v1048, %v1140
      %1142 = vmatprep.mubr.bf16.mxu0 %v519
      %1143 = vmatmul.mubr.bf16.gmra.mrb[0].mxu0 %v518
      %v1144 = vpop.f32.mrb[0].mxu0
      %v1145 = vadd.f32 %v1052, %v1144
      %v1146 = vpop.f32.mrb[0].mxu0
      %v1147 = vadd.f32 %v1054, %v1146
      %v1148 = vpop.f32.mrb[0].mxu0
      %v1149 = vadd.f32 %v1056, %v1148
      %v1150 = vpop.f32.mrb[0].mxu0
      %v1151 = vadd.f32 %v1058, %v1150
      %1152 = vmatprep.mubr.bf16.mxu0 %v524
      %1153 = vmatmul.mubr.bf16.gmra.mrb[0].mxu0 %v523
      %v1154 = vpop.f32.mrb[0].mxu0
      %v1155 = vadd.f32 %v1062, %v1154
      %v1156 = vpop.f32.mrb[0].mxu0
      %v1157 = vadd.f32 %v1064, %v1156
      %v1158 = vpop.f32.mrb[0].mxu0
      %v1159 = vadd.f32 %v1066, %v1158
      %v1160 = vpop.f32.mrb[0].mxu0
      %v1161 = vadd.f32 %v1068, %v1160
      %1162 = vdwg.mxu0
      %1163 = vmatprep.subr.bf16.mxu0 %v879
      %1164 = vmatpush1.bf16.msra.mxu0 %v878
      %1165 = vmatprep.subr.bf16.mxu0 %v881
      %1166 = vmatpush1.bf16.msra.mxu0 %v880
      %1167 = vmatprep.subr.bf16.mxu0 %v883
      %1168 = vmatpush1.bf16.msra.mxu0 %v882
      %1169 = vmatprep.subr.bf16.mxu0 %v885
      %1170 = vmatpush1.bf16.msra.mxu0 %v884
      %1171 = vmatprep.subr.bf16.mxu0 0
      %1172 = vmatpush1.bf16.msra.mxu0 0
      %1173 = vmatprep.subr.bf16.mxu0 0
      %1174 = vmatpush1.bf16.msra.mxu0 0
      %1175 = vmatprep.subr.bf16.mxu0 0
      %1176 = vmatpush1.bf16.msra.mxu0 0
      %1177 = vmatprep.subr.bf16.mxu0 0
      %1178 = vmatpush1.bf16.msra.mxu0 0
      %1179 = vmatprep.subr.bf16.mxu0 0
      %1180 = vmatpush1.bf16.msra.mxu0 0
      %1181 = vmatprep.subr.bf16.mxu0 0
      %1182 = vmatpush1.bf16.msra.mxu0 0
      %1183 = vmatprep.subr.bf16.mxu0 0
      %1184 = vmatpush1.bf16.msra.mxu0 0
      %1185 = vmatprep.subr.bf16.mxu0 0
      %1186 = vmatpush1.bf16.msra.mxu0 0
      %1187 = vmatprep.subr.bf16.mxu0 0
      %1188 = vmatpush1.bf16.msra.mxu0 0
      %1189 = vmatprep.subr.bf16.mxu0 0
      %1190 = vmatpush1.bf16.msra.mxu0 0
      %1191 = vmatprep.subr.bf16.mxu0 0
      %1192 = vmatpush1.bf16.msra.mxu0 0
      %1193 = vmatprep.subr.bf16.mxu0 0
      %1194 = vmatpush1.bf16.msra.mxu0 0
      %1195 = vmatprep.mubr.bf16.mxu0 0
      %1196 = vmatmul.mubr.bf16.gmra.mrb[0].mxu0 %v960
      %v1197 = vpop.f32.mrb[0].mxu0
      %v1198 = vadd.f32 %v1105, %v1197
      %v1199 = vpop.f32.mrb[0].mxu0
      %v1200 = vadd.f32 %v1107, %v1199
      %v1201 = vpop.f32.mrb[0].mxu0
      %v1202 = vadd.f32 %v1109, %v1201
      %v1203 = vpop.f32.mrb[0].mxu0
      %v1204 = vadd.f32 %v1111, %v1203
      %1205 = vmatprep.mubr.bf16.mxu0 0
      %1206 = vmatmul.mubr.bf16.gmra.mrb[0].mxu0 %v963
      %v1207 = vpop.f32.mrb[0].mxu0
      %v1208 = vadd.f32 %v1115, %v1207
      %v1209 = vpop.f32.mrb[0].mxu0
      %v1210 = vadd.f32 %v1117, %v1209
      %v1211 = vpop.f32.mrb[0].mxu0
      %v1212 = vadd.f32 %v1119, %v1211
      %v1213 = vpop.f32.mrb[0].mxu0
      %v1214 = vadd.f32 %v1121, %v1213
      %1215 = vmatprep.mubr.bf16.mxu0 0
      %1216 = vmatmul.mubr.bf16.gmra.mrb[0].mxu0 %v966
      %v1217 = vpop.f32.mrb[0].mxu0
      %v1218 = vadd.f32 %v1125, %v1217
      %v1219 = vpop.f32.mrb[0].mxu0
      %v1220 = vadd.f32 %v1127, %v1219
      %v1221 = vpop.f32.mrb[0].mxu0
      %v1222 = vadd.f32 %v1129, %v1221
      %v1223 = vpop.f32.mrb[0].mxu0
      %v1224 = vadd.f32 %v1131, %v1223
      %1225 = vmatprep.mubr.bf16.mxu0 0
      %1226 = vmatmul.mubr.bf16.gmra.mrb[0].mxu0 %v969
      %v1227 = vpop.f32.mrb[0].mxu0
      %v1228 = vadd.f32 %v1135, %v1227
      %v1229 = vpop.f32.mrb[0].mxu0
      %v1230 = vadd.f32 %v1137, %v1229
      %v1231 = vpop.f32.mrb[0].mxu0
      %v1232 = vadd.f32 %v1139, %v1231
      %v1233 = vpop.f32.mrb[0].mxu0
      %v1234 = vadd.f32 %v1141, %v1233
      %1235 = vmatprep.mubr.bf16.mxu0 0
      %1236 = vmatmul.mubr.bf16.gmra.mrb[0].mxu0 %v972
      %v1237 = vpop.f32.mrb[0].mxu0
      %v1238 = vadd.f32 %v1145, %v1237
      %v1239 = vpop.f32.mrb[0].mxu0
      %v1240 = vadd.f32 %v1147, %v1239
      %v1241 = vpop.f32.mrb[0].mxu0
      %v1242 = vadd.f32 %v1149, %v1241
      %v1243 = vpop.f32.mrb[0].mxu0
      %v1244 = vadd.f32 %v1151, %v1243
      %1245 = vmatprep.mubr.bf16.mxu0 0
      %1246 = vmatmul.mubr.bf16.gmra.mrb[0].mxu0 %v975
      %v1247 = vpop.f32.mrb[0].mxu0
      %v1248 = vadd.f32 %v1155, %v1247
      %v1249 = vpop.f32.mrb[0].mxu0
      %v1250 = vadd.f32 %v1157, %v1249
      %v1251 = vpop.f32.mrb[0].mxu0
      %v1252 = vadd.f32 %v1159, %v1251
      %v1253 = vpop.f32.mrb[0].mxu0
      %v1254 = vadd.f32 %v1161, %v1253
      %1255 = vdwg.mxu0
      %vm1256 = vcmask 556032
      %v1257 = vsel %vm1256, %v1200, 0.0
      %v1258 = vadd.f32 %v1198, %v1257
      %1259 = vadd.xlane.f32.xlu0 %v1258
      %v1260 = vpop.xlane.xlu0 %1259
      %v1261 = vsel %vm1256, %v1204, 0.0
      %v1262 = vadd.f32 %v1202, %v1261
      %1263 = vadd.xlane.f32.xlu0 %v1262
      %v1264 = vpop.xlane.xlu0 %1263
      %v1265 = vsel %vm1256, %v1210, 0.0
      %v1266 = vadd.f32 %v1208, %v1265
      %1267 = vadd.xlane.f32.xlu0 %v1266
      %v1268 = vpop.xlane.xlu0 %1267
      %v1269 = vsel %vm1256, %v1214, 0.0
      %v1270 = vadd.f32 %v1212, %v1269
      %1271 = vadd.xlane.f32.xlu0 %v1270
      %v1272 = vpop.xlane.xlu0 %1271
      %v1273 = vsel %vm1256, %v1220, 0.0
      %v1274 = vadd.f32 %v1218, %v1273
      %1275 = vadd.xlane.f32.xlu0 %v1274
      %v1276 = vpop.xlane.xlu0 %1275
      %v1277 = vsel %vm1256, %v1224, 0.0
      %v1278 = vadd.f32 %v1222, %v1277
      %1279 = vadd.xlane.f32.xlu0 %v1278
      %v1280 = vpop.xlane.xlu0 %1279
      %v1281 = vsel %vm1256, %v1230, 0.0
      %v1282 = vadd.f32 %v1228, %v1281
      %1283 = vadd.xlane.f32.xlu0 %v1282
      %v1284 = vpop.xlane.xlu0 %1283
      %v1285 = vsel %vm1256, %v1234, 0.0
      %v1286 = vadd.f32 %v1232, %v1285
      %1287 = vadd.xlane.f32.xlu0 %v1286
      %v1288 = vpop.xlane.xlu0 %1287
      %v1289 = vsel %vm1256, %v1240, 0.0
      %v1290 = vadd.f32 %v1238, %v1289
      %1291 = vadd.xlane.f32.xlu0 %v1290
      %v1292 = vpop.xlane.xlu0 %1291
      %v1293 = vsel %vm1256, %v1244, 0.0
      %v1294 = vadd.f32 %v1242, %v1293
      %1295 = vadd.xlane.f32.xlu0 %v1294
      %v1296 = vpop.xlane.xlu0 %1295
      %v1297 = vsel %vm1256, %v1250, 0.0
      %v1298 = vadd.f32 %v1248, %v1297
      %1299 = vadd.xlane.f32.xlu0 %v1298
      %v1300 = vpop.xlane.xlu0 %1299
      %v1301 = vsel %vm1256, %v1254, 0.0
      %v1302 = vadd.f32 %v1252, %v1301
      %1303 = vadd.xlane.f32.xlu0 %v1302
      %v1304 = vpop.xlane.xlu0 %1303
      %v1305 = vmul.f32 %v1260, 0.0051020407
      %v1306 = vmul.f32 %v1264, 0.0051020407
      %v1307 = vmul.f32 %v1268, 0.0051020407
      %v1308 = vmul.f32 %v1272, 0.0051020407
      %v1309 = vmul.f32 %v1276, 0.0051020407
      %v1310 = vmul.f32 %v1280, 0.0051020407
      %v1311 = vmul.f32 %v1284, 0.0051020407
      %v1312 = vmul.f32 %v1288, 0.0051020407
      %v1313 = vmul.f32 %v1292, 0.0051020407
      %v1314 = vmul.f32 %v1296, 0.0051020407
      %v1315 = vmul.f32 %v1300, 0.0051020407
      %v1316 = vmul.f32 %v1304, 0.0051020407
      %v1317 = vmul.f32 %v1198, %v1198
      %v1318 = vmul.f32 %v1200, %v1200
      %v1319 = vmul.f32 %v1202, %v1202
      %v1320 = vmul.f32 %v1204, %v1204
      %v1321 = vmul.f32 %v1208, %v1208
      %v1322 = vmul.f32 %v1210, %v1210
      %v1323 = vmul.f32 %v1212, %v1212
      %v1324 = vmul.f32 %v1214, %v1214
      %v1325 = vmul.f32 %v1218, %v1218
      %v1326 = vmul.f32 %v1220, %v1220
      %v1327 = vmul.f32 %v1222, %v1222
      %v1328 = vmul.f32 %v1224, %v1224
      %v1329 = vmul.f32 %v1228, %v1228
      %v1330 = vmul.f32 %v1230, %v1230
      %v1331 = vmul.f32 %v1232, %v1232
      %v1332 = vmul.f32 %v1234, %v1234
      %v1333 = vmul.f32 %v1238, %v1238
      %v1334 = vmul.f32 %v1240, %v1240
      %v1335 = vmul.f32 %v1242, %v1242
      %v1336 = vmul.f32 %v1244, %v1244
      %v1337 = vmul.f32 %v1248, %v1248
      %v1338 = vmul.f32 %v1250, %v1250
      %v1339 = vmul.f32 %v1252, %v1252
      %v1340 = vmul.f32 %v1254, %v1254
      %v1341 = vsel %vm1256, %v1318, 0.0
      %v1342 = vadd.f32 %v1317, %v1341
      %1343 = vadd.xlane.f32.xlu0 %v1342
      %v1344 = vpop.xlane.xlu0 %1343
      %v1345 = vsel %vm1256, %v1320, 0.0
      %v1346 = vadd.f32 %v1319, %v1345
      %1347 = vadd.xlane.f32.xlu0 %v1346
      %v1348 = vpop.xlane.xlu0 %1347
      %v1349 = vsel %vm1256, %v1322, 0.0
      %v1350 = vadd.f32 %v1321, %v1349
      %1351 = vadd.xlane.f32.xlu0 %v1350
      %v1352 = vpop.xlane.xlu0 %1351
      %v1353 = vsel %vm1256, %v1324, 0.0
      %v1354 = vadd.f32 %v1323, %v1353
      %1355 = vadd.xlane.f32.xlu0 %v1354
      %v1356 = vpop.xlane.xlu0 %1355
      %v1357 = vsel %vm1256, %v1326, 0.0
      %v1358 = vadd.f32 %v1325, %v1357
      %1359 = vadd.xlane.f32.xlu0 %v1358
      %v1360 = vpop.xlane.xlu0 %1359
      %v1361 = vsel %vm1256, %v1328, 0.0
      %v1362 = vadd.f32 %v1327, %v1361
      %1363 = vadd.xlane.f32.xlu0 %v1362
      %v1364 = vpop.xlane.xlu0 %1363
      %v1365 = vsel %vm1256, %v1330, 0.0
      %v1366 = vadd.f32 %v1329, %v1365
      %1367 = vadd.xlane.f32.xlu0 %v1366
      %v1368 = vpop.xlane.xlu0 %1367
      %v1369 = vsel %vm1256, %v1332, 0.0
      %v1370 = vadd.f32 %v1331, %v1369
      %1371 = vadd.xlane.f32.xlu0 %v1370
      %v1372 = vpop.xlane.xlu0 %1371
      %v1373 = vsel %vm1256, %v1334, 0.0
      %v1374 = vadd.f32 %v1333, %v1373
      %1375 = vadd.xlane.f32.xlu0 %v1374
      %v1376 = vpop.xlane.xlu0 %1375
      %v1377 = vsel %vm1256, %v1336, 0.0
      %v1378 = vadd.f32 %v1335, %v1377
      %1379 = vadd.xlane.f32.xlu0 %v1378
      %v1380 = vpop.xlane.xlu0 %1379
      %v1381 = vsel %vm1256, %v1338, 0.0
      %v1382 = vadd.f32 %v1337, %v1381
      %1383 = vadd.xlane.f32.xlu0 %v1382
      %v1384 = vpop.xlane.xlu0 %1383
      %v1385 = vsel %vm1256, %v1340, 0.0
      %v1386 = vadd.f32 %v1339, %v1385
      %1387 = vadd.xlane.f32.xlu0 %v1386
      %v1388 = vpop.xlane.xlu0 %1387
      %v1389 = vmul.f32 %v1344, 0.0051020407
      %v1390 = vmul.f32 %v1348, 0.0051020407
      %v1391 = vmul.f32 %v1352, 0.0051020407
      %v1392 = vmul.f32 %v1356, 0.0051020407
      %v1393 = vmul.f32 %v1360, 0.0051020407
      %v1394 = vmul.f32 %v1364, 0.0051020407
      %v1395 = vmul.f32 %v1368, 0.0051020407
      %v1396 = vmul.f32 %v1372, 0.0051020407
      %v1397 = vmul.f32 %v1376, 0.0051020407
      %v1398 = vmul.f32 %v1380, 0.0051020407
      %v1399 = vmul.f32 %v1384, 0.0051020407
      %v1400 = vmul.f32 %v1388, 0.0051020407
      %v1401 = vmul.f32 %v1305, %v1305
      %v1402 = vmul.f32 %v1306, %v1306
      %v1403 = vmul.f32 %v1307, %v1307
      %v1404 = vmul.f32 %v1308, %v1308
      %v1405 = vmul.f32 %v1309, %v1309
      %v1406 = vmul.f32 %v1310, %v1310
      %v1407 = vmul.f32 %v1311, %v1311
      %v1408 = vmul.f32 %v1312, %v1312
      %v1409 = vmul.f32 %v1313, %v1313
      %v1410 = vmul.f32 %v1314, %v1314
      %v1411 = vmul.f32 %v1315, %v1315
      %v1412 = vmul.f32 %v1316, %v1316
      %v1413 = vsub.f32 %v1389, %v1401
      %v1414 = vsub.f32 %v1390, %v1402
      %v1415 = vsub.f32 %v1391, %v1403
      %v1416 = vsub.f32 %v1392, %v1404
      %v1417 = vsub.f32 %v1393, %v1405
      %v1418 = vsub.f32 %v1394, %v1406
      %v1419 = vsub.f32 %v1395, %v1407
      %v1420 = vsub.f32 %v1396, %v1408
      %v1421 = vsub.f32 %v1397, %v1409
      %v1422 = vsub.f32 %v1398, %v1410
      %v1423 = vsub.f32 %v1399, %v1411
      %v1424 = vsub.f32 %v1400, %v1412
      %v1425 = vld [vmem:[%s4] sm:$0xff]
      %v1426 = vld [vmem:[%s4 + $0x8] sm:$0xff]
      %v1427 = vld [vmem:[%s4 + $0x10] sm:$0xff]
      %v1428 = vld [vmem:[%s4 + $0x18] sm:$0xff]
      %v1429 = vld [vmem:[%s4 + $0x20] sm:$0xff]
      %v1430 = vld [vmem:[%s4 + $0x28] sm:$0xff]
      %v1431 = vld [vmem:[%s4 + $0x30] sm:$0xff]
      %v1432 = vld [vmem:[%s4 + $0x38] sm:$0xff]
      %v1433 = vld [vmem:[%s4 + $0x40] sm:$0xff]
      %v1434 = vld [vmem:[%s4 + $0x48] sm:$0xff]
      %v1435 = vld [vmem:[%s4 + $0x50] sm:$0xff]
      %v1436 = vld [vmem:[%s4 + $0x58] sm:$0xff]
      %v1437 = vadd.f32 %v1413, 1e-05
      %v1438 = vadd.f32 %v1414, 1e-05
      %v1439 = vadd.f32 %v1415, 1e-05
      %v1440 = vadd.f32 %v1416, 1e-05
      %v1441 = vadd.f32 %v1417, 1e-05
      %v1442 = vadd.f32 %v1418, 1e-05
      %v1443 = vadd.f32 %v1419, 1e-05
      %v1444 = vadd.f32 %v1420, 1e-05
      %v1445 = vadd.f32 %v1421, 1e-05
      %v1446 = vadd.f32 %v1422, 1e-05
      %v1447 = vadd.f32 %v1423, 1e-05
      %v1448 = vadd.f32 %v1424, 1e-05
      %v1449 = vrsqrt.pop %v1437
      %v1450 = vrsqrt.pop %v1438
      %v1451 = vrsqrt.pop %v1439
      %v1452 = vrsqrt.pop %v1440
      %v1453 = vrsqrt.pop %v1441
      %v1454 = vrsqrt.pop %v1442
      %v1455 = vrsqrt.pop %v1443
      %v1456 = vrsqrt.pop %v1444
      %v1457 = vrsqrt.pop %v1445
      %v1458 = vrsqrt.pop %v1446
      %v1459 = vrsqrt.pop %v1447
      %v1460 = vrsqrt.pop %v1448
      %v1461 = vmul.f32 %v1425, %v1449
      %v1462 = vmul.f32 %v1426, %v1450
      %v1463 = vmul.f32 %v1427, %v1451
      %v1464 = vmul.f32 %v1428, %v1452
      %v1465 = vmul.f32 %v1429, %v1453
      %v1466 = vmul.f32 %v1430, %v1454
      %v1467 = vmul.f32 %v1431, %v1455
      %v1468 = vmul.f32 %v1432, %v1456
      %v1469 = vmul.f32 %v1433, %v1457
      %v1470 = vmul.f32 %v1434, %v1458
      %v1471 = vmul.f32 %v1435, %v1459
      %v1472 = vmul.f32 %v1436, %v1460
      %v1473 = vmul.f32 %v1305, %v1461
      %v1474 = vmul.f32 %v1306, %v1462
      %v1475 = vmul.f32 %v1307, %v1463
      %v1476 = vmul.f32 %v1308, %v1464
      %v1477 = vmul.f32 %v1309, %v1465
      %v1478 = vmul.f32 %v1310, %v1466
      %v1479 = vmul.f32 %v1311, %v1467
      %v1480 = vmul.f32 %v1312, %v1468
      %v1481 = vmul.f32 %v1313, %v1469
      %v1482 = vmul.f32 %v1314, %v1470
      %v1483 = vmul.f32 %v1315, %v1471
      %v1484 = vmul.f32 %v1316, %v1472
      %1497 = vrot.lane.b32.xlu0 %v1473, 1
      %v1498 = vpop.permute.xlu0 %1497
      %1499 = vrot.lane.b32.xlu0 %v1474, 1
      %v1500 = vpop.permute.xlu0 %1499
      %1501 = vrot.lane.b32.xlu0 %v1475, 1
      %v1502 = vpop.permute.xlu0 %1501
      %1503 = vrot.lane.b32.xlu0 %v1476, 1
      %v1504 = vpop.permute.xlu0 %1503
      %1505 = vrot.lane.b32.xlu0 %v1477, 1
      %v1506 = vpop.permute.xlu0 %1505
      %1507 = vrot.lane.b32.xlu0 %v1478, 1
      %v1508 = vpop.permute.xlu0 %1507
      %1509 = vrot.lane.b32.xlu0 %v1479, 1
      %v1510 = vpop.permute.xlu0 %1509
      %1511 = vrot.lane.b32.xlu0 %v1480, 1
      %v1512 = vpop.permute.xlu0 %1511
      %1513 = vrot.lane.b32.xlu0 %v1481, 1
      %v1514 = vpop.permute.xlu0 %1513
      %1515 = vrot.lane.b32.xlu0 %v1482, 1
      %v1516 = vpop.permute.xlu0 %1515
      %1517 = vrot.lane.b32.xlu0 %v1483, 1
      %v1518 = vpop.permute.xlu0 %1517
      %1519 = vrot.lane.b32.xlu0 %v1484, 1
      %v1520 = vpop.permute.xlu0 %1519
      %v1533 = vsub.f32 %v1425, %v1498
      %v1534 = vsub.f32 %v1426, %v1500
      %v1535 = vsub.f32 %v1427, %v1502
      %v1536 = vsub.f32 %v1428, %v1504
      %v1537 = vsub.f32 %v1429, %v1506
      %v1538 = vsub.f32 %v1430, %v1508
      %v1539 = vsub.f32 %v1431, %v1510
      %v1540 = vsub.f32 %v1432, %v1512
      %v1541 = vsub.f32 %v1433, %v1514
      %v1542 = vsub.f32 %v1434, %v1516
      %v1543 = vsub.f32 %v1435, %v1518
      %v1544 = vsub.f32 %v1436, %v1520
      %1546 = vset.pattern.permute.xlu0 0
      %1547 = vperm.xlu0 %1546, %v1461
      %v1548 = vpop.permute.xlu0 %1547
      %1551 = vset.pattern.permute.xlu0 0
      %1552 = vperm.xlu0 %1551, %v1462
      %v1553 = vpop.permute.xlu0 %1552
      %1556 = vset.pattern.permute.xlu0 0
      %1557 = vperm.xlu0 %1556, %v1463
      %v1558 = vpop.permute.xlu0 %1557
      %1561 = vset.pattern.permute.xlu0 0
      %1562 = vperm.xlu0 %1561, %v1464
      %v1563 = vpop.permute.xlu0 %1562
      %1566 = vset.pattern.permute.xlu0 0
      %1567 = vperm.xlu0 %1566, %v1465
      %v1568 = vpop.permute.xlu0 %1567
      %1571 = vset.pattern.permute.xlu0 0
      %1572 = vperm.xlu0 %1571, %v1466
      %v1573 = vpop.permute.xlu0 %1572
      %1576 = vset.pattern.permute.xlu0 0
      %1577 = vperm.xlu0 %1576, %v1467
      %v1578 = vpop.permute.xlu0 %1577
      %1581 = vset.pattern.permute.xlu0 0
      %1582 = vperm.xlu0 %1581, %v1468
      %v1583 = vpop.permute.xlu0 %1582
      %1586 = vset.pattern.permute.xlu0 0
      %1587 = vperm.xlu0 %1586, %v1469
      %v1588 = vpop.permute.xlu0 %1587
      %1591 = vset.pattern.permute.xlu0 0
      %1592 = vperm.xlu0 %1591, %v1470
      %v1593 = vpop.permute.xlu0 %1592
      %1596 = vset.pattern.permute.xlu0 0
      %1597 = vperm.xlu0 %1596, %v1471
      %v1598 = vpop.permute.xlu0 %1597
      %1601 = vset.pattern.permute.xlu0 0
      %1602 = vperm.xlu0 %1601, %v1472
      %v1603 = vpop.permute.xlu0 %1602
      %v1605 = vmul.f32 %v1198, %v1548
      %v1606 = vmul.f32 %v1200, %v1548
      %v1607 = vmul.f32 %v1202, %v1553
      %v1608 = vmul.f32 %v1204, %v1553
      %v1609 = vmul.f32 %v1208, %v1558
      %v1610 = vmul.f32 %v1210, %v1558
      %v1611 = vmul.f32 %v1212, %v1563
      %v1612 = vmul.f32 %v1214, %v1563
      %v1613 = vmul.f32 %v1218, %v1568
      %v1614 = vmul.f32 %v1220, %v1568
      %v1615 = vmul.f32 %v1222, %v1573
      %v1616 = vmul.f32 %v1224, %v1573
      %v1617 = vmul.f32 %v1228, %v1578
      %v1618 = vmul.f32 %v1230, %v1578
      %v1619 = vmul.f32 %v1232, %v1583
      %v1620 = vmul.f32 %v1234, %v1583
      %v1621 = vmul.f32 %v1238, %v1588
      %v1622 = vmul.f32 %v1240, %v1588
      %v1623 = vmul.f32 %v1242, %v1593
      %v1624 = vmul.f32 %v1244, %v1593
      %v1625 = vmul.f32 %v1248, %v1598
      %v1626 = vmul.f32 %v1250, %v1598
      %v1627 = vmul.f32 %v1252, %v1603
      %v1628 = vmul.f32 %v1254, %v1603
      %1630 = vset.pattern.permute.xlu0 1
      %1631 = vperm.xlu0 %1630, %v1533
      %v1632 = vpop.permute.xlu0 %1631
      %1635 = vset.pattern.permute.xlu0 1
      %1636 = vperm.xlu0 %1635, %v1534
      %v1637 = vpop.permute.xlu0 %1636
      %1640 = vset.pattern.permute.xlu0 1
      %1641 = vperm.xlu0 %1640, %v1535
      %v1642 = vpop.permute.xlu0 %1641
      %1645 = vset.pattern.permute.xlu0 1
      %1646 = vperm.xlu0 %1645, %v1536
      %v1647 = vpop.permute.xlu0 %1646
      %1650 = vset.pattern.permute.xlu0 1
      %1651 = vperm.xlu0 %1650, %v1537
      %v1652 = vpop.permute.xlu0 %1651
      %1655 = vset.pattern.permute.xlu0 1
      %1656 = vperm.xlu0 %1655, %v1538
      %v1657 = vpop.permute.xlu0 %1656
      %1660 = vset.pattern.permute.xlu0 1
      %1661 = vperm.xlu0 %1660, %v1539
      %v1662 = vpop.permute.xlu0 %1661
      %1665 = vset.pattern.permute.xlu0 1
      %1666 = vperm.xlu0 %1665, %v1540
      %v1667 = vpop.permute.xlu0 %1666
      %1670 = vset.pattern.permute.xlu0 1
      %1671 = vperm.xlu0 %1670, %v1541
      %v1672 = vpop.permute.xlu0 %1671
      %1675 = vset.pattern.permute.xlu0 1
      %1676 = vperm.xlu0 %1675, %v1542
      %v1677 = vpop.permute.xlu0 %1676
      %1680 = vset.pattern.permute.xlu0 1
      %1681 = vperm.xlu0 %1680, %v1543
      %v1682 = vpop.permute.xlu0 %1681
      %1685 = vset.pattern.permute.xlu0 1
      %1686 = vperm.xlu0 %1685, %v1544
      %v1687 = vpop.permute.xlu0 %1686
      %v1689 = vadd.f32 %v1605, %v1632
      %v1690 = vadd.f32 %v1606, %v1632
      %v1691 = vadd.f32 %v1607, %v1637
      %v1692 = vadd.f32 %v1608, %v1637
      %v1693 = vadd.f32 %v1609, %v1642
      %v1694 = vadd.f32 %v1610, %v1642
      %v1695 = vadd.f32 %v1611, %v1647
      %v1696 = vadd.f32 %v1612, %v1647
      %v1697 = vadd.f32 %v1613, %v1652
      %v1698 = vadd.f32 %v1614, %v1652
      %v1699 = vadd.f32 %v1615, %v1657
      %v1700 = vadd.f32 %v1616, %v1657
      %v1701 = vadd.f32 %v1617, %v1662
      %v1702 = vadd.f32 %v1618, %v1662
      %v1703 = vadd.f32 %v1619, %v1667
      %v1704 = vadd.f32 %v1620, %v1667
      %v1705 = vadd.f32 %v1621, %v1672
      %v1706 = vadd.f32 %v1622, %v1672
      %v1707 = vadd.f32 %v1623, %v1677
      %v1708 = vadd.f32 %v1624, %v1677
      %v1709 = vadd.f32 %v1625, %v1682
      %v1710 = vadd.f32 %v1626, %v1682
      %v1711 = vadd.f32 %v1627, %v1687
      %v1712 = vadd.f32 %v1628, %v1687
      %v1713 = vld [vmem:[%s2] sm:$0xff]
      %v1714 = vld [vmem:[%s2 + $0x8] sm:$0xff]
      %v1715 = vld [vmem:[%s2 + $0x10] sm:$0xff]
      %v1716 = vld [vmem:[%s2 + $0x18] sm:$0xff]
      %v1717 = vld [vmem:[%s2 + $0x20] sm:$0xff]
      %v1718 = vld [vmem:[%s2 + $0x28] sm:$0xff]
      %v1719 = vld [vmem:[%s2 + $0x30] sm:$0xff]
      %v1720 = vld [vmem:[%s2 + $0x38] sm:$0xff]
      %v1721 = vld [vmem:[%s2 + $0x40] sm:$0xff]
      %v1722 = vld [vmem:[%s2 + $0x48] sm:$0xff]
      %v1723 = vld [vmem:[%s2 + $0x50] sm:$0xff]
      %v1724 = vld [vmem:[%s2 + $0x58] sm:$0xff]
      %v1725 = vunpack.c.l.bf16 %v1713
      %v1726 = vunpack.c.h.bf16 %v1713
      %v1727 = vunpack.c.l.bf16 %v1714
      %v1728 = vunpack.c.h.bf16 %v1714
      %v1729 = vunpack.c.l.bf16 %v1715
      %v1730 = vunpack.c.h.bf16 %v1715
      %v1731 = vunpack.c.l.bf16 %v1716
      %v1732 = vunpack.c.h.bf16 %v1716
      %v1733 = vunpack.c.l.bf16 %v1717
      %v1734 = vunpack.c.h.bf16 %v1717
      %v1735 = vunpack.c.l.bf16 %v1718
      %v1736 = vunpack.c.h.bf16 %v1718
      %v1737 = vunpack.c.l.bf16 %v1719
      %v1738 = vunpack.c.h.bf16 %v1719
      %v1739 = vunpack.c.l.bf16 %v1720
      %v1740 = vunpack.c.h.bf16 %v1720
      %v1741 = vunpack.c.l.bf16 %v1721
      %v1742 = vunpack.c.h.bf16 %v1721
      %v1743 = vunpack.c.l.bf16 %v1722
      %v1744 = vunpack.c.h.bf16 %v1722
      %v1745 = vunpack.c.l.bf16 %v1723
      %v1746 = vunpack.c.h.bf16 %v1723
      %v1747 = vunpack.c.l.bf16 %v1724
      %v1748 = vunpack.c.h.bf16 %v1724
      %v1749 = vadd.f32 %v1689, %v1725
      %v1750 = vadd.f32 %v1690, %v1726
      %v1751 = vadd.f32 %v1691, %v1727
      %v1752 = vadd.f32 %v1692, %v1728
      %v1753 = vadd.f32 %v1693, %v1729
      %v1754 = vadd.f32 %v1694, %v1730
      %v1755 = vadd.f32 %v1695, %v1731
      %v1756 = vadd.f32 %v1696, %v1732
      %v1757 = vadd.f32 %v1697, %v1733
      %v1758 = vadd.f32 %v1698, %v1734
      %v1759 = vadd.f32 %v1699, %v1735
      %v1760 = vadd.f32 %v1700, %v1736
      %v1761 = vadd.f32 %v1701, %v1737
      %v1762 = vadd.f32 %v1702, %v1738
      %v1763 = vadd.f32 %v1703, %v1739
      %v1764 = vadd.f32 %v1704, %v1740
      %v1765 = vadd.f32 %v1705, %v1741
      %v1766 = vadd.f32 %v1706, %v1742
      %v1767 = vadd.f32 %v1707, %v1743
      %v1768 = vadd.f32 %v1708, %v1744
      %v1769 = vadd.f32 %v1709, %v1745
      %v1770 = vadd.f32 %v1710, %v1746
      %v1771 = vadd.f32 %v1711, %v1747
      %v1772 = vadd.f32 %v1712, %v1748
      %v1773 = vpack.c.bf16 %v1751, %v1749
      %v1774 = vpack.c.bf16 %v1752, %v1750
      %v1775 = vpack.c.bf16 %v1755, %v1753
      %v1776 = vpack.c.bf16 %v1756, %v1754
      %v1777 = vpack.c.bf16 %v1759, %v1757
      %v1778 = vpack.c.bf16 %v1760, %v1758
      %v1779 = vpack.c.bf16 %v1763, %v1761
      %v1780 = vpack.c.bf16 %v1764, %v1762
      %v1781 = vpack.c.bf16 %v1767, %v1765
      %v1782 = vpack.c.bf16 %v1768, %v1766
      %v1783 = vpack.c.bf16 %v1771, %v1769
      %v1784 = vpack.c.bf16 %v1772, %v1770
      %v1785 = vld [vmem:[%s291] sm:$0xf]
      %v1786 = vld [vmem:[%s291 + $0x4] sm:$0xf]
      %v1787 = vld [vmem:[%s291 + $0x8] sm:$0xf]
      %v1788 = vld [vmem:[%s291 + $0xc] sm:$0xf]
      %v1789 = vld [vmem:[%s291 + $0x10] sm:$0xf]
      %v1790 = vld [vmem:[%s291 + $0x14] sm:$0xf]
      %v1791 = vld [vmem:[%s291 + $0x18] sm:$0xf]
      %v1792 = vld [vmem:[%s291 + $0x1c] sm:$0xf]
      %v1793 = vld [vmem:[%s291 + $0x20] sm:$0xf]
      %v1794 = vld [vmem:[%s291 + $0x24] sm:$0xf]
      %v1795 = vld [vmem:[%s291 + $0x28] sm:$0xf]
      %v1796 = vld [vmem:[%s291 + $0x2c] sm:$0xf]
      %v1797 = vld [vmem:[%s291 + $0x30] sm:$0xf]
      %v1798 = vld [vmem:[%s291 + $0x34] sm:$0xf]
      %v1799 = vld [vmem:[%s291 + $0x38] sm:$0xf]
      %v1800 = vld [vmem:[%s291 + $0x3c] sm:$0xf]
      %v1801 = vld [vmem:[%s291 + $0x40] sm:$0xf]
      %v1802 = vld [vmem:[%s291 + $0x44] sm:$0xf]
      %v1803 = vld [vmem:[%s291 + $0x48] sm:$0xf]
      %v1804 = vld [vmem:[%s291 + $0x4c] sm:$0xf]
      %v1805 = vld [vmem:[%s291 + $0x50] sm:$0xf]
      %v1806 = vld [vmem:[%s291 + $0x54] sm:$0xf]
      %v1807 = vld [vmem:[%s291 + $0x58] sm:$0xf]
      %v1808 = vld [vmem:[%s291 + $0x5c] sm:$0xf]
      %v1809 = vld [vmem:[%s291 + $0x60] sm:$0xf]
      %v1810 = vld [vmem:[%s291 + $0x64] sm:$0xf]
      %v1811 = vld [vmem:[%s291 + $0x68] sm:$0xf]
      %v1812 = vld [vmem:[%s291 + $0x6c] sm:$0xf]
      %v1813 = vld [vmem:[%s291 + $0x70] sm:$0xf]
      %v1814 = vld [vmem:[%s291 + $0x74] sm:$0xf]
      %v1815 = vld [vmem:[%s291 + $0x78] sm:$0xf]
      %v1816 = vld [vmem:[%s291 + $0x7c] sm:$0xf]
      %v1817 = vld [vmem:[%s291 + $0x80] sm:$0xf]
      %v1818 = vld [vmem:[%s291 + $0x84] sm:$0xf]
      %v1819 = vld [vmem:[%s291 + $0x88] sm:$0xf]
      %v1820 = vld [vmem:[%s291 + $0x8c] sm:$0xf]
      %v1857 = vunpack.c.l.b16 %v1785
      %v1858 = vunpack.c.l.b16 %v1786
      %v1859 = vunpack.c.l.b16 %v1787
      %v1860 = vunpack.c.l.b16 %v1788
      %v1861 = vunpack.c.l.b16 %v1789
      %v1862 = vunpack.c.l.b16 %v1790
      %v1863 = vunpack.c.l.b16 %v1791
      %v1864 = vunpack.c.l.b16 %v1792
      %v1865 = vunpack.c.l.b16 %v1793
      %v1866 = vunpack.c.l.b16 %v1794
      %v1867 = vunpack.c.l.b16 %v1795
      %v1868 = vunpack.c.l.b16 %v1796
      %v1869 = vunpack.c.l.b16 %v1797
      %v1870 = vunpack.c.l.b16 %v1798
      %v1871 = vunpack.c.l.b16 %v1799
      %v1872 = vunpack.c.l.b16 %v1800
      %v1873 = vunpack.c.l.b16 %v1801
      %v1874 = vunpack.c.l.b16 %v1802
      %v1875 = vunpack.c.l.b16 %v1803
      %v1876 = vunpack.c.l.b16 %v1804
      %v1877 = vunpack.c.l.b16 %v1805
      %v1878 = vunpack.c.l.b16 %v1806
      %v1879 = vunpack.c.l.b16 %v1807
      %v1880 = vunpack.c.l.b16 %v1808
      %v1881 = vunpack.c.l.b16 %v1809
      %v1882 = vunpack.c.l.b16 %v1810
      %v1883 = vunpack.c.l.b16 %v1811
      %v1884 = vunpack.c.l.b16 %v1812
      %v1885 = vunpack.c.l.b16 %v1813
      %v1886 = vunpack.c.l.b16 %v1814
      %v1887 = vunpack.c.l.b16 %v1815
      %v1888 = vunpack.c.l.b16 %v1816
      %v1889 = vunpack.c.l.b16 %v1817
      %v1890 = vunpack.c.l.b16 %v1818
      %v1891 = vunpack.c.l.b16 %v1819
      %v1892 = vunpack.c.l.b16 %v1820
      %v1893 = vpack.c.b16 %v1858, %v1857
      %v1894 = vpack.c.b16 %v1860, %v1859
      %v1895 = vpack.c.b16 %v1862, %v1861
      %v1896 = vpack.c.b16 %v1864, %v1863
      %v1897 = vpack.c.b16 %v1866, %v1865
      %v1898 = vpack.c.b16 %v1868, %v1867
      %v1899 = vpack.c.b16 %v1870, %v1869
      %v1900 = vpack.c.b16 %v1872, %v1871
      %v1901 = vpack.c.b16 %v1874, %v1873
      %v1902 = vpack.c.b16 %v1876, %v1875
      %v1903 = vpack.c.b16 %v1878, %v1877
      %v1904 = vpack.c.b16 %v1880, %v1879
      %v1905 = vpack.c.b16 %v1882, %v1881
      %v1906 = vpack.c.b16 %v1884, %v1883
      %v1907 = vpack.c.b16 %v1886, %v1885
      %v1908 = vpack.c.b16 %v1888, %v1887
      %v1909 = vpack.c.b16 %v1890, %v1889
      %v1910 = vpack.c.b16 %v1892, %v1891
      %vm1911 = vcmask 785408
      %v1913 = vsel %vm1911, %v1893, 0
      %v1916 = vsel %vm1911, %v1894, 0
      %v1919 = vsel %vm1911, %v1895, 0
      %v1922 = vsel %vm1911, %v1896, 0
      %v1925 = vsel %vm1911, %v1897, 0
      %v1928 = vsel %vm1911, %v1898, 0
      %v1931 = vsel %vm1911, %v1899, 0
      %v1934 = vsel %vm1911, %v1900, 0
      %v1937 = vsel %vm1911, %v1901, 0
      %v1940 = vsel %vm1911, %v1902, 0
      %v1943 = vsel %vm1911, %v1903, 0
      %v1946 = vsel %vm1911, %v1904, 0
      %v1949 = vsel %vm1911, %v1905, 0
      %v1952 = vsel %vm1911, %v1906, 0
      %v1955 = vsel %vm1911, %v1907, 0
      %v1958 = vsel %vm1911, %v1908, 0
      %v1961 = vsel %vm1911, %v1909, 0
      %v1964 = vsel %vm1911, %v1910, 0
      %1966 = vmatprep.subr.bf16.mxu0 %v1774
      %1967 = vmatpush1.bf16.msra.mxu0 %v1773
      %1968 = vmatprep.subr.bf16.mxu0 %v1776
      %1969 = vmatpush1.bf16.msra.mxu0 %v1775
      %1970 = vmatprep.subr.bf16.mxu0 %v1778
      %1971 = vmatpush1.bf16.msra.mxu0 %v1777
      %1972 = vmatprep.subr.bf16.mxu0 %v1780
      %1973 = vmatpush1.bf16.msra.mxu0 %v1779
      %1974 = vmatprep.subr.bf16.mxu0 %v1782
      %1975 = vmatpush1.bf16.msra.mxu0 %v1781
      %1976 = vmatprep.subr.bf16.mxu0 %v1784
      %1977 = vmatpush1.bf16.msra.mxu0 %v1783
      %1978 = vmatprep.subr.bf16.mxu0 0
      %1979 = vmatpush1.bf16.msra.mxu0 0
      %1980 = vmatprep.subr.bf16.mxu0 0
      %1981 = vmatpush1.bf16.msra.mxu0 0
      %1982 = vmatprep.subr.bf16.mxu0 0
      %1983 = vmatpush1.bf16.msra.mxu0 0
      %1984 = vmatprep.subr.bf16.mxu0 0
      %1985 = vmatpush1.bf16.msra.mxu0 0
      %1986 = vmatprep.subr.bf16.mxu0 0
      %1987 = vmatpush1.bf16.msra.mxu0 0
      %1988 = vmatprep.subr.bf16.mxu0 0
      %1989 = vmatpush1.bf16.msra.mxu0 0
      %1990 = vmatprep.subr.bf16.mxu0 0
      %1991 = vmatpush1.bf16.msra.mxu0 0
      %1992 = vmatprep.subr.bf16.mxu0 0
      %1993 = vmatpush1.bf16.msra.mxu0 0
      %1994 = vmatprep.subr.bf16.mxu0 0
      %1995 = vmatpush1.bf16.msra.mxu0 0
      %1996 = vmatprep.subr.bf16.mxu0 0
      %1997 = vmatpush1.bf16.msra.mxu0 0
      %1998 = vmatprep.mubr.bf16.mxu0 0
      %1999 = vmatmul.mubr.bf16.gmra.mrb[0].mxu0 %v1913
      %v2000 = vpop.f32.mrb[0].mxu0
      %v2001 = vadd.f32 0.0, %v2000
      %v2002 = vpop.f32.mrb[0].mxu0
      %v2003 = vadd.f32 0.0, %v2002
      %v2004 = vpop.f32.mrb[0].mxu0
      %v2005 = vadd.f32 0.0, %v2004
      %v2006 = vpop.f32.mrb[0].mxu0
      %v2007 = vadd.f32 0.0, %v2006
      %2008 = vmatprep.mubr.bf16.mxu0 0
      %2009 = vmatmul.mubr.bf16.gmra.mrb[0].mxu0 %v1916
      %v2010 = vpop.f32.mrb[0].mxu0
      %v2011 = vadd.f32 0.0, %v2010
      %v2012 = vpop.f32.mrb[0].mxu0
      %v2013 = vadd.f32 0.0, %v2012
      %v2014 = vpop.f32.mrb[0].mxu0
      %v2015 = vadd.f32 0.0, %v2014
      %v2016 = vpop.f32.mrb[0].mxu0
      %v2017 = vadd.f32 0.0, %v2016
      %2018 = vmatprep.mubr.bf16.mxu0 0
      %2019 = vmatmul.mubr.bf16.gmra.mrb[0].mxu0 %v1919
      %v2020 = vpop.f32.mrb[0].mxu0
      %v2021 = vadd.f32 0.0, %v2020
      %v2022 = vpop.f32.mrb[0].mxu0
      %v2023 = vadd.f32 0.0, %v2022
      %v2024 = vpop.f32.mrb[0].mxu0
      %v2025 = vadd.f32 0.0, %v2024
      %v2026 = vpop.f32.mrb[0].mxu0
      %v2027 = vadd.f32 0.0, %v2026
      %2028 = vmatprep.mubr.bf16.mxu0 0
      %2029 = vmatmul.mubr.bf16.gmra.mrb[0].mxu0 %v1922
      %v2030 = vpop.f32.mrb[0].mxu0
      %v2031 = vadd.f32 0.0, %v2030
      %v2032 = vpop.f32.mrb[0].mxu0
      %v2033 = vadd.f32 0.0, %v2032
      %v2034 = vpop.f32.mrb[0].mxu0
      %v2035 = vadd.f32 0.0, %v2034
      %v2036 = vpop.f32.mrb[0].mxu0
      %v2037 = vadd.f32 0.0, %v2036
      %2038 = vmatprep.mubr.bf16.mxu0 0
      %2039 = vmatmul.mubr.bf16.gmra.mrb[0].mxu0 %v1925
      %v2040 = vpop.f32.mrb[0].mxu0
      %v2041 = vadd.f32 0.0, %v2040
      %v2042 = vpop.f32.mrb[0].mxu0
      %v2043 = vadd.f32 0.0, %v2042
      %v2044 = vpop.f32.mrb[0].mxu0
      %v2045 = vadd.f32 0.0, %v2044
      %v2046 = vpop.f32.mrb[0].mxu0
      %v2047 = vadd.f32 0.0, %v2046
      %2048 = vmatprep.mubr.bf16.mxu0 0
      %2049 = vmatmul.mubr.bf16.gmra.mrb[0].mxu0 %v1928
      %v2050 = vpop.f32.mrb[0].mxu0
      %v2051 = vadd.f32 0.0, %v2050
      %v2052 = vpop.f32.mrb[0].mxu0
      %v2053 = vadd.f32 0.0, %v2052
      %v2054 = vpop.f32.mrb[0].mxu0
      %v2055 = vadd.f32 0.0, %v2054
      %v2056 = vpop.f32.mrb[0].mxu0
      %v2057 = vadd.f32 0.0, %v2056
      %2058 = vmatprep.mubr.bf16.mxu0 0
      %2059 = vmatmul.mubr.bf16.gmra.mrb[0].mxu0 %v1931
      %v2060 = vpop.f32.mrb[0].mxu0
      %v2061 = vadd.f32 0.0, %v2060
      %v2062 = vpop.f32.mrb[0].mxu0
      %v2063 = vadd.f32 0.0, %v2062
      %v2064 = vpop.f32.mrb[0].mxu0
      %v2065 = vadd.f32 0.0, %v2064
      %v2066 = vpop.f32.mrb[0].mxu0
      %v2067 = vadd.f32 0.0, %v2066
      %2068 = vmatprep.mubr.bf16.mxu0 0
      %2069 = vmatmul.mubr.bf16.gmra.mrb[0].mxu0 %v1934
      %v2070 = vpop.f32.mrb[0].mxu0
      %v2071 = vadd.f32 0.0, %v2070
      %v2072 = vpop.f32.mrb[0].mxu0
      %v2073 = vadd.f32 0.0, %v2072
      %v2074 = vpop.f32.mrb[0].mxu0
      %v2075 = vadd.f32 0.0, %v2074
      %v2076 = vpop.f32.mrb[0].mxu0
      %v2077 = vadd.f32 0.0, %v2076
      %2078 = vmatprep.mubr.bf16.mxu0 0
      %2079 = vmatmul.mubr.bf16.gmra.mrb[0].mxu0 %v1937
      %v2080 = vpop.f32.mrb[0].mxu0
      %v2081 = vadd.f32 0.0, %v2080
      %v2082 = vpop.f32.mrb[0].mxu0
      %v2083 = vadd.f32 0.0, %v2082
      %v2084 = vpop.f32.mrb[0].mxu0
      %v2085 = vadd.f32 0.0, %v2084
      %v2086 = vpop.f32.mrb[0].mxu0
      %v2087 = vadd.f32 0.0, %v2086
      %2088 = vmatprep.mubr.bf16.mxu0 0
      %2089 = vmatmul.mubr.bf16.gmra.mrb[0].mxu0 %v1940
      %v2090 = vpop.f32.mrb[0].mxu0
      %v2091 = vadd.f32 0.0, %v2090
      %v2092 = vpop.f32.mrb[0].mxu0
      %v2093 = vadd.f32 0.0, %v2092
      %v2094 = vpop.f32.mrb[0].mxu0
      %v2095 = vadd.f32 0.0, %v2094
      %v2096 = vpop.f32.mrb[0].mxu0
      %v2097 = vadd.f32 0.0, %v2096
      %2098 = vmatprep.mubr.bf16.mxu0 0
      %2099 = vmatmul.mubr.bf16.gmra.mrb[0].mxu0 %v1943
      %v2100 = vpop.f32.mrb[0].mxu0
      %v2101 = vadd.f32 0.0, %v2100
      %v2102 = vpop.f32.mrb[0].mxu0
      %v2103 = vadd.f32 0.0, %v2102
      %v2104 = vpop.f32.mrb[0].mxu0
      %v2105 = vadd.f32 0.0, %v2104
      %v2106 = vpop.f32.mrb[0].mxu0
      %v2107 = vadd.f32 0.0, %v2106
      %2108 = vmatprep.mubr.bf16.mxu0 0
      %2109 = vmatmul.mubr.bf16.gmra.mrb[0].mxu0 %v1946
      %v2110 = vpop.f32.mrb[0].mxu0
      %v2111 = vadd.f32 0.0, %v2110
      %v2112 = vpop.f32.mrb[0].mxu0
      %v2113 = vadd.f32 0.0, %v2112
      %v2114 = vpop.f32.mrb[0].mxu0
      %v2115 = vadd.f32 0.0, %v2114
      %v2116 = vpop.f32.mrb[0].mxu0
      %v2117 = vadd.f32 0.0, %v2116
      %2118 = vmatprep.mubr.bf16.mxu0 0
      %2119 = vmatmul.mubr.bf16.gmra.mrb[0].mxu0 %v1949
      %v2120 = vpop.f32.mrb[0].mxu0
      %v2121 = vadd.f32 0.0, %v2120
      %v2122 = vpop.f32.mrb[0].mxu0
      %v2123 = vadd.f32 0.0, %v2122
      %v2124 = vpop.f32.mrb[0].mxu0
      %v2125 = vadd.f32 0.0, %v2124
      %v2126 = vpop.f32.mrb[0].mxu0
      %v2127 = vadd.f32 0.0, %v2126
      %2128 = vmatprep.mubr.bf16.mxu0 0
      %2129 = vmatmul.mubr.bf16.gmra.mrb[0].mxu0 %v1952
      %v2130 = vpop.f32.mrb[0].mxu0
      %v2131 = vadd.f32 0.0, %v2130
      %v2132 = vpop.f32.mrb[0].mxu0
      %v2133 = vadd.f32 0.0, %v2132
      %v2134 = vpop.f32.mrb[0].mxu0
      %v2135 = vadd.f32 0.0, %v2134
      %v2136 = vpop.f32.mrb[0].mxu0
      %v2137 = vadd.f32 0.0, %v2136
      %2138 = vmatprep.mubr.bf16.mxu0 0
      %2139 = vmatmul.mubr.bf16.gmra.mrb[0].mxu0 %v1955
      %v2140 = vpop.f32.mrb[0].mxu0
      %v2141 = vadd.f32 0.0, %v2140
      %v2142 = vpop.f32.mrb[0].mxu0
      %v2143 = vadd.f32 0.0, %v2142
      %v2144 = vpop.f32.mrb[0].mxu0
      %v2145 = vadd.f32 0.0, %v2144
      %v2146 = vpop.f32.mrb[0].mxu0
      %v2147 = vadd.f32 0.0, %v2146
      %2148 = vmatprep.mubr.bf16.mxu0 0
      %2149 = vmatmul.mubr.bf16.gmra.mrb[0].mxu0 %v1958
      %v2150 = vpop.f32.mrb[0].mxu0
      %v2151 = vadd.f32 0.0, %v2150
      %v2152 = vpop.f32.mrb[0].mxu0
      %v2153 = vadd.f32 0.0, %v2152
      %v2154 = vpop.f32.mrb[0].mxu0
      %v2155 = vadd.f32 0.0, %v2154
      %v2156 = vpop.f32.mrb[0].mxu0
      %v2157 = vadd.f32 0.0, %v2156
      %2158 = vmatprep.mubr.bf16.mxu0 0
      %2159 = vmatmul.mubr.bf16.gmra.mrb[0].mxu0 %v1961
      %v2160 = vpop.f32.mrb[0].mxu0
      %v2161 = vadd.f32 0.0, %v2160
      %v2162 = vpop.f32.mrb[0].mxu0
      %v2163 = vadd.f32 0.0, %v2162
      %v2164 = vpop.f32.mrb[0].mxu0
      %v2165 = vadd.f32 0.0, %v2164
      %v2166 = vpop.f32.mrb[0].mxu0
      %v2167 = vadd.f32 0.0, %v2166
      %2168 = vmatprep.mubr.bf16.mxu0 0
      %2169 = vmatmul.mubr.bf16.gmra.mrb[0].mxu0 %v1964
      %v2170 = vpop.f32.mrb[0].mxu0
      %v2171 = vadd.f32 0.0, %v2170
      %v2172 = vpop.f32.mrb[0].mxu0
      %v2173 = vadd.f32 0.0, %v2172
      %v2174 = vpop.f32.mrb[0].mxu0
      %v2175 = vadd.f32 0.0, %v2174
      %v2176 = vpop.f32.mrb[0].mxu0
      %v2177 = vadd.f32 0.0, %v2176
      %2178 = vdwg.mxu0
      %v2179 = vsel %vm1256, %v2003, 0.0
      %v2180 = vadd.f32 %v2001, %v2179
      %2181 = vadd.xlane.f32.xlu0 %v2180
      %v2182 = vpop.xlane.xlu0 %2181
      %v2183 = vsel %vm1256, %v2007, 0.0
      %v2184 = vadd.f32 %v2005, %v2183
      %2185 = vadd.xlane.f32.xlu0 %v2184
      %v2186 = vpop.xlane.xlu0 %2185
      %v2187 = vsel %vm1256, %v2013, 0.0
      %v2188 = vadd.f32 %v2011, %v2187
      %2189 = vadd.xlane.f32.xlu0 %v2188
      %v2190 = vpop.xlane.xlu0 %2189
      %v2191 = vsel %vm1256, %v2017, 0.0
      %v2192 = vadd.f32 %v2015, %v2191
      %2193 = vadd.xlane.f32.xlu0 %v2192
      %v2194 = vpop.xlane.xlu0 %2193
      %v2195 = vsel %vm1256, %v2023, 0.0
      %v2196 = vadd.f32 %v2021, %v2195
      %2197 = vadd.xlane.f32.xlu0 %v2196
      %v2198 = vpop.xlane.xlu0 %2197
      %v2199 = vsel %vm1256, %v2027, 0.0
      %v2200 = vadd.f32 %v2025, %v2199
      %2201 = vadd.xlane.f32.xlu0 %v2200
      %v2202 = vpop.xlane.xlu0 %2201
      %v2203 = vsel %vm1256, %v2033, 0.0
      %v2204 = vadd.f32 %v2031, %v2203
      %2205 = vadd.xlane.f32.xlu0 %v2204
      %v2206 = vpop.xlane.xlu0 %2205
      %v2207 = vsel %vm1256, %v2037, 0.0
      %v2208 = vadd.f32 %v2035, %v2207
      %2209 = vadd.xlane.f32.xlu0 %v2208
      %v2210 = vpop.xlane.xlu0 %2209
      %v2211 = vsel %vm1256, %v2043, 0.0
      %v2212 = vadd.f32 %v2041, %v2211
      %2213 = vadd.xlane.f32.xlu0 %v2212
      %v2214 = vpop.xlane.xlu0 %2213
      %v2215 = vsel %vm1256, %v2047, 0.0
      %v2216 = vadd.f32 %v2045, %v2215
      %2217 = vadd.xlane.f32.xlu0 %v2216
      %v2218 = vpop.xlane.xlu0 %2217
      %v2219 = vsel %vm1256, %v2053, 0.0
      %v2220 = vadd.f32 %v2051, %v2219
      %2221 = vadd.xlane.f32.xlu0 %v2220
      %v2222 = vpop.xlane.xlu0 %2221
      %v2223 = vsel %vm1256, %v2057, 0.0
      %v2224 = vadd.f32 %v2055, %v2223
      %2225 = vadd.xlane.f32.xlu0 %v2224
      %v2226 = vpop.xlane.xlu0 %2225
      %v2227 = vsel %vm1256, %v2063, 0.0
      %v2228 = vadd.f32 %v2061, %v2227
      %2229 = vadd.xlane.f32.xlu0 %v2228
      %v2230 = vpop.xlane.xlu0 %2229
      %v2231 = vsel %vm1256, %v2067, 0.0
      %v2232 = vadd.f32 %v2065, %v2231
      %2233 = vadd.xlane.f32.xlu0 %v2232
      %v2234 = vpop.xlane.xlu0 %2233
      %v2235 = vsel %vm1256, %v2073, 0.0
      %v2236 = vadd.f32 %v2071, %v2235
      %2237 = vadd.xlane.f32.xlu0 %v2236
      %v2238 = vpop.xlane.xlu0 %2237
      %v2239 = vsel %vm1256, %v2077, 0.0
      %v2240 = vadd.f32 %v2075, %v2239
      %2241 = vadd.xlane.f32.xlu0 %v2240
      %v2242 = vpop.xlane.xlu0 %2241
      %v2243 = vsel %vm1256, %v2083, 0.0
      %v2244 = vadd.f32 %v2081, %v2243
      %2245 = vadd.xlane.f32.xlu0 %v2244
      %v2246 = vpop.xlane.xlu0 %2245
      %v2247 = vsel %vm1256, %v2087, 0.0
      %v2248 = vadd.f32 %v2085, %v2247
      %2249 = vadd.xlane.f32.xlu0 %v2248
      %v2250 = vpop.xlane.xlu0 %2249
      %v2251 = vsel %vm1256, %v2093, 0.0
      %v2252 = vadd.f32 %v2091, %v2251
      %2253 = vadd.xlane.f32.xlu0 %v2252
      %v2254 = vpop.xlane.xlu0 %2253
      %v2255 = vsel %vm1256, %v2097, 0.0
      %v2256 = vadd.f32 %v2095, %v2255
      %2257 = vadd.xlane.f32.xlu0 %v2256
      %v2258 = vpop.xlane.xlu0 %2257
      %v2259 = vsel %vm1256, %v2103, 0.0
      %v2260 = vadd.f32 %v2101, %v2259
      %2261 = vadd.xlane.f32.xlu0 %v2260
      %v2262 = vpop.xlane.xlu0 %2261
      %v2263 = vsel %vm1256, %v2107, 0.0
      %v2264 = vadd.f32 %v2105, %v2263
      %2265 = vadd.xlane.f32.xlu0 %v2264
      %v2266 = vpop.xlane.xlu0 %2265
      %v2267 = vsel %vm1256, %v2113, 0.0
      %v2268 = vadd.f32 %v2111, %v2267
      %2269 = vadd.xlane.f32.xlu0 %v2268
      %v2270 = vpop.xlane.xlu0 %2269
      %v2271 = vsel %vm1256, %v2117, 0.0
      %v2272 = vadd.f32 %v2115, %v2271
      %2273 = vadd.xlane.f32.xlu0 %v2272
      %v2274 = vpop.xlane.xlu0 %2273
      %v2275 = vsel %vm1256, %v2123, 0.0
      %v2276 = vadd.f32 %v2121, %v2275
      %2277 = vadd.xlane.f32.xlu0 %v2276
      %v2278 = vpop.xlane.xlu0 %2277
      %v2279 = vsel %vm1256, %v2127, 0.0
      %v2280 = vadd.f32 %v2125, %v2279
      %2281 = vadd.xlane.f32.xlu0 %v2280
      %v2282 = vpop.xlane.xlu0 %2281
      %v2283 = vsel %vm1256, %v2133, 0.0
      %v2284 = vadd.f32 %v2131, %v2283
      %2285 = vadd.xlane.f32.xlu0 %v2284
      %v2286 = vpop.xlane.xlu0 %2285
      %v2287 = vsel %vm1256, %v2137, 0.0
      %v2288 = vadd.f32 %v2135, %v2287
      %2289 = vadd.xlane.f32.xlu0 %v2288
      %v2290 = vpop.xlane.xlu0 %2289
      %v2291 = vsel %vm1256, %v2143, 0.0
      %v2292 = vadd.f32 %v2141, %v2291
      %2293 = vadd.xlane.f32.xlu0 %v2292
      %v2294 = vpop.xlane.xlu0 %2293
      %v2295 = vsel %vm1256, %v2147, 0.0
      %v2296 = vadd.f32 %v2145, %v2295
      %2297 = vadd.xlane.f32.xlu0 %v2296
      %v2298 = vpop.xlane.xlu0 %2297
      %v2299 = vsel %vm1256, %v2153, 0.0
      %v2300 = vadd.f32 %v2151, %v2299
      %2301 = vadd.xlane.f32.xlu0 %v2300
      %v2302 = vpop.xlane.xlu0 %2301
      %v2303 = vsel %vm1256, %v2157, 0.0
      %v2304 = vadd.f32 %v2155, %v2303
      %2305 = vadd.xlane.f32.xlu0 %v2304
      %v2306 = vpop.xlane.xlu0 %2305
      %v2307 = vsel %vm1256, %v2163, 0.0
      %v2308 = vadd.f32 %v2161, %v2307
      %2309 = vadd.xlane.f32.xlu0 %v2308
      %v2310 = vpop.xlane.xlu0 %2309
      %v2311 = vsel %vm1256, %v2167, 0.0
      %v2312 = vadd.f32 %v2165, %v2311
      %2313 = vadd.xlane.f32.xlu0 %v2312
      %v2314 = vpop.xlane.xlu0 %2313
      %v2315 = vsel %vm1256, %v2173, 0.0
      %v2316 = vadd.f32 %v2171, %v2315
      %2317 = vadd.xlane.f32.xlu0 %v2316
      %v2318 = vpop.xlane.xlu0 %2317
      %v2319 = vsel %vm1256, %v2177, 0.0
      %v2320 = vadd.f32 %v2175, %v2319
      %2321 = vadd.xlane.f32.xlu0 %v2320
      %v2322 = vpop.xlane.xlu0 %2321
      %v2323 = vmul.f32 %v2182, 0.0051020407
      %v2324 = vmul.f32 %v2186, 0.0051020407
      %v2325 = vmul.f32 %v2190, 0.0051020407
      %v2326 = vmul.f32 %v2194, 0.0051020407
      %v2327 = vmul.f32 %v2198, 0.0051020407
      %v2328 = vmul.f32 %v2202, 0.0051020407
      %v2329 = vmul.f32 %v2206, 0.0051020407
      %v2330 = vmul.f32 %v2210, 0.0051020407
      %v2331 = vmul.f32 %v2214, 0.0051020407
      %v2332 = vmul.f32 %v2218, 0.0051020407
      %v2333 = vmul.f32 %v2222, 0.0051020407
      %v2334 = vmul.f32 %v2226, 0.0051020407
      %v2335 = vmul.f32 %v2230, 0.0051020407
      %v2336 = vmul.f32 %v2234, 0.0051020407
      %v2337 = vmul.f32 %v2238, 0.0051020407
      %v2338 = vmul.f32 %v2242, 0.0051020407
      %v2339 = vmul.f32 %v2246, 0.0051020407
      %v2340 = vmul.f32 %v2250, 0.0051020407
      %v2341 = vmul.f32 %v2254, 0.0051020407
      %v2342 = vmul.f32 %v2258, 0.0051020407
      %v2343 = vmul.f32 %v2262, 0.0051020407
      %v2344 = vmul.f32 %v2266, 0.0051020407
      %v2345 = vmul.f32 %v2270, 0.0051020407
      %v2346 = vmul.f32 %v2274, 0.0051020407
      %v2347 = vmul.f32 %v2278, 0.0051020407
      %v2348 = vmul.f32 %v2282, 0.0051020407
      %v2349 = vmul.f32 %v2286, 0.0051020407
      %v2350 = vmul.f32 %v2290, 0.0051020407
      %v2351 = vmul.f32 %v2294, 0.0051020407
      %v2352 = vmul.f32 %v2298, 0.0051020407
      %v2353 = vmul.f32 %v2302, 0.0051020407
      %v2354 = vmul.f32 %v2306, 0.0051020407
      %v2355 = vmul.f32 %v2310, 0.0051020407
      %v2356 = vmul.f32 %v2314, 0.0051020407
      %v2357 = vmul.f32 %v2318, 0.0051020407
      %v2358 = vmul.f32 %v2322, 0.0051020407
      %v2359 = vmul.f32 %v2001, %v2001
      %v2360 = vmul.f32 %v2003, %v2003
      %v2361 = vmul.f32 %v2005, %v2005
      %v2362 = vmul.f32 %v2007, %v2007
      %v2363 = vmul.f32 %v2011, %v2011
      %v2364 = vmul.f32 %v2013, %v2013
      %v2365 = vmul.f32 %v2015, %v2015
      %v2366 = vmul.f32 %v2017, %v2017
      %v2367 = vmul.f32 %v2021, %v2021
      %v2368 = vmul.f32 %v2023, %v2023
      %v2369 = vmul.f32 %v2025, %v2025
      %v2370 = vmul.f32 %v2027, %v2027
      %v2371 = vmul.f32 %v2031, %v2031
      %v2372 = vmul.f32 %v2033, %v2033
      %v2373 = vmul.f32 %v2035, %v2035
      %v2374 = vmul.f32 %v2037, %v2037
      %v2375 = vmul.f32 %v2041, %v2041
      %v2376 = vmul.f32 %v2043, %v2043
      %v2377 = vmul.f32 %v2045, %v2045
      %v2378 = vmul.f32 %v2047, %v2047
      %v2379 = vmul.f32 %v2051, %v2051
      %v2380 = vmul.f32 %v2053, %v2053
      %v2381 = vmul.f32 %v2055, %v2055
      %v2382 = vmul.f32 %v2057, %v2057
      %v2383 = vmul.f32 %v2061, %v2061
      %v2384 = vmul.f32 %v2063, %v2063
      %v2385 = vmul.f32 %v2065, %v2065
      %v2386 = vmul.f32 %v2067, %v2067
      %v2387 = vmul.f32 %v2071, %v2071
      %v2388 = vmul.f32 %v2073, %v2073
      %v2389 = vmul.f32 %v2075, %v2075
      %v2390 = vmul.f32 %v2077, %v2077
      %v2391 = vmul.f32 %v2081, %v2081
      %v2392 = vmul.f32 %v2083, %v2083
      %v2393 = vmul.f32 %v2085, %v2085
      %v2394 = vmul.f32 %v2087, %v2087
      %v2395 = vmul.f32 %v2091, %v2091
      %v2396 = vmul.f32 %v2093, %v2093
      %v2397 = vmul.f32 %v2095, %v2095
      %v2398 = vmul.f32 %v2097, %v2097
      %v2399 = vmul.f32 %v2101, %v2101
      %v2400 = vmul.f32 %v2103, %v2103
      %v2401 = vmul.f32 %v2105, %v2105
      %v2402 = vmul.f32 %v2107, %v2107
      %v2403 = vmul.f32 %v2111, %v2111
      %v2404 = vmul.f32 %v2113, %v2113
      %v2405 = vmul.f32 %v2115, %v2115
      %v2406 = vmul.f32 %v2117, %v2117
      %v2407 = vmul.f32 %v2121, %v2121
      %v2408 = vmul.f32 %v2123, %v2123
      %v2409 = vmul.f32 %v2125, %v2125
      %v2410 = vmul.f32 %v2127, %v2127
      %v2411 = vmul.f32 %v2131, %v2131
      %v2412 = vmul.f32 %v2133, %v2133
      %v2413 = vmul.f32 %v2135, %v2135
      %v2414 = vmul.f32 %v2137, %v2137
      %v2415 = vmul.f32 %v2141, %v2141
      %v2416 = vmul.f32 %v2143, %v2143
      %v2417 = vmul.f32 %v2145, %v2145
      %v2418 = vmul.f32 %v2147, %v2147
      %v2419 = vmul.f32 %v2151, %v2151
      %v2420 = vmul.f32 %v2153, %v2153
      %v2421 = vmul.f32 %v2155, %v2155
      %v2422 = vmul.f32 %v2157, %v2157
      %v2423 = vmul.f32 %v2161, %v2161
      %v2424 = vmul.f32 %v2163, %v2163
      %v2425 = vmul.f32 %v2165, %v2165
      %v2426 = vmul.f32 %v2167, %v2167
      %v2427 = vmul.f32 %v2171, %v2171
      %v2428 = vmul.f32 %v2173, %v2173
      %v2429 = vmul.f32 %v2175, %v2175
      %v2430 = vmul.f32 %v2177, %v2177
      %v2431 = vsel %vm1256, %v2360, 0.0
      %v2432 = vadd.f32 %v2359, %v2431
      %2433 = vadd.xlane.f32.xlu0 %v2432
      %v2434 = vpop.xlane.xlu0 %2433
      %v2435 = vsel %vm1256, %v2362, 0.0
      %v2436 = vadd.f32 %v2361, %v2435
      %2437 = vadd.xlane.f32.xlu0 %v2436
      %v2438 = vpop.xlane.xlu0 %2437
      %v2439 = vsel %vm1256, %v2364, 0.0
      %v2440 = vadd.f32 %v2363, %v2439
      %2441 = vadd.xlane.f32.xlu0 %v2440
      %v2442 = vpop.xlane.xlu0 %2441
      %v2443 = vsel %vm1256, %v2366, 0.0
      %v2444 = vadd.f32 %v2365, %v2443
      %2445 = vadd.xlane.f32.xlu0 %v2444
      %v2446 = vpop.xlane.xlu0 %2445
      %v2447 = vsel %vm1256, %v2368, 0.0
      %v2448 = vadd.f32 %v2367, %v2447
      %2449 = vadd.xlane.f32.xlu0 %v2448
      %v2450 = vpop.xlane.xlu0 %2449
      %v2451 = vsel %vm1256, %v2370, 0.0
      %v2452 = vadd.f32 %v2369, %v2451
      %2453 = vadd.xlane.f32.xlu0 %v2452
      %v2454 = vpop.xlane.xlu0 %2453
      %v2455 = vsel %vm1256, %v2372, 0.0
      %v2456 = vadd.f32 %v2371, %v2455
      %2457 = vadd.xlane.f32.xlu0 %v2456
      %v2458 = vpop.xlane.xlu0 %2457
      %v2459 = vsel %vm1256, %v2374, 0.0
      %v2460 = vadd.f32 %v2373, %v2459
      %2461 = vadd.xlane.f32.xlu0 %v2460
      %v2462 = vpop.xlane.xlu0 %2461
      %v2463 = vsel %vm1256, %v2376, 0.0
      %v2464 = vadd.f32 %v2375, %v2463
      %2465 = vadd.xlane.f32.xlu0 %v2464
      %v2466 = vpop.xlane.xlu0 %2465
      %v2467 = vsel %vm1256, %v2378, 0.0
      %v2468 = vadd.f32 %v2377, %v2467
      %2469 = vadd.xlane.f32.xlu0 %v2468
      %v2470 = vpop.xlane.xlu0 %2469
      %v2471 = vsel %vm1256, %v2380, 0.0
      %v2472 = vadd.f32 %v2379, %v2471
      %2473 = vadd.xlane.f32.xlu0 %v2472
      %v2474 = vpop.xlane.xlu0 %2473
      %v2475 = vsel %vm1256, %v2382, 0.0
      %v2476 = vadd.f32 %v2381, %v2475
      %2477 = vadd.xlane.f32.xlu0 %v2476
      %v2478 = vpop.xlane.xlu0 %2477
      %v2479 = vsel %vm1256, %v2384, 0.0
      %v2480 = vadd.f32 %v2383, %v2479
      %2481 = vadd.xlane.f32.xlu0 %v2480
      %v2482 = vpop.xlane.xlu0 %2481
      %v2483 = vsel %vm1256, %v2386, 0.0
      %v2484 = vadd.f32 %v2385, %v2483
      %2485 = vadd.xlane.f32.xlu0 %v2484
      %v2486 = vpop.xlane.xlu0 %2485
      %v2487 = vsel %vm1256, %v2388, 0.0
      %v2488 = vadd.f32 %v2387, %v2487
      %2489 = vadd.xlane.f32.xlu0 %v2488
      %v2490 = vpop.xlane.xlu0 %2489
      %v2491 = vsel %vm1256, %v2390, 0.0
      %v2492 = vadd.f32 %v2389, %v2491
      %2493 = vadd.xlane.f32.xlu0 %v2492
      %v2494 = vpop.xlane.xlu0 %2493
      %v2495 = vsel %vm1256, %v2392, 0.0
      %v2496 = vadd.f32 %v2391, %v2495
      %2497 = vadd.xlane.f32.xlu0 %v2496
      %v2498 = vpop.xlane.xlu0 %2497
      %v2499 = vsel %vm1256, %v2394, 0.0
      %v2500 = vadd.f32 %v2393, %v2499
      %2501 = vadd.xlane.f32.xlu0 %v2500
      %v2502 = vpop.xlane.xlu0 %2501
      %v2503 = vsel %vm1256, %v2396, 0.0
      %v2504 = vadd.f32 %v2395, %v2503
      %2505 = vadd.xlane.f32.xlu0 %v2504
      %v2506 = vpop.xlane.xlu0 %2505
      %v2507 = vsel %vm1256, %v2398, 0.0
      %v2508 = vadd.f32 %v2397, %v2507
      %2509 = vadd.xlane.f32.xlu0 %v2508
      %v2510 = vpop.xlane.xlu0 %2509
      %v2511 = vsel %vm1256, %v2400, 0.0
      %v2512 = vadd.f32 %v2399, %v2511
      %2513 = vadd.xlane.f32.xlu0 %v2512
      %v2514 = vpop.xlane.xlu0 %2513
      %v2515 = vsel %vm1256, %v2402, 0.0
      %v2516 = vadd.f32 %v2401, %v2515
      %2517 = vadd.xlane.f32.xlu0 %v2516
      %v2518 = vpop.xlane.xlu0 %2517
      %v2519 = vsel %vm1256, %v2404, 0.0
      %v2520 = vadd.f32 %v2403, %v2519
      %2521 = vadd.xlane.f32.xlu0 %v2520
      %v2522 = vpop.xlane.xlu0 %2521
      %v2523 = vsel %vm1256, %v2406, 0.0
      %v2524 = vadd.f32 %v2405, %v2523
      %2525 = vadd.xlane.f32.xlu0 %v2524
      %v2526 = vpop.xlane.xlu0 %2525
      %v2527 = vsel %vm1256, %v2408, 0.0
      %v2528 = vadd.f32 %v2407, %v2527
      %2529 = vadd.xlane.f32.xlu0 %v2528
      %v2530 = vpop.xlane.xlu0 %2529
      %v2531 = vsel %vm1256, %v2410, 0.0
      %v2532 = vadd.f32 %v2409, %v2531
      %2533 = vadd.xlane.f32.xlu0 %v2532
      %v2534 = vpop.xlane.xlu0 %2533
      %v2535 = vsel %vm1256, %v2412, 0.0
      %v2536 = vadd.f32 %v2411, %v2535
      %2537 = vadd.xlane.f32.xlu0 %v2536
      %v2538 = vpop.xlane.xlu0 %2537
      %v2539 = vsel %vm1256, %v2414, 0.0
      %v2540 = vadd.f32 %v2413, %v2539
      %2541 = vadd.xlane.f32.xlu0 %v2540
      %v2542 = vpop.xlane.xlu0 %2541
      %v2543 = vsel %vm1256, %v2416, 0.0
      %v2544 = vadd.f32 %v2415, %v2543
      %2545 = vadd.xlane.f32.xlu0 %v2544
      %v2546 = vpop.xlane.xlu0 %2545
      %v2547 = vsel %vm1256, %v2418, 0.0
      %v2548 = vadd.f32 %v2417, %v2547
      %2549 = vadd.xlane.f32.xlu0 %v2548
      %v2550 = vpop.xlane.xlu0 %2549
      %v2551 = vsel %vm1256, %v2420, 0.0
      %v2552 = vadd.f32 %v2419, %v2551
      %2553 = vadd.xlane.f32.xlu0 %v2552
      %v2554 = vpop.xlane.xlu0 %2553
      %v2555 = vsel %vm1256, %v2422, 0.0
      %v2556 = vadd.f32 %v2421, %v2555
      %2557 = vadd.xlane.f32.xlu0 %v2556
      %v2558 = vpop.xlane.xlu0 %2557
      %v2559 = vsel %vm1256, %v2424, 0.0
      %v2560 = vadd.f32 %v2423, %v2559
      %2561 = vadd.xlane.f32.xlu0 %v2560
      %v2562 = vpop.xlane.xlu0 %2561
      %v2563 = vsel %vm1256, %v2426, 0.0
      %v2564 = vadd.f32 %v2425, %v2563
      %2565 = vadd.xlane.f32.xlu0 %v2564
      %v2566 = vpop.xlane.xlu0 %2565
      %v2567 = vsel %vm1256, %v2428, 0.0
      %v2568 = vadd.f32 %v2427, %v2567
      %2569 = vadd.xlane.f32.xlu0 %v2568
      %v2570 = vpop.xlane.xlu0 %2569
      %v2571 = vsel %vm1256, %v2430, 0.0
      %v2572 = vadd.f32 %v2429, %v2571
      %2573 = vadd.xlane.f32.xlu0 %v2572
      %v2574 = vpop.xlane.xlu0 %2573
      %v2575 = vmul.f32 %v2434, 0.0051020407
      %v2576 = vmul.f32 %v2438, 0.0051020407
      %v2577 = vmul.f32 %v2442, 0.0051020407
      %v2578 = vmul.f32 %v2446, 0.0051020407
      %v2579 = vmul.f32 %v2450, 0.0051020407
      %v2580 = vmul.f32 %v2454, 0.0051020407
      %v2581 = vmul.f32 %v2458, 0.0051020407
      %v2582 = vmul.f32 %v2462, 0.0051020407
      %v2583 = vmul.f32 %v2466, 0.0051020407
      %v2584 = vmul.f32 %v2470, 0.0051020407
      %v2585 = vmul.f32 %v2474, 0.0051020407
      %v2586 = vmul.f32 %v2478, 0.0051020407
      %v2587 = vmul.f32 %v2482, 0.0051020407
      %v2588 = vmul.f32 %v2486, 0.0051020407
      %v2589 = vmul.f32 %v2490, 0.0051020407
      %v2590 = vmul.f32 %v2494, 0.0051020407
      %v2591 = vmul.f32 %v2498, 0.0051020407
      %v2592 = vmul.f32 %v2502, 0.0051020407
      %v2593 = vmul.f32 %v2506, 0.0051020407
      %v2594 = vmul.f32 %v2510, 0.0051020407
      %v2595 = vmul.f32 %v2514, 0.0051020407
      %v2596 = vmul.f32 %v2518, 0.0051020407
      %v2597 = vmul.f32 %v2522, 0.0051020407
      %v2598 = vmul.f32 %v2526, 0.0051020407
      %v2599 = vmul.f32 %v2530, 0.0051020407
      %v2600 = vmul.f32 %v2534, 0.0051020407
      %v2601 = vmul.f32 %v2538, 0.0051020407
      %v2602 = vmul.f32 %v2542, 0.0051020407
      %v2603 = vmul.f32 %v2546, 0.0051020407
      %v2604 = vmul.f32 %v2550, 0.0051020407
      %v2605 = vmul.f32 %v2554, 0.0051020407
      %v2606 = vmul.f32 %v2558, 0.0051020407
      %v2607 = vmul.f32 %v2562, 0.0051020407
      %v2608 = vmul.f32 %v2566, 0.0051020407
      %v2609 = vmul.f32 %v2570, 0.0051020407
      %v2610 = vmul.f32 %v2574, 0.0051020407
      %v2611 = vmul.f32 %v2323, %v2323
      %v2612 = vmul.f32 %v2324, %v2324
      %v2613 = vmul.f32 %v2325, %v2325
      %v2614 = vmul.f32 %v2326, %v2326
      %v2615 = vmul.f32 %v2327, %v2327
      %v2616 = vmul.f32 %v2328, %v2328
      %v2617 = vmul.f32 %v2329, %v2329
      %v2618 = vmul.f32 %v2330, %v2330
      %v2619 = vmul.f32 %v2331, %v2331
      %v2620 = vmul.f32 %v2332, %v2332
      %v2621 = vmul.f32 %v2333, %v2333
      %v2622 = vmul.f32 %v2334, %v2334
      %v2623 = vmul.f32 %v2335, %v2335
      %v2624 = vmul.f32 %v2336, %v2336
      %v2625 = vmul.f32 %v2337, %v2337
      %v2626 = vmul.f32 %v2338, %v2338
      %v2627 = vmul.f32 %v2339, %v2339
      %v2628 = vmul.f32 %v2340, %v2340
      %v2629 = vmul.f32 %v2341, %v2341
      %v2630 = vmul.f32 %v2342, %v2342
      %v2631 = vmul.f32 %v2343, %v2343
      %v2632 = vmul.f32 %v2344, %v2344
      %v2633 = vmul.f32 %v2345, %v2345
      %v2634 = vmul.f32 %v2346, %v2346
      %v2635 = vmul.f32 %v2347, %v2347
      %v2636 = vmul.f32 %v2348, %v2348
      %v2637 = vmul.f32 %v2349, %v2349
      %v2638 = vmul.f32 %v2350, %v2350
      %v2639 = vmul.f32 %v2351, %v2351
      %v2640 = vmul.f32 %v2352, %v2352
      %v2641 = vmul.f32 %v2353, %v2353
      %v2642 = vmul.f32 %v2354, %v2354
      %v2643 = vmul.f32 %v2355, %v2355
      %v2644 = vmul.f32 %v2356, %v2356
      %v2645 = vmul.f32 %v2357, %v2357
      %v2646 = vmul.f32 %v2358, %v2358
      %v2647 = vsub.f32 %v2575, %v2611
      %v2648 = vsub.f32 %v2576, %v2612
      %v2649 = vsub.f32 %v2577, %v2613
      %v2650 = vsub.f32 %v2578, %v2614
      %v2651 = vsub.f32 %v2579, %v2615
      %v2652 = vsub.f32 %v2580, %v2616
      %v2653 = vsub.f32 %v2581, %v2617
      %v2654 = vsub.f32 %v2582, %v2618
      %v2655 = vsub.f32 %v2583, %v2619
      %v2656 = vsub.f32 %v2584, %v2620
      %v2657 = vsub.f32 %v2585, %v2621
      %v2658 = vsub.f32 %v2586, %v2622
      %v2659 = vsub.f32 %v2587, %v2623
      %v2660 = vsub.f32 %v2588, %v2624
      %v2661 = vsub.f32 %v2589, %v2625
      %v2662 = vsub.f32 %v2590, %v2626
      %v2663 = vsub.f32 %v2591, %v2627
      %v2664 = vsub.f32 %v2592, %v2628
      %v2665 = vsub.f32 %v2593, %v2629
      %v2666 = vsub.f32 %v2594, %v2630
      %v2667 = vsub.f32 %v2595, %v2631
      %v2668 = vsub.f32 %v2596, %v2632
      %v2669 = vsub.f32 %v2597, %v2633
      %v2670 = vsub.f32 %v2598, %v2634
      %v2671 = vsub.f32 %v2599, %v2635
      %v2672 = vsub.f32 %v2600, %v2636
      %v2673 = vsub.f32 %v2601, %v2637
      %v2674 = vsub.f32 %v2602, %v2638
      %v2675 = vsub.f32 %v2603, %v2639
      %v2676 = vsub.f32 %v2604, %v2640
      %v2677 = vsub.f32 %v2605, %v2641
      %v2678 = vsub.f32 %v2606, %v2642
      %v2679 = vsub.f32 %v2607, %v2643
      %v2680 = vsub.f32 %v2608, %v2644
      %v2681 = vsub.f32 %v2609, %v2645
      %v2682 = vsub.f32 %v2610, %v2646
      %v2683 = vld [vmem:[%s297] sm:$0xff]
      %v2684 = vld [vmem:[%s297 + $0x8] sm:$0xff]
      %v2685 = vld [vmem:[%s297 + $0x10] sm:$0xff]
      %v2686 = vld [vmem:[%s297 + $0x18] sm:$0xff]
      %v2687 = vld [vmem:[%s297 + $0x20] sm:$0xff]
      %v2688 = vld [vmem:[%s297 + $0x28] sm:$0xff]
      %v2689 = vld [vmem:[%s297 + $0x30] sm:$0xff]
      %v2690 = vld [vmem:[%s297 + $0x38] sm:$0xff]
      %v2691 = vld [vmem:[%s297 + $0x40] sm:$0xff]
      %v2692 = vld [vmem:[%s297 + $0x48] sm:$0xff]
      %v2693 = vld [vmem:[%s297 + $0x50] sm:$0xff]
      %v2694 = vld [vmem:[%s297 + $0x58] sm:$0xff]
      %v2695 = vld [vmem:[%s297 + $0x60] sm:$0xff]
      %v2696 = vld [vmem:[%s297 + $0x68] sm:$0xff]
      %v2697 = vld [vmem:[%s297 + $0x70] sm:$0xff]
      %v2698 = vld [vmem:[%s297 + $0x78] sm:$0xff]
      %v2699 = vld [vmem:[%s297 + $0x80] sm:$0xff]
      %v2700 = vld [vmem:[%s297 + $0x88] sm:$0xff]
      %v2701 = vld [vmem:[%s297 + $0x90] sm:$0xff]
      %v2702 = vld [vmem:[%s297 + $0x98] sm:$0xff]
      %v2703 = vld [vmem:[%s297 + $0xa0] sm:$0xff]
      %v2704 = vld [vmem:[%s297 + $0xa8] sm:$0xff]
      %v2705 = vld [vmem:[%s297 + $0xb0] sm:$0xff]
      %v2706 = vld [vmem:[%s297 + $0xb8] sm:$0xff]
      %v2707 = vld [vmem:[%s297 + $0xc0] sm:$0xff]
      %v2708 = vld [vmem:[%s297 + $0xc8] sm:$0xff]
      %v2709 = vld [vmem:[%s297 + $0xd0] sm:$0xff]
      %v2710 = vld [vmem:[%s297 + $0xd8] sm:$0xff]
      %v2711 = vld [vmem:[%s297 + $0xe0] sm:$0xff]
      %v2712 = vld [vmem:[%s297 + $0xe8] sm:$0xff]
      %v2713 = vld [vmem:[%s297 + $0xf0] sm:$0xff]
      %v2714 = vld [vmem:[%s297 + $0xf8] sm:$0xff]
      %v2715 = vld [vmem:[%s297 + $0x100] sm:$0xff]
      %v2716 = vld [vmem:[%s297 + $0x108] sm:$0xff]
      %v2717 = vld [vmem:[%s297 + $0x110] sm:$0xff]
      %v2718 = vld [vmem:[%s297 + $0x118] sm:$0xff]
      %v2719 = vadd.f32 %v2647, 1e-05
      %v2720 = vadd.f32 %v2648, 1e-05
      %v2721 = vadd.f32 %v2649, 1e-05
      %v2722 = vadd.f32 %v2650, 1e-05
      %v2723 = vadd.f32 %v2651, 1e-05
      %v2724 = vadd.f32 %v2652, 1e-05
      %v2725 = vadd.f32 %v2653, 1e-05
      %v2726 = vadd.f32 %v2654, 1e-05
      %v2727 = vadd.f32 %v2655, 1e-05
      %v2728 = vadd.f32 %v2656, 1e-05
      %v2729 = vadd.f32 %v2657, 1e-05
      %v2730 = vadd.f32 %v2658, 1e-05
      %v2731 = vadd.f32 %v2659, 1e-05
      %v2732 = vadd.f32 %v2660, 1e-05
      %v2733 = vadd.f32 %v2661, 1e-05
      %v2734 = vadd.f32 %v2662, 1e-05
      %v2735 = vadd.f32 %v2663, 1e-05
      %v2736 = vadd.f32 %v2664, 1e-05
      %v2737 = vadd.f32 %v2665, 1e-05
      %v2738 = vadd.f32 %v2666, 1e-05
      %v2739 = vadd.f32 %v2667, 1e-05
      %v2740 = vadd.f32 %v2668, 1e-05
      %v2741 = vadd.f32 %v2669, 1e-05
      %v2742 = vadd.f32 %v2670, 1e-05
      %v2743 = vadd.f32 %v2671, 1e-05
      %v2744 = vadd.f32 %v2672, 1e-05
      %v2745 = vadd.f32 %v2673, 1e-05
      %v2746 = vadd.f32 %v2674, 1e-05
      %v2747 = vadd.f32 %v2675, 1e-05
      %v2748 = vadd.f32 %v2676, 1e-05
      %v2749 = vadd.f32 %v2677, 1e-05
      %v2750 = vadd.f32 %v2678, 1e-05
      %v2751 = vadd.f32 %v2679, 1e-05
      %v2752 = vadd.f32 %v2680, 1e-05
      %v2753 = vadd.f32 %v2681, 1e-05
      %v2754 = vadd.f32 %v2682, 1e-05
      %v2755 = vrsqrt.pop %v2719
      %v2756 = vrsqrt.pop %v2720
      %v2757 = vrsqrt.pop %v2721
      %v2758 = vrsqrt.pop %v2722
      %v2759 = vrsqrt.pop %v2723
      %v2760 = vrsqrt.pop %v2724
      %v2761 = vrsqrt.pop %v2725
      %v2762 = vrsqrt.pop %v2726
      %v2763 = vrsqrt.pop %v2727
      %v2764 = vrsqrt.pop %v2728
      %v2765 = vrsqrt.pop %v2729
      %v2766 = vrsqrt.pop %v2730
      %v2767 = vrsqrt.pop %v2731
      %v2768 = vrsqrt.pop %v2732
      %v2769 = vrsqrt.pop %v2733
      %v2770 = vrsqrt.pop %v2734
      %v2771 = vrsqrt.pop %v2735
      %v2772 = vrsqrt.pop %v2736
      %v2773 = vrsqrt.pop %v2737
      %v2774 = vrsqrt.pop %v2738
      %v2775 = vrsqrt.pop %v2739
      %v2776 = vrsqrt.pop %v2740
      %v2777 = vrsqrt.pop %v2741
      %v2778 = vrsqrt.pop %v2742
      %v2779 = vrsqrt.pop %v2743
      %v2780 = vrsqrt.pop %v2744
      %v2781 = vrsqrt.pop %v2745
      %v2782 = vrsqrt.pop %v2746
      %v2783 = vrsqrt.pop %v2747
      %v2784 = vrsqrt.pop %v2748
      %v2785 = vrsqrt.pop %v2749
      %v2786 = vrsqrt.pop %v2750
      %v2787 = vrsqrt.pop %v2751
      %v2788 = vrsqrt.pop %v2752
      %v2789 = vrsqrt.pop %v2753
      %v2790 = vrsqrt.pop %v2754
      %v2791 = vmul.f32 %v2683, %v2755
      %v2792 = vmul.f32 %v2684, %v2756
      %v2793 = vmul.f32 %v2685, %v2757
      %v2794 = vmul.f32 %v2686, %v2758
      %v2795 = vmul.f32 %v2687, %v2759
      %v2796 = vmul.f32 %v2688, %v2760
      %v2797 = vmul.f32 %v2689, %v2761
      %v2798 = vmul.f32 %v2690, %v2762
      %v2799 = vmul.f32 %v2691, %v2763
      %v2800 = vmul.f32 %v2692, %v2764
      %v2801 = vmul.f32 %v2693, %v2765
      %v2802 = vmul.f32 %v2694, %v2766
      %v2803 = vmul.f32 %v2695, %v2767
      %v2804 = vmul.f32 %v2696, %v2768
      %v2805 = vmul.f32 %v2697, %v2769
      %v2806 = vmul.f32 %v2698, %v2770
      %v2807 = vmul.f32 %v2699, %v2771
      %v2808 = vmul.f32 %v2700, %v2772
      %v2809 = vmul.f32 %v2701, %v2773
      %v2810 = vmul.f32 %v2702, %v2774
      %v2811 = vmul.f32 %v2703, %v2775
      %v2812 = vmul.f32 %v2704, %v2776
      %v2813 = vmul.f32 %v2705, %v2777
      %v2814 = vmul.f32 %v2706, %v2778
      %v2815 = vmul.f32 %v2707, %v2779
      %v2816 = vmul.f32 %v2708, %v2780
      %v2817 = vmul.f32 %v2709, %v2781
      %v2818 = vmul.f32 %v2710, %v2782
      %v2819 = vmul.f32 %v2711, %v2783
      %v2820 = vmul.f32 %v2712, %v2784
      %v2821 = vmul.f32 %v2713, %v2785
      %v2822 = vmul.f32 %v2714, %v2786
      %v2823 = vmul.f32 %v2715, %v2787
      %v2824 = vmul.f32 %v2716, %v2788
      %v2825 = vmul.f32 %v2717, %v2789
      %v2826 = vmul.f32 %v2718, %v2790
      %v2827 = vmul.f32 %v2323, %v2791
      %v2828 = vmul.f32 %v2324, %v2792
      %v2829 = vmul.f32 %v2325, %v2793
      %v2830 = vmul.f32 %v2326, %v2794
      %v2831 = vmul.f32 %v2327, %v2795
      %v2832 = vmul.f32 %v2328, %v2796
      %v2833 = vmul.f32 %v2329, %v2797
      %v2834 = vmul.f32 %v2330, %v2798
      %v2835 = vmul.f32 %v2331, %v2799
      %v2836 = vmul.f32 %v2332, %v2800
      %v2837 = vmul.f32 %v2333, %v2801
      %v2838 = vmul.f32 %v2334, %v2802
      %v2839 = vmul.f32 %v2335, %v2803
      %v2840 = vmul.f32 %v2336, %v2804
      %v2841 = vmul.f32 %v2337, %v2805
      %v2842 = vmul.f32 %v2338, %v2806
      %v2843 = vmul.f32 %v2339, %v2807
      %v2844 = vmul.f32 %v2340, %v2808
      %v2845 = vmul.f32 %v2341, %v2809
      %v2846 = vmul.f32 %v2342, %v2810
      %v2847 = vmul.f32 %v2343, %v2811
      %v2848 = vmul.f32 %v2344, %v2812
      %v2849 = vmul.f32 %v2345, %v2813
      %v2850 = vmul.f32 %v2346, %v2814
      %v2851 = vmul.f32 %v2347, %v2815
      %v2852 = vmul.f32 %v2348, %v2816
      %v2853 = vmul.f32 %v2349, %v2817
      %v2854 = vmul.f32 %v2350, %v2818
      %v2855 = vmul.f32 %v2351, %v2819
      %v2856 = vmul.f32 %v2352, %v2820
      %v2857 = vmul.f32 %v2353, %v2821
      %v2858 = vmul.f32 %v2354, %v2822
      %v2859 = vmul.f32 %v2355, %v2823
      %v2860 = vmul.f32 %v2356, %v2824
      %v2861 = vmul.f32 %v2357, %v2825
      %v2862 = vmul.f32 %v2358, %v2826
      %2899 = vrot.lane.b32.xlu0 %v2827, 1
      %v2900 = vpop.permute.xlu0 %2899
      %2901 = vrot.lane.b32.xlu0 %v2828, 1
      %v2902 = vpop.permute.xlu0 %2901
      %2903 = vrot.lane.b32.xlu0 %v2829, 1
      %v2904 = vpop.permute.xlu0 %2903
      %2905 = vrot.lane.b32.xlu0 %v2830, 1
      %v2906 = vpop.permute.xlu0 %2905
      %2907 = vrot.lane.b32.xlu0 %v2831, 1
      %v2908 = vpop.permute.xlu0 %2907
      %2909 = vrot.lane.b32.xlu0 %v2832, 1
      %v2910 = vpop.permute.xlu0 %2909
      %2911 = vrot.lane.b32.xlu0 %v2833, 1
      %v2912 = vpop.permute.xlu0 %2911
      %2913 = vrot.lane.b32.xlu0 %v2834, 1
      %v2914 = vpop.permute.xlu0 %2913
      %2915 = vrot.lane.b32.xlu0 %v2835, 1
      %v2916 = vpop.permute.xlu0 %2915
      %2917 = vrot.lane.b32.xlu0 %v2836, 1
      %v2918 = vpop.permute.xlu0 %2917
      %2919 = vrot.lane.b32.xlu0 %v2837, 1
      %v2920 = vpop.permute.xlu0 %2919
      %2921 = vrot.lane.b32.xlu0 %v2838, 1
      %v2922 = vpop.permute.xlu0 %2921
      %2923 = vrot.lane.b32.xlu0 %v2839, 1
      %v2924 = vpop.permute.xlu0 %2923
      %2925 = vrot.lane.b32.xlu0 %v2840, 1
      %v2926 = vpop.permute.xlu0 %2925
      %2927 = vrot.lane.b32.xlu0 %v2841, 1
      %v2928 = vpop.permute.xlu0 %2927
      %2929 = vrot.lane.b32.xlu0 %v2842, 1
      %v2930 = vpop.permute.xlu0 %2929
      %2931 = vrot.lane.b32.xlu0 %v2843, 1
      %v2932 = vpop.permute.xlu0 %2931
      %2933 = vrot.lane.b32.xlu0 %v2844, 1
      %v2934 = vpop.permute.xlu0 %2933
      %2935 = vrot.lane.b32.xlu0 %v2845, 1
      %v2936 = vpop.permute.xlu0 %2935
      %2937 = vrot.lane.b32.xlu0 %v2846, 1
      %v2938 = vpop.permute.xlu0 %2937
      %2939 = vrot.lane.b32.xlu0 %v2847, 1
      %v2940 = vpop.permute.xlu0 %2939
      %2941 = vrot.lane.b32.xlu0 %v2848, 1
      %v2942 = vpop.permute.xlu0 %2941
      %2943 = vrot.lane.b32.xlu0 %v2849, 1
      %v2944 = vpop.permute.xlu0 %2943
      %2945 = vrot.lane.b32.xlu0 %v2850, 1
      %v2946 = vpop.permute.xlu0 %2945
      %2947 = vrot.lane.b32.xlu0 %v2851, 1
      %v2948 = vpop.permute.xlu0 %2947
      %2949 = vrot.lane.b32.xlu0 %v2852, 1
      %v2950 = vpop.permute.xlu0 %2949
      %2951 = vrot.lane.b32.xlu0 %v2853, 1
      %v2952 = vpop.permute.xlu0 %2951
      %2953 = vrot.lane.b32.xlu0 %v2854, 1
      %v2954 = vpop.permute.xlu0 %2953
      %2955 = vrot.lane.b32.xlu0 %v2855, 1
      %v2956 = vpop.permute.xlu0 %2955
      %2957 = vrot.lane.b32.xlu0 %v2856, 1
      %v2958 = vpop.permute.xlu0 %2957
      %2959 = vrot.lane.b32.xlu0 %v2857, 1
      %v2960 = vpop.permute.xlu0 %2959
      %2961 = vrot.lane.b32.xlu0 %v2858, 1
      %v2962 = vpop.permute.xlu0 %2961
      %2963 = vrot.lane.b32.xlu0 %v2859, 1
      %v2964 = vpop.permute.xlu0 %2963
      %2965 = vrot.lane.b32.xlu0 %v2860, 1
      %v2966 = vpop.permute.xlu0 %2965
      %2967 = vrot.lane.b32.xlu0 %v2861, 1
      %v2968 = vpop.permute.xlu0 %2967
      %2969 = vrot.lane.b32.xlu0 %v2862, 1
      %v2970 = vpop.permute.xlu0 %2969
      %v3007 = vsub.f32 %v2683, %v2900
      %v3008 = vsub.f32 %v2684, %v2902
      %v3009 = vsub.f32 %v2685, %v2904
      %v3010 = vsub.f32 %v2686, %v2906
      %v3011 = vsub.f32 %v2687, %v2908
      %v3012 = vsub.f32 %v2688, %v2910
      %v3013 = vsub.f32 %v2689, %v2912
      %v3014 = vsub.f32 %v2690, %v2914
      %v3015 = vsub.f32 %v2691, %v2916
      %v3016 = vsub.f32 %v2692, %v2918
      %v3017 = vsub.f32 %v2693, %v2920
      %v3018 = vsub.f32 %v2694, %v2922
      %v3019 = vsub.f32 %v2695, %v2924
      %v3020 = vsub.f32 %v2696, %v2926
      %v3021 = vsub.f32 %v2697, %v2928
      %v3022 = vsub.f32 %v2698, %v2930
      %v3023 = vsub.f32 %v2699, %v2932
      %v3024 = vsub.f32 %v2700, %v2934
      %v3025 = vsub.f32 %v2701, %v2936
      %v3026 = vsub.f32 %v2702, %v2938
      %v3027 = vsub.f32 %v2703, %v2940
      %v3028 = vsub.f32 %v2704, %v2942
      %v3029 = vsub.f32 %v2705, %v2944
      %v3030 = vsub.f32 %v2706, %v2946
      %v3031 = vsub.f32 %v2707, %v2948
      %v3032 = vsub.f32 %v2708, %v2950
      %v3033 = vsub.f32 %v2709, %v2952
      %v3034 = vsub.f32 %v2710, %v2954
      %v3035 = vsub.f32 %v2711, %v2956
      %v3036 = vsub.f32 %v2712, %v2958
      %v3037 = vsub.f32 %v2713, %v2960
      %v3038 = vsub.f32 %v2714, %v2962
      %v3039 = vsub.f32 %v2715, %v2964
      %v3040 = vsub.f32 %v2716, %v2966
      %v3041 = vsub.f32 %v2717, %v2968
      %v3042 = vsub.f32 %v2718, %v2970
      %3044 = vset.pattern.permute.xlu0 0
      %3045 = vperm.xlu0 %3044, %v2791
      %v3046 = vpop.permute.xlu0 %3045
      %3049 = vset.pattern.permute.xlu0 0
      %3050 = vperm.xlu0 %3049, %v2792
      %v3051 = vpop.permute.xlu0 %3050
      %3054 = vset.pattern.permute.xlu0 0
      %3055 = vperm.xlu0 %3054, %v2793
      %v3056 = vpop.permute.xlu0 %3055
      %3059 = vset.pattern.permute.xlu0 0
      %3060 = vperm.xlu0 %3059, %v2794
      %v3061 = vpop.permute.xlu0 %3060
      %3064 = vset.pattern.permute.xlu0 0
      %3065 = vperm.xlu0 %3064, %v2795
      %v3066 = vpop.permute.xlu0 %3065
      %3069 = vset.pattern.permute.xlu0 0
      %3070 = vperm.xlu0 %3069, %v2796
      %v3071 = vpop.permute.xlu0 %3070
      %3074 = vset.pattern.permute.xlu0 0
      %3075 = vperm.xlu0 %3074, %v2797
      %v3076 = vpop.permute.xlu0 %3075
      %3079 = vset.pattern.permute.xlu0 0
      %3080 = vperm.xlu0 %3079, %v2798
      %v3081 = vpop.permute.xlu0 %3080
      %3084 = vset.pattern.permute.xlu0 0
      %3085 = vperm.xlu0 %3084, %v2799
      %v3086 = vpop.permute.xlu0 %3085
      %3089 = vset.pattern.permute.xlu0 0
      %3090 = vperm.xlu0 %3089, %v2800
      %v3091 = vpop.permute.xlu0 %3090
      %3094 = vset.pattern.permute.xlu0 0
      %3095 = vperm.xlu0 %3094, %v2801
      %v3096 = vpop.permute.xlu0 %3095
      %3099 = vset.pattern.permute.xlu0 0
      %3100 = vperm.xlu0 %3099, %v2802
      %v3101 = vpop.permute.xlu0 %3100
      %3104 = vset.pattern.permute.xlu0 0
      %3105 = vperm.xlu0 %3104, %v2803
      %v3106 = vpop.permute.xlu0 %3105
      %3109 = vset.pattern.permute.xlu0 0
      %3110 = vperm.xlu0 %3109, %v2804
      %v3111 = vpop.permute.xlu0 %3110
      %3114 = vset.pattern.permute.xlu0 0
      %3115 = vperm.xlu0 %3114, %v2805
      %v3116 = vpop.permute.xlu0 %3115
      %3119 = vset.pattern.permute.xlu0 0
      %3120 = vperm.xlu0 %3119, %v2806
      %v3121 = vpop.permute.xlu0 %3120
      %3124 = vset.pattern.permute.xlu0 0
      %3125 = vperm.xlu0 %3124, %v2807
      %v3126 = vpop.permute.xlu0 %3125
      %3129 = vset.pattern.permute.xlu0 0
      %3130 = vperm.xlu0 %3129, %v2808
      %v3131 = vpop.permute.xlu0 %3130
      %3134 = vset.pattern.permute.xlu0 0
      %3135 = vperm.xlu0 %3134, %v2809
      %v3136 = vpop.permute.xlu0 %3135
      %3139 = vset.pattern.permute.xlu0 0
      %3140 = vperm.xlu0 %3139, %v2810
      %v3141 = vpop.permute.xlu0 %3140
      %3144 = vset.pattern.permute.xlu0 0
      %3145 = vperm.xlu0 %3144, %v2811
      %v3146 = vpop.permute.xlu0 %3145
      %3149 = vset.pattern.permute.xlu0 0
      %3150 = vperm.xlu0 %3149, %v2812
      %v3151 = vpop.permute.xlu0 %3150
      %3154 = vset.pattern.permute.xlu0 0
      %3155 = vperm.xlu0 %3154, %v2813
      %v3156 = vpop.permute.xlu0 %3155
      %3159 = vset.pattern.permute.xlu0 0
      %3160 = vperm.xlu0 %3159, %v2814
      %v3161 = vpop.permute.xlu0 %3160
      %3164 = vset.pattern.permute.xlu0 0
      %3165 = vperm.xlu0 %3164, %v2815
      %v3166 = vpop.permute.xlu0 %3165
      %3169 = vset.pattern.permute.xlu0 0
      %3170 = vperm.xlu0 %3169, %v2816
      %v3171 = vpop.permute.xlu0 %3170
      %3174 = vset.pattern.permute.xlu0 0
      %3175 = vperm.xlu0 %3174, %v2817
      %v3176 = vpop.permute.xlu0 %3175
      %3179 = vset.pattern.permute.xlu0 0
      %3180 = vperm.xlu0 %3179, %v2818
      %v3181 = vpop.permute.xlu0 %3180
      %3184 = vset.pattern.permute.xlu0 0
      %3185 = vperm.xlu0 %3184, %v2819
      %v3186 = vpop.permute.xlu0 %3185
      %3189 = vset.pattern.permute.xlu0 0
      %3190 = vperm.xlu0 %3189, %v2820
      %v3191 = vpop.permute.xlu0 %3190
      %3194 = vset.pattern.permute.xlu0 0
      %3195 = vperm.xlu0 %3194, %v2821
      %v3196 = vpop.permute.xlu0 %3195
      %3199 = vset.pattern.permute.xlu0 0
      %3200 = vperm.xlu0 %3199, %v2822
      %v3201 = vpop.permute.xlu0 %3200
      %3204 = vset.pattern.permute.xlu0 0
      %3205 = vperm.xlu0 %3204, %v2823
      %v3206 = vpop.permute.xlu0 %3205
      %3209 = vset.pattern.permute.xlu0 0
      %3210 = vperm.xlu0 %3209, %v2824
      %v3211 = vpop.permute.xlu0 %3210
      %3214 = vset.pattern.permute.xlu0 0
      %3215 = vperm.xlu0 %3214, %v2825
      %v3216 = vpop.permute.xlu0 %3215
      %3219 = vset.pattern.permute.xlu0 0
      %3220 = vperm.xlu0 %3219, %v2826
      %v3221 = vpop.permute.xlu0 %3220
      %v3223 = vmul.f32 %v2001, %v3046
      %v3224 = vmul.f32 %v2003, %v3046
      %v3225 = vmul.f32 %v2005, %v3051
      %v3226 = vmul.f32 %v2007, %v3051
      %v3227 = vmul.f32 %v2011, %v3056
      %v3228 = vmul.f32 %v2013, %v3056
      %v3229 = vmul.f32 %v2015, %v3061
      %v3230 = vmul.f32 %v2017, %v3061
      %v3231 = vmul.f32 %v2021, %v3066
      %v3232 = vmul.f32 %v2023, %v3066
      %v3233 = vmul.f32 %v2025, %v3071
      %v3234 = vmul.f32 %v2027, %v3071
      %v3235 = vmul.f32 %v2031, %v3076
      %v3236 = vmul.f32 %v2033, %v3076
      %v3237 = vmul.f32 %v2035, %v3081
      %v3238 = vmul.f32 %v2037, %v3081
      %v3239 = vmul.f32 %v2041, %v3086
      %v3240 = vmul.f32 %v2043, %v3086
      %v3241 = vmul.f32 %v2045, %v3091
      %v3242 = vmul.f32 %v2047, %v3091
      %v3243 = vmul.f32 %v2051, %v3096
      %v3244 = vmul.f32 %v2053, %v3096
      %v3245 = vmul.f32 %v2055, %v3101
      %v3246 = vmul.f32 %v2057, %v3101
      %v3247 = vmul.f32 %v2061, %v3106
      %v3248 = vmul.f32 %v2063, %v3106
      %v3249 = vmul.f32 %v2065, %v3111
      %v3250 = vmul.f32 %v2067, %v3111
      %v3251 = vmul.f32 %v2071, %v3116
      %v3252 = vmul.f32 %v2073, %v3116
      %v3253 = vmul.f32 %v2075, %v3121
      %v3254 = vmul.f32 %v2077, %v3121
      %v3255 = vmul.f32 %v2081, %v3126
      %v3256 = vmul.f32 %v2083, %v3126
      %v3257 = vmul.f32 %v2085, %v3131
      %v3258 = vmul.f32 %v2087, %v3131
      %v3259 = vmul.f32 %v2091, %v3136
      %v3260 = vmul.f32 %v2093, %v3136
      %v3261 = vmul.f32 %v2095, %v3141
      %v3262 = vmul.f32 %v2097, %v3141
      %v3263 = vmul.f32 %v2101, %v3146
      %v3264 = vmul.f32 %v2103, %v3146
      %v3265 = vmul.f32 %v2105, %v3151
      %v3266 = vmul.f32 %v2107, %v3151
      %v3267 = vmul.f32 %v2111, %v3156
      %v3268 = vmul.f32 %v2113, %v3156
      %v3269 = vmul.f32 %v2115, %v3161
      %v3270 = vmul.f32 %v2117, %v3161
      %v3271 = vmul.f32 %v2121, %v3166
      %v3272 = vmul.f32 %v2123, %v3166
      %v3273 = vmul.f32 %v2125, %v3171
      %v3274 = vmul.f32 %v2127, %v3171
      %v3275 = vmul.f32 %v2131, %v3176
      %v3276 = vmul.f32 %v2133, %v3176
      %v3277 = vmul.f32 %v2135, %v3181
      %v3278 = vmul.f32 %v2137, %v3181
      %v3279 = vmul.f32 %v2141, %v3186
      %v3280 = vmul.f32 %v2143, %v3186
      %v3281 = vmul.f32 %v2145, %v3191
      %v3282 = vmul.f32 %v2147, %v3191
      %v3283 = vmul.f32 %v2151, %v3196
      %v3284 = vmul.f32 %v2153, %v3196
      %v3285 = vmul.f32 %v2155, %v3201
      %v3286 = vmul.f32 %v2157, %v3201
      %v3287 = vmul.f32 %v2161, %v3206
      %v3288 = vmul.f32 %v2163, %v3206
      %v3289 = vmul.f32 %v2165, %v3211
      %v3290 = vmul.f32 %v2167, %v3211
      %v3291 = vmul.f32 %v2171, %v3216
      %v3292 = vmul.f32 %v2173, %v3216
      %v3293 = vmul.f32 %v2175, %v3221
      %v3294 = vmul.f32 %v2177, %v3221
      %3296 = vset.pattern.permute.xlu0 1
      %3297 = vperm.xlu0 %3296, %v3007
      %v3298 = vpop.permute.xlu0 %3297
      %3301 = vset.pattern.permute.xlu0 1
      %3302 = vperm.xlu0 %3301, %v3008
      %v3303 = vpop.permute.xlu0 %3302
      %3306 = vset.pattern.permute.xlu0 1
      %3307 = vperm.xlu0 %3306, %v3009
      %v3308 = vpop.permute.xlu0 %3307
      %3311 = vset.pattern.permute.xlu0 1
      %3312 = vperm.xlu0 %3311, %v3010
      %v3313 = vpop.permute.xlu0 %3312
      %3316 = vset.pattern.permute.xlu0 1
      %3317 = vperm.xlu0 %3316, %v3011
      %v3318 = vpop.permute.xlu0 %3317
      %3321 = vset.pattern.permute.xlu0 1
      %3322 = vperm.xlu0 %3321, %v3012
      %v3323 = vpop.permute.xlu0 %3322
      %3326 = vset.pattern.permute.xlu0 1
      %3327 = vperm.xlu0 %3326, %v3013
      %v3328 = vpop.permute.xlu0 %3327
      %3331 = vset.pattern.permute.xlu0 1
      %3332 = vperm.xlu0 %3331, %v3014
      %v3333 = vpop.permute.xlu0 %3332
      %3336 = vset.pattern.permute.xlu0 1
      %3337 = vperm.xlu0 %3336, %v3015
      %v3338 = vpop.permute.xlu0 %3337
      %3341 = vset.pattern.permute.xlu0 1
      %3342 = vperm.xlu0 %3341, %v3016
      %v3343 = vpop.permute.xlu0 %3342
      %3346 = vset.pattern.permute.xlu0 1
      %3347 = vperm.xlu0 %3346, %v3017
      %v3348 = vpop.permute.xlu0 %3347
      %3351 = vset.pattern.permute.xlu0 1
      %3352 = vperm.xlu0 %3351, %v3018
      %v3353 = vpop.permute.xlu0 %3352
      %3356 = vset.pattern.permute.xlu0 1
      %3357 = vperm.xlu0 %3356, %v3019
      %v3358 = vpop.permute.xlu0 %3357
      %3361 = vset.pattern.permute.xlu0 1
      %3362 = vperm.xlu0 %3361, %v3020
      %v3363 = vpop.permute.xlu0 %3362
      %3366 = vset.pattern.permute.xlu0 1
      %3367 = vperm.xlu0 %3366, %v3021
      %v3368 = vpop.permute.xlu0 %3367
      %3371 = vset.pattern.permute.xlu0 1
      %3372 = vperm.xlu0 %3371, %v3022
      %v3373 = vpop.permute.xlu0 %3372
      %3376 = vset.pattern.permute.xlu0 1
      %3377 = vperm.xlu0 %3376, %v3023
      %v3378 = vpop.permute.xlu0 %3377
      %3381 = vset.pattern.permute.xlu0 1
      %3382 = vperm.xlu0 %3381, %v3024
      %v3383 = vpop.permute.xlu0 %3382
      %3386 = vset.pattern.permute.xlu0 1
      %3387 = vperm.xlu0 %3386, %v3025
      %v3388 = vpop.permute.xlu0 %3387
      %3391 = vset.pattern.permute.xlu0 1
      %3392 = vperm.xlu0 %3391, %v3026
      %v3393 = vpop.permute.xlu0 %3392
      %3396 = vset.pattern.permute.xlu0 1
      %3397 = vperm.xlu0 %3396, %v3027
      %v3398 = vpop.permute.xlu0 %3397
      %3401 = vset.pattern.permute.xlu0 1
      %3402 = vperm.xlu0 %3401, %v3028
      %v3403 = vpop.permute.xlu0 %3402
      %3406 = vset.pattern.permute.xlu0 1
      %3407 = vperm.xlu0 %3406, %v3029
      %v3408 = vpop.permute.xlu0 %3407
      %3411 = vset.pattern.permute.xlu0 1
      %3412 = vperm.xlu0 %3411, %v3030
      %v3413 = vpop.permute.xlu0 %3412
      %3416 = vset.pattern.permute.xlu0 1
      %3417 = vperm.xlu0 %3416, %v3031
      %v3418 = vpop.permute.xlu0 %3417
      %3421 = vset.pattern.permute.xlu0 1
      %3422 = vperm.xlu0 %3421, %v3032
      %v3423 = vpop.permute.xlu0 %3422
      %3426 = vset.pattern.permute.xlu0 1
      %3427 = vperm.xlu0 %3426, %v3033
      %v3428 = vpop.permute.xlu0 %3427
      %3431 = vset.pattern.permute.xlu0 1
      %3432 = vperm.xlu0 %3431, %v3034
      %v3433 = vpop.permute.xlu0 %3432
      %3436 = vset.pattern.permute.xlu0 1
      %3437 = vperm.xlu0 %3436, %v3035
      %v3438 = vpop.permute.xlu0 %3437
      %3441 = vset.pattern.permute.xlu0 1
      %3442 = vperm.xlu0 %3441, %v3036
      %v3443 = vpop.permute.xlu0 %3442
      %3446 = vset.pattern.permute.xlu0 1
      %3447 = vperm.xlu0 %3446, %v3037
      %v3448 = vpop.permute.xlu0 %3447
      %3451 = vset.pattern.permute.xlu0 1
      %3452 = vperm.xlu0 %3451, %v3038
      %v3453 = vpop.permute.xlu0 %3452
      %3456 = vset.pattern.permute.xlu0 1
      %3457 = vperm.xlu0 %3456, %v3039
      %v3458 = vpop.permute.xlu0 %3457
      %3461 = vset.pattern.permute.xlu0 1
      %3462 = vperm.xlu0 %3461, %v3040
      %v3463 = vpop.permute.xlu0 %3462
      %3466 = vset.pattern.permute.xlu0 1
      %3467 = vperm.xlu0 %3466, %v3041
      %v3468 = vpop.permute.xlu0 %3467
      %3471 = vset.pattern.permute.xlu0 1
      %3472 = vperm.xlu0 %3471, %v3042
      %v3473 = vpop.permute.xlu0 %3472
      %v3475 = vadd.f32 %v3223, %v3298
      %v3476 = vadd.f32 %v3224, %v3298
      %v3477 = vadd.f32 %v3225, %v3303
      %v3478 = vadd.f32 %v3226, %v3303
      %v3479 = vadd.f32 %v3227, %v3308
      %v3480 = vadd.f32 %v3228, %v3308
      %v3481 = vadd.f32 %v3229, %v3313
      %v3482 = vadd.f32 %v3230, %v3313
      %v3483 = vadd.f32 %v3231, %v3318
      %v3484 = vadd.f32 %v3232, %v3318
      %v3485 = vadd.f32 %v3233, %v3323
      %v3486 = vadd.f32 %v3234, %v3323
      %v3487 = vadd.f32 %v3235, %v3328
      %v3488 = vadd.f32 %v3236, %v3328
      %v3489 = vadd.f32 %v3237, %v3333
      %v3490 = vadd.f32 %v3238, %v3333
      %v3491 = vadd.f32 %v3239, %v3338
      %v3492 = vadd.f32 %v3240, %v3338
      %v3493 = vadd.f32 %v3241, %v3343
      %v3494 = vadd.f32 %v3242, %v3343
      %v3495 = vadd.f32 %v3243, %v3348
      %v3496 = vadd.f32 %v3244, %v3348
      %v3497 = vadd.f32 %v3245, %v3353
      %v3498 = vadd.f32 %v3246, %v3353
      %v3499 = vadd.f32 %v3247, %v3358
      %v3500 = vadd.f32 %v3248, %v3358
      %v3501 = vadd.f32 %v3249, %v3363
      %v3502 = vadd.f32 %v3250, %v3363
      %v3503 = vadd.f32 %v3251, %v3368
      %v3504 = vadd.f32 %v3252, %v3368
      %v3505 = vadd.f32 %v3253, %v3373
      %v3506 = vadd.f32 %v3254, %v3373
      %v3507 = vadd.f32 %v3255, %v3378
      %v3508 = vadd.f32 %v3256, %v3378
      %v3509 = vadd.f32 %v3257, %v3383
      %v3510 = vadd.f32 %v3258, %v3383
      %v3511 = vadd.f32 %v3259, %v3388
      %v3512 = vadd.f32 %v3260, %v3388
      %v3513 = vadd.f32 %v3261, %v3393
      %v3514 = vadd.f32 %v3262, %v3393
      %v3515 = vadd.f32 %v3263, %v3398
      %v3516 = vadd.f32 %v3264, %v3398
      %v3517 = vadd.f32 %v3265, %v3403
      %v3518 = vadd.f32 %v3266, %v3403
      %v3519 = vadd.f32 %v3267, %v3408
      %v3520 = vadd.f32 %v3268, %v3408
      %v3521 = vadd.f32 %v3269, %v3413
      %v3522 = vadd.f32 %v3270, %v3413
      %v3523 = vadd.f32 %v3271, %v3418
      %v3524 = vadd.f32 %v3272, %v3418
      %v3525 = vadd.f32 %v3273, %v3423
      %v3526 = vadd.f32 %v3274, %v3423
      %v3527 = vadd.f32 %v3275, %v3428
      %v3528 = vadd.f32 %v3276, %v3428
      %v3529 = vadd.f32 %v3277, %v3433
      %v3530 = vadd.f32 %v3278, %v3433
      %v3531 = vadd.f32 %v3279, %v3438
      %v3532 = vadd.f32 %v3280, %v3438
      %v3533 = vadd.f32 %v3281, %v3443
      %v3534 = vadd.f32 %v3282, %v3443
      %v3535 = vadd.f32 %v3283, %v3448
      %v3536 = vadd.f32 %v3284, %v3448
      %v3537 = vadd.f32 %v3285, %v3453
      %v3538 = vadd.f32 %v3286, %v3453
      %v3539 = vadd.f32 %v3287, %v3458
      %v3540 = vadd.f32 %v3288, %v3458
      %v3541 = vadd.f32 %v3289, %v3463
      %v3542 = vadd.f32 %v3290, %v3463
      %v3543 = vadd.f32 %v3291, %v3468
      %v3544 = vadd.f32 %v3292, %v3468
      %v3545 = vadd.f32 %v3293, %v3473
      %v3546 = vadd.f32 %v3294, %v3473
      %3547 = vst [vmem:[%s304] sm:$0xff] %v3475
      %3548 = vst.msk [vmem:[%s304 + $0x8] sm:$0xff] %vm1256, %v3476
      %3549 = vst [vmem:[%s304 + $0x10] sm:$0xff] %v3477
      %3550 = vst.msk [vmem:[%s304 + $0x18] sm:$0xff] %vm1256, %v3478
      %3551 = vst [vmem:[%s304 + $0x20] sm:$0xff] %v3479
      %3552 = vst.msk [vmem:[%s304 + $0x28] sm:$0xff] %vm1256, %v3480
      %3553 = vst [vmem:[%s304 + $0x30] sm:$0xff] %v3481
      %3554 = vst.msk [vmem:[%s304 + $0x38] sm:$0xff] %vm1256, %v3482
      %3555 = vst [vmem:[%s304 + $0x40] sm:$0xff] %v3483
      %3556 = vst.msk [vmem:[%s304 + $0x48] sm:$0xff] %vm1256, %v3484
      %3557 = vst [vmem:[%s304 + $0x50] sm:$0xff] %v3485
      %3558 = vst.msk [vmem:[%s304 + $0x58] sm:$0xff] %vm1256, %v3486
      %3559 = vst [vmem:[%s304 + $0x60] sm:$0xff] %v3487
      %3560 = vst.msk [vmem:[%s304 + $0x68] sm:$0xff] %vm1256, %v3488
      %3561 = vst [vmem:[%s304 + $0x70] sm:$0xff] %v3489
      %3562 = vst.msk [vmem:[%s304 + $0x78] sm:$0xff] %vm1256, %v3490
      %3563 = vst [vmem:[%s304 + $0x80] sm:$0xff] %v3491
      %3564 = vst.msk [vmem:[%s304 + $0x88] sm:$0xff] %vm1256, %v3492
      %3565 = vst [vmem:[%s304 + $0x90] sm:$0xff] %v3493
      %3566 = vst.msk [vmem:[%s304 + $0x98] sm:$0xff] %vm1256, %v3494
      %3567 = vst [vmem:[%s304 + $0xa0] sm:$0xff] %v3495
      %3568 = vst.msk [vmem:[%s304 + $0xa8] sm:$0xff] %vm1256, %v3496
      %3569 = vst [vmem:[%s304 + $0xb0] sm:$0xff] %v3497
      %3570 = vst.msk [vmem:[%s304 + $0xb8] sm:$0xff] %vm1256, %v3498
      %3571 = vst [vmem:[%s304 + $0xc0] sm:$0xff] %v3499
      %3572 = vst.msk [vmem:[%s304 + $0xc8] sm:$0xff] %vm1256, %v3500
      %3573 = vst [vmem:[%s304 + $0xd0] sm:$0xff] %v3501
      %3574 = vst.msk [vmem:[%s304 + $0xd8] sm:$0xff] %vm1256, %v3502
      %3575 = vst [vmem:[%s304 + $0xe0] sm:$0xff] %v3503
      %3576 = vst.msk [vmem:[%s304 + $0xe8] sm:$0xff] %vm1256, %v3504
      %3577 = vst [vmem:[%s304 + $0xf0] sm:$0xff] %v3505
      %3578 = vst.msk [vmem:[%s304 + $0xf8] sm:$0xff] %vm1256, %v3506
      %3579 = vst [vmem:[%s304 + $0x100] sm:$0xff] %v3507
      %3580 = vst.msk [vmem:[%s304 + $0x108] sm:$0xff] %vm1256, %v3508
      %3581 = vst [vmem:[%s304 + $0x110] sm:$0xff] %v3509
      %3582 = vst.msk [vmem:[%s304 + $0x118] sm:$0xff] %vm1256, %v3510
      %3583 = vst [vmem:[%s304 + $0x120] sm:$0xff] %v3511
      %3584 = vst.msk [vmem:[%s304 + $0x128] sm:$0xff] %vm1256, %v3512
      %3585 = vst [vmem:[%s304 + $0x130] sm:$0xff] %v3513
      %3586 = vst.msk [vmem:[%s304 + $0x138] sm:$0xff] %vm1256, %v3514
      %3587 = vst [vmem:[%s304 + $0x140] sm:$0xff] %v3515
      %3588 = vst.msk [vmem:[%s304 + $0x148] sm:$0xff] %vm1256, %v3516
      %3589 = vst [vmem:[%s304 + $0x150] sm:$0xff] %v3517
      %3590 = vst.msk [vmem:[%s304 + $0x158] sm:$0xff] %vm1256, %v3518
      %3591 = vst [vmem:[%s304 + $0x160] sm:$0xff] %v3519
      %3592 = vst.msk [vmem:[%s304 + $0x168] sm:$0xff] %vm1256, %v3520
      %3593 = vst [vmem:[%s304 + $0x170] sm:$0xff] %v3521
      %3594 = vst.msk [vmem:[%s304 + $0x178] sm:$0xff] %vm1256, %v3522
      %3595 = vst [vmem:[%s304 + $0x180] sm:$0xff] %v3523
      %3596 = vst.msk [vmem:[%s304 + $0x188] sm:$0xff] %vm1256, %v3524
      %3597 = vst [vmem:[%s304 + $0x190] sm:$0xff] %v3525
      %3598 = vst.msk [vmem:[%s304 + $0x198] sm:$0xff] %vm1256, %v3526
      %3599 = vst [vmem:[%s304 + $0x1a0] sm:$0xff] %v3527
      %3600 = vst.msk [vmem:[%s304 + $0x1a8] sm:$0xff] %vm1256, %v3528
      %3601 = vst [vmem:[%s304 + $0x1b0] sm:$0xff] %v3529
      %3602 = vst.msk [vmem:[%s304 + $0x1b8] sm:$0xff] %vm1256, %v3530
      %3603 = vst [vmem:[%s304 + $0x1c0] sm:$0xff] %v3531
      %3604 = vst.msk [vmem:[%s304 + $0x1c8] sm:$0xff] %vm1256, %v3532
      %3605 = vst [vmem:[%s304 + $0x1d0] sm:$0xff] %v3533
      %3606 = vst.msk [vmem:[%s304 + $0x1d8] sm:$0xff] %vm1256, %v3534
      %3607 = vst [vmem:[%s304 + $0x1e0] sm:$0xff] %v3535
      %3608 = vst.msk [vmem:[%s304 + $0x1e8] sm:$0xff] %vm1256, %v3536
      %3609 = vst [vmem:[%s304 + $0x1f0] sm:$0xff] %v3537
      %3610 = vst.msk [vmem:[%s304 + $0x1f8] sm:$0xff] %vm1256, %v3538
      %3611 = vst [vmem:[%s304 + $0x200] sm:$0xff] %v3539
      %3612 = vst.msk [vmem:[%s304 + $0x208] sm:$0xff] %vm1256, %v3540
      %3613 = vst [vmem:[%s304 + $0x210] sm:$0xff] %v3541
      %3614 = vst.msk [vmem:[%s304 + $0x218] sm:$0xff] %vm1256, %v3542
      %3615 = vst [vmem:[%s304 + $0x220] sm:$0xff] %v3543
      %3616 = vst.msk [vmem:[%s304 + $0x228] sm:$0xff] %vm1256, %v3544
      %3617 = vst [vmem:[%s304 + $0x230] sm:$0xff] %v3545
      %3618 = vst.msk [vmem:[%s304 + $0x238] sm:$0xff] %vm1256, %v3546
      %s3619 = smul.u32 36, %s18
      %p3620 = scmp.lt.s32.totalorder %s3619, 71
      %s3621 = scalar_select %p3620, %s3619, 71
      %s3622 = smul.addr %s3621, 2
      %s3623 = smul.addr %s3622, 8
      %s3624 = scalar_lea.vmem %s7, %s3623
      // Predicated region
      $region49: #{tpu_custom_call.1} parent=47 // pred_check
        %p3625 = pneg %p193
      $region50: #{tpu_custom_call.1} parent=47 // pred_check_branch
        %3627 = sbr.rel (%p3625) target = $region52
      $region51: #{tpu_custom_call.1} parent=47 // pred_region
        %s3628 = smul.u32 36, %s18
      $region52: #{tpu_custom_call.1} parent=47 // pred_fallthru
        _
    $region48: #{tpu_custom_call.1} parent=5 // pred_fallthru
      _
    %p3629 = scmp.le.s32.totalorder 2, %s13
    // Predicated region
    $region53: #{tpu_custom_call.1} parent=5 // pred_check
      %p3630 = pneg %p3629
    $region54: #{tpu_custom_call.1} parent=5 // pred_check_branch
      %3632 = sbr.rel (%p3630) target = $region56
    $region55: #{tpu_custom_call.1} parent=5 // pred_region
      %s3633 = ssub.s32 %s13, 2
      // Predicated region
      $region57: #{tpu_custom_call.1} parent=55 // pred_check
        %p3634 = pneg %p199
      $region58: #{tpu_custom_call.1} parent=55 // pred_check_branch
        %3636 = sbr.rel (%p3634) target = $region60
      $region59: #{tpu_custom_call.1} parent=55 // pred_region
        %s3637 = smul.u32 36, %s19
        %p3638 = scmp.lt.s32.totalorder %s3637, 71
        %s3639 = scalar_select %p3638, %s3637, 71
        %s3640 = smul.addr %s3639, 2
        %s3641 = smul.addr %s3640, 8
        %s3642 = scalar_lea.vmem %s7, %s3641
      $region60: #{tpu_custom_call.1} parent=55 // pred_fallthru
        _
    $region56: #{tpu_custom_call.1} parent=5 // pred_fallthru
      _
  $region6: #{tpu_custom_call.1} parent=0 // loop_footer
    %s17 = sadd.s32 1, %s13
  $region7: #{tpu_custom_call.1} parent=0 // loop_footer_branch
    %12 = sbr.rel target = $region3
  $region8: #{tpu_custom_call.1} parent=0 // loop_exit
    _

</llo_original>
